<compile_context>
chip_gen: v7x
topology: tpu7x:2x2x1
jax: 0.10.0
libtpu: 0.0.40
codegen_flags: <defaults>
</compile_context>

<pallas_src>
import jax
import jax.numpy as jnp
from jax.experimental import pallas as pl
from jax.experimental.pallas import tpu as pltpu


def _fused_kernel(x_ref, r_ref, w1_ref, w2_ref, bo_ref, o_ref):
    # (C, P-tile) layout. BN scales folded into w1/w2, b1 folded into b_out.
    #   x_ref:  (672, tp)   input activations (free view of NCHW)
    #   r_ref:  (112, tp)   residual branch (x121)
    #   w1_ref: (112, 672)  conv2d45 weight * bn35 scale
    #   w2_ref: (672, 112)  conv2d46 weight * bn36 scale
    #   bo_ref: (672, 1)    bn36 bias + w2f @ bn35 bias
    h = jnp.dot(w1_ref[...], x_ref[...], preferred_element_type=jnp.float32)
    h = h + r_ref[...]
    y = jnp.dot(w2_ref[...], h, preferred_element_type=jnp.float32)
    o_ref[...] = y + bo_ref[...]


def _fold_bn(gamma, beta, mean, var, eps):
    scale = gamma / jnp.sqrt(var + eps)
    bias = beta - mean * scale
    return scale, bias


def fold_params(params, eps=1e-3):
    """One-time fold of BN scale into the 1x1-conv weights and b1 through w2.

    Called once outside the hot path (perf review: hoist the fold so the
    per-call graph is just the pallas_call).
    """
    c_mid, c_in = params["w1"].shape[0], params["w1"].shape[1]
    s1, b1 = _fold_bn(params["bn1_g"], params["bn1_b"],
                      params["bn1_m"], params["bn1_v"], eps)
    s2, b2 = _fold_bn(params["bn2_g"], params["bn2_b"],
                      params["bn2_m"], params["bn2_v"], eps)
    w1f = params["w1"].reshape(c_mid, c_in) * s1[:, None]          # (112, 672)
    w2f = params["w2"].reshape(c_in, c_mid) * s2[:, None]          # (672, 112)
    # b_out = b2 + w2f @ b1  (fold the first BN bias through the second conv)
    b_out = (b2 + w2f @ b1).reshape(c_in, 1)                       # (672, 1)
    return {"w1f": w1f, "w2f": w2f, "b_out": b_out}


def fused_block(x133, x121, folded):
    """x133: (N, 672, H, W) f32, x121: (N, 112, H, W) f32 -> (N, 672, H, W)."""
    n, c_in, h, w = x133.shape          # c_in  = 672
    _, c_mid, _, _ = x121.shape         # c_mid = 112
    p = h * w

    # Free views (no transpose / no copy): NCHW -> (N, C, H*W)
    x = x133.reshape(n, c_in, p)
    r = x121.reshape(n, c_mid, p)

    w1f = folded["w1f"]
    w2f = folded["w2f"]
    b_out = folded["b_out"]

    # Lane (spatial) tiling: 128-lane blocks when P > 128 (partial last block
    # is masked by Pallas).  Gives >=2 grid steps at N=1 (dual-core on v7x,
    # read/write overlap elsewhere) and keeps VMEM bounded at large P.
    tp = p if p <= 128 else 128
    grid = (n, pl.cdiv(p, tp))

    # Advisory cost hint: two matmuls, one read of x/r, one write of out.
    flops = 4 * n * p * c_in * c_mid
    bytes_accessed = 4 * (n * c_in * p        # x read
                          + n * c_mid * p     # residual read
                          + n * c_in * p      # output write
                          + 2 * c_in * c_mid  # weights
                          + c_in)             # fused bias

    out = pl.pallas_call(
        _fused_kernel,
        out_shape=jax.ShapeDtypeStruct((n, c_in, p), jnp.float32),
        grid=grid,
        in_specs=[
            pl.BlockSpec((None, c_in, tp), lambda i, j: (i, 0, j)),   # x
            pl.BlockSpec((None, c_mid, tp), lambda i, j: (i, 0, j)),  # residual
            pl.BlockSpec((c_mid, c_in), lambda i, j: (0, 0)),         # w1 (resident)
            pl.BlockSpec((c_in, c_mid), lambda i, j: (0, 0)),         # w2 (resident)
            pl.BlockSpec((c_in, 1), lambda i, j: (0, 0)),             # b_out
        ],
        out_specs=pl.BlockSpec((None, c_in, tp), lambda i, j: (i, 0, j)),
        compiler_params=pltpu.CompilerParams(
            dimension_semantics=("parallel", "parallel")),
        cost_estimate=pl.CostEstimate(flops=flops, transcendentals=0,
                                      bytes_accessed=bytes_accessed),
    )(x, r, w1f, w2f, b_out)

    # Free view back to NCHW.
    return out.reshape(n, c_in, h, w)


def _reference(x133, x121, params, eps=1e-3):
    """Plain-JAX reference for verification (inference-mode BN, eps=0.001)."""
    c_mid = x121.shape[1]
    c_in = x133.shape[1]
    w1 = params["w1"].reshape(c_mid, c_in)
    w2 = params["w2"].reshape(c_in, c_mid)
    s1, b1 = _fold_bn(params["bn1_g"], params["bn1_b"],
                      params["bn1_m"], params["bn1_v"], eps)
    s2, b2 = _fold_bn(params["bn2_g"], params["bn2_b"],
                      params["bn2_m"], params["bn2_v"], eps)
    h = jnp.einsum("nchw,oc->nohw", x133, w1)
    h = h * s1[None, :, None, None] + b1[None, :, None, None]
    h = h + x121
    y = jnp.einsum("nchw,oc->nohw", h, w2)
    return y * s2[None, :, None, None] + b2[None, :, None, None]


if __name__ == "__main__":
    key = jax.random.PRNGKey(0)
    keys = jax.random.split(key, 12)

    N, C_BIG, C_SMALL, H, W = 1, 672, 112, 14, 14

    # inputs (shapes implied by the module's forward)
    x133 = jax.random.normal(keys[0], (N, C_BIG, H, W), dtype=jnp.float32)
    x121 = jax.random.normal(keys[1], (N, C_SMALL, H, W), dtype=jnp.float32)

    # deterministic parameter init (synthetic, not a checkpoint load)
    params = {
        "w1": jax.random.normal(keys[2], (C_SMALL, C_BIG, 1, 1), jnp.float32) * 0.05,
        "w2": jax.random.normal(keys[3], (C_BIG, C_SMALL, 1, 1), jnp.float32) * 0.05,
        "bn1_g": jax.random.normal(keys[4], (C_SMALL,), jnp.float32) * 0.1 + 1.0,
        "bn1_b": jax.random.normal(keys[5], (C_SMALL,), jnp.float32) * 0.1,
        "bn1_m": jax.random.normal(keys[6], (C_SMALL,), jnp.float32) * 0.1,
        "bn1_v": jnp.abs(jax.random.normal(keys[7], (C_SMALL,), jnp.float32)) * 0.1 + 0.9,
        "bn2_g": jax.random.normal(keys[8], (C_BIG,), jnp.float32) * 0.1 + 1.0,
        "bn2_b": jax.random.normal(keys[9], (C_BIG,), jnp.float32) * 0.1,
        "bn2_m": jax.random.normal(keys[10], (C_BIG,), jnp.float32) * 0.1,
        "bn2_v": jnp.abs(jax.random.normal(keys[11], (C_BIG,), jnp.float32)) * 0.1 + 0.9,
    }

    # One-time BN/bias fold (hoisted out of the hot path).
    folded = fold_params(params, eps=1e-3)
    folded = jax.tree_util.tree_map(jax.block_until_ready, folded)

    out = jax.jit(fused_block)(x133, x121, folded)
    out = jax.block_until_ready(out)

    ref = _reference(x133, x121, params, eps=1e-3)
    assert out.shape == (N, C_BIG, H, W)
    assert jnp.allclose(out, ref, atol=1e-3, rtol=1e-3)

    print("KERNEL_OK")
</pallas_src>

<mosaic_0001>
module attributes {stable_mosaic.version = 11 : i64} {
  func.func @_fused_kernel(%arg0: i32, %arg1: i32, %arg2: memref<1x672x128xf32, #tpu.memory_space<vmem>>, %arg3: memref<1x112x128xf32, #tpu.memory_space<vmem>>, %arg4: memref<112x672xf32, #tpu.memory_space<vmem>>, %arg5: memref<672x112xf32, #tpu.memory_space<vmem>>, %arg6: memref<672x1xf32, #tpu.memory_space<vmem>>, %arg7: memref<1x672x128xf32, #tpu.memory_space<vmem>>) attributes {dimension_semantics = [#tpu.dimension_semantics<parallel>, #tpu.dimension_semantics<parallel>], iteration_bounds = array<i64: 1, 2>, scalar_prefetch = 0 : i64, scratch_operands = 0 : i64, tpu.core_type = #tpu.core_type<tc>, window_params = [{transform_indices = @transform_0, window_bounds = array<i64: 1, 672, 128>}, {transform_indices = @transform_1, window_bounds = array<i64: 1, 112, 128>}, {pipeline_mode = #tpu.pipeline_mode<synchronous>, transform_indices = @transform_2, window_bounds = array<i64: 112, 672>}, {pipeline_mode = #tpu.pipeline_mode<synchronous>, transform_indices = @transform_3, window_bounds = array<i64: 672, 112>}, {pipeline_mode = #tpu.pipeline_mode<synchronous>, transform_indices = @transform_4, window_bounds = array<i64: 672, 1>}, {transform_indices = @transform_5, window_bounds = array<i64: 1, 672, 128>}]} {
    %c0 = arith.constant 0 : index
    %c0_0 = arith.constant 0 : index
    %0 = vector.load %arg4[%c0, %c0_0] : memref<112x672xf32, #tpu.memory_space<vmem>>, vector<112x672xf32>
    %c0_1 = arith.constant 0 : index
    %c0_2 = arith.constant 0 : index
    %c0_3 = arith.constant 0 : index
    %1 = vector.load %arg2[%c0_1, %c0_2, %c0_3] : memref<1x672x128xf32, #tpu.memory_space<vmem>>, vector<1x672x128xf32>
    %2 = vector.shape_cast %1 : vector<1x672x128xf32> to vector<672x128xf32>
    %cst = arith.constant dense<0.000000e+00> : vector<112x128xf32>
    %3 = tpu.matmul %0, %2, %cst {dimension_numbers = #tpu.dot_dimension_numbers<[1], [0], [0], [1], [0, 0, 1, 1], [], []>} : vector<112x672xf32>, vector<672x128xf32>, vector<112x128xf32> -> vector<112x128xf32>
    %c0_4 = arith.constant 0 : index
    %c0_5 = arith.constant 0 : index
    %c0_6 = arith.constant 0 : index
    %4 = vector.load %arg3[%c0_4, %c0_5, %c0_6] : memref<1x112x128xf32, #tpu.memory_space<vmem>>, vector<1x112x128xf32>
    %5 = vector.shape_cast %4 : vector<1x112x128xf32> to vector<112x128xf32>
    %6 = arith.addf %3, %5 : vector<112x128xf32>
    %c0_7 = arith.constant 0 : index
    %c0_8 = arith.constant 0 : index
    %7 = vector.load %arg5[%c0_7, %c0_8] : memref<672x112xf32, #tpu.memory_space<vmem>>, vector<672x112xf32>
    %cst_9 = arith.constant dense<0.000000e+00> : vector<672x128xf32>
    %8 = tpu.matmul %7, %6, %cst_9 {dimension_numbers = #tpu.dot_dimension_numbers<[1], [0], [0], [1], [0, 0, 1, 1], [], []>} : vector<672x112xf32>, vector<112x128xf32>, vector<672x128xf32> -> vector<672x128xf32>
    %c0_10 = arith.constant 0 : index
    %c0_11 = arith.constant 0 : index
    %9 = vector.load %arg6[%c0_10, %c0_11] : memref<672x1xf32, #tpu.memory_space<vmem>>, vector<672x1xf32>
    %10 = vector.broadcast %9 : vector<672x1xf32> to vector<672x128xf32>
    %11 = arith.addf %8, %10 : vector<672x128xf32>
    %c0_12 = arith.constant 0 : index
    %c0_13 = arith.constant 0 : index
    %c0_14 = arith.constant 0 : index
    %12 = vector.load %arg7[%c0_12, %c0_13, %c0_14] : memref<1x672x128xf32, #tpu.memory_space<vmem>>, vector<1x672x128xf32>
    %13 = vector.shape_cast %12 : vector<1x672x128xf32> to vector<672x128xf32>
    %14 = vector.shape_cast %11 : vector<672x128xf32> to vector<1x672x128xf32>
    tpu.vector_store %arg7[%c0_12, %c0_13, %c0_14], %14 {strides = array<i32>} : memref<1x672x128xf32, #tpu.memory_space<vmem>>, vector<1x672x128xf32>,
    return
  }
  func.func @transform_0(%arg0: i32, %arg1: i32) -> (i32, i32, i32) {
    %c0_i32 = arith.constant 0 : i32
    %c0_i32_0 = arith.constant 0 : i32
    return %arg0, %c0_i32, %arg1 : i32, i32, i32
  }
  func.func @transform_1(%arg0: i32, %arg1: i32) -> (i32, i32, i32) {
    %c0_i32 = arith.constant 0 : i32
    %c0_i32_0 = arith.constant 0 : i32
    return %arg0, %c0_i32, %arg1 : i32, i32, i32
  }
  func.func @transform_2(%arg0: i32, %arg1: i32) -> (i32, i32) {
    %c0_i32 = arith.constant 0 : i32
    %c0_i32_0 = arith.constant 0 : i32
    %c0_i32_1 = arith.constant 0 : i32
    return %c0_i32, %c0_i32_0 : i32, i32
  }
  func.func @transform_3(%arg0: i32, %arg1: i32) -> (i32, i32) {
    %c0_i32 = arith.constant 0 : i32
    %c0_i32_0 = arith.constant 0 : i32
    %c0_i32_1 = arith.constant 0 : i32
    return %c0_i32, %c0_i32_0 : i32, i32
  }
  func.func @transform_4(%arg0: i32, %arg1: i32) -> (i32, i32) {
    %c0_i32 = arith.constant 0 : i32
    %c0_i32_0 = arith.constant 0 : i32
    %c0_i32_1 = arith.constant 0 : i32
    return %c0_i32, %c0_i32_0 : i32, i32
  }
  func.func @transform_5(%arg0: i32, %arg1: i32) -> (i32, i32, i32) {
    %c0_i32 = arith.constant 0 : i32
    %c0_i32_0 = arith.constant 0 : i32
    return %arg0, %c0_i32, %arg1 : i32, i32, i32
  }
}

</mosaic_0001>

<llo_original>
// kernel: fused_block.1
$region0: #{fused_block.1}
  #allocation0 [shape = 'u32[]', space=smem, size = 0x4, offset = 0x4, fixed_abs, tag = 'smem constant byte address 0x4 - core index']
  #allocation1 [shape = 'u32[144,128]{1,0:T(1,128)}', space=vmem, size = 0x12000, scoped, tag = 'internal scratch']
  %s0 = inlined_call_operand.vmem [shape: f32[1,672,196], index: 0, kind: input, shape index: {}]
  %s1 = inlined_call_operand.vmem [shape: f32[1,112,196], index: 1, kind: input, shape index: {}]
  %s2 = inlined_call_operand.vmem [shape: f32[112,672], index: 2, kind: input, shape index: {}]
  %s3 = inlined_call_operand.vmem [shape: f32[672,112], index: 3, kind: input, shape index: {}]
  %s4 = inlined_call_operand.vmem [shape: f32[672,1], index: 4, kind: input, shape index: {}]
  %s5 = inlined_call_operand.vmem [shape: f32[1,672,196], index: 5, kind: output, shape index: {}]
  %s6 = sld [smem:[#allocation0]]
  $region163: #{fused_block.1} parent=0
    _
  %s8 = ssub.s32 1, %s6
  %s9 = scalar_select 0, %s8, %s6
  $region1: #{fused_block.1} parent=0
    #allocation2 [shape = 'u8[688128]{0}', space=vmem, size = 0xa8000, scoped, tag = 'input window, operand 0']
    #allocation3 [shape = 'u8[114688]{0}', space=vmem, size = 0x1c000, scoped, tag = 'input window, operand 1']
    #allocation4 [shape = 'u8[688128]{0}', space=vmem, size = 0xa8000, scoped, tag = 'output window, operand 0']
    loop: start=0, step=1, limit=4
    $region2: #{fused_block.1} parent=1 // loop_pre_header
      _
    $region3: #{fused_block.1} parent=1 // loop_header
      %s11 = sphi 0, %s15
      %p12 = scmp.ge.s32.totalorder %s11, 4
      %s18 = sphi 0, %s30
      %s19 = sphi 0, %s26
      %s20 = sphi 0, %s18
      %s21 = sphi 0, %s19
      %s22 = sphi 0, %s20
      %s23 = sphi 0, %s21
      %s35 = sphi 0, %s37
      %s38 = sphi 0, %s35
      %s39 = sphi 0, %s38
      %s55 = sphi 0, %s39
      %s63 = sphi 0, %s65
      %s66 = sphi 0, %s63
      %s67 = sphi 0, %s66
      %s83 = sphi 0, %s67
      %s87 = sphi 0, %s87
      %s89 = sphi 0, %s87
      %s90 = sphi 0, %s89
      %s104 = sphi 0, %s90
      %s108 = sphi 0, %s108
      %s110 = sphi 0, %s108
      %s111 = sphi 0, %s110
      %s125 = sphi 0, %s111
      %s129 = sphi 0, %s129
      %s131 = sphi 0, %s129
      %s132 = sphi 0, %s131
      %s146 = sphi 0, %s132
      %s154 = sphi 0, %s156
      %s157 = sphi 0, %s154
      %s158 = sphi 0, %s157
      %s174 = sphi 0, %s158
    $region4: #{fused_block.1} parent=1 // loop_header_branch
      %14 = sbr.rel (%p12) target = $region8
    $region5: #{fused_block.1} parent=1 // loop_body
      %s16 = ssub.s32 %s11, 1
      %s17 = ssub.s32 %s11, 2
      %s24 = sadd.s32 1, %s19
      %p25 = scmp.ge.s32.totalorder %s24, 2
      %s26 = scalar_select %p25, 0, %s24
      %s27 = sadd.s32 1, %s18
      %s28 = scalar_select %p25, %s27, %s18
      %p29 = scmp.ge.s32.totalorder %s28, 1
      %s30 = scalar_select %p29, 0, %s28
      %s31 = ssub.s32 %s18, %s30
      %s32 = ssub.s32 %s19, %s26
      %s33 = sor.u32 %s31, %s32
      %p34 = scmp.eq.s32.totalorder %s33, 0
      %s36 = sadd.s32 %s35, 1
      %s37 = scalar_select %p34, %s35, %s36
      %p40 = pneg %p34
      %p41 = scmp.eq.s32.totalorder %s11, 1
      %p42 = por %p40, %p41
      %p43 = scmp.ne.s32.totalorder %s35, %s38
      %p44 = scmp.eq.s32.totalorder %s11, 0
      %p45 = por %p43, %p44
      %p46 = scmp.ne.s32.totalorder %s35, %s38
      %p47 = scmp.eq.s32.totalorder %s16, 1
      %p48 = por %p46, %p47
      %p49 = scmp.ne.s32.totalorder %s38, %s39
      %p50 = scmp.eq.s32.totalorder %s16, 0
      %p51 = por %p49, %p50
      %p52 = scmp.ne.s32.totalorder %s38, %s39
      %p53 = scmp.eq.s32.totalorder %s17, 1
      %p54 = por %p52, %p53
      %p56 = scmp.ne.s32.totalorder %s39, %s55
      %p57 = scmp.eq.s32.totalorder %s17, 0
      %p58 = por %p56, %p57
      %s59 = ssub.s32 %s18, %s30
      %s60 = ssub.s32 %s19, %s26
      %s61 = sor.u32 %s59, %s60
      %p62 = scmp.eq.s32.totalorder %s61, 0
      %s64 = sadd.s32 %s63, 1
      %s65 = scalar_select %p62, %s63, %s64
      %p68 = pneg %p62
      %p69 = scmp.eq.s32.totalorder %s11, 1
      %p70 = por %p68, %p69
      %p71 = scmp.ne.s32.totalorder %s63, %s66
      %p72 = scmp.eq.s32.totalorder %s11, 0
      %p73 = por %p71, %p72
      %p74 = scmp.ne.s32.totalorder %s63, %s66
      %p75 = scmp.eq.s32.totalorder %s16, 1
      %p76 = por %p74, %p75
      %p77 = scmp.ne.s32.totalorder %s66, %s67
      %p78 = scmp.eq.s32.totalorder %s16, 0
      %p79 = por %p77, %p78
      %p80 = scmp.ne.s32.totalorder %s66, %s67
      %p81 = scmp.eq.s32.totalorder %s17, 1
      %p82 = por %p80, %p81
      %p84 = scmp.ne.s32.totalorder %s67, %s83
      %p85 = scmp.eq.s32.totalorder %s17, 0
      %p86 = por %p84, %p85
      %s88 = sadd.s32 %s87, 1
      %p91 = scmp.eq.s32.totalorder %s11, 1
      %p92 = scmp.ne.s32.totalorder %s87, %s89
      %p93 = scmp.eq.s32.totalorder %s11, 0
      %p94 = por %p92, %p93
      %p95 = scmp.ne.s32.totalorder %s87, %s89
      %p96 = scmp.eq.s32.totalorder %s16, 1
      %p97 = por %p95, %p96
      %p98 = scmp.ne.s32.totalorder %s89, %s90
      %p99 = scmp.eq.s32.totalorder %s16, 0
      %p100 = por %p98, %p99
      %p101 = scmp.ne.s32.totalorder %s89, %s90
      %p102 = scmp.eq.s32.totalorder %s17, 1
      %p103 = por %p101, %p102
      %p105 = scmp.ne.s32.totalorder %s90, %s104
      %p106 = scmp.eq.s32.totalorder %s17, 0
      %p107 = por %p105, %p106
      %s109 = sadd.s32 %s108, 1
      %p112 = scmp.eq.s32.totalorder %s11, 1
      %p113 = scmp.ne.s32.totalorder %s108, %s110
      %p114 = scmp.eq.s32.totalorder %s11, 0
      %p115 = por %p113, %p114
      %p116 = scmp.ne.s32.totalorder %s108, %s110
      %p117 = scmp.eq.s32.totalorder %s16, 1
      %p118 = por %p116, %p117
      %p119 = scmp.ne.s32.totalorder %s110, %s111
      %p120 = scmp.eq.s32.totalorder %s16, 0
      %p121 = por %p119, %p120
      %p122 = scmp.ne.s32.totalorder %s110, %s111
      %p123 = scmp.eq.s32.totalorder %s17, 1
      %p124 = por %p122, %p123
      %p126 = scmp.ne.s32.totalorder %s111, %s125
      %p127 = scmp.eq.s32.totalorder %s17, 0
      %p128 = por %p126, %p127
      %s130 = sadd.s32 %s129, 1
      %p133 = scmp.eq.s32.totalorder %s11, 1
      %p134 = scmp.ne.s32.totalorder %s129, %s131
      %p135 = scmp.eq.s32.totalorder %s11, 0
      %p136 = por %p134, %p135
      %p137 = scmp.ne.s32.totalorder %s129, %s131
      %p138 = scmp.eq.s32.totalorder %s16, 1
      %p139 = por %p137, %p138
      %p140 = scmp.ne.s32.totalorder %s131, %s132
      %p141 = scmp.eq.s32.totalorder %s16, 0
      %p142 = por %p140, %p141
      %p143 = scmp.ne.s32.totalorder %s131, %s132
      %p144 = scmp.eq.s32.totalorder %s17, 1
      %p145 = por %p143, %p144
      %p147 = scmp.ne.s32.totalorder %s132, %s146
      %p148 = scmp.eq.s32.totalorder %s17, 0
      %p149 = por %p147, %p148
      %s150 = ssub.s32 %s18, %s30
      %s151 = ssub.s32 %s19, %s26
      %s152 = sor.u32 %s150, %s151
      %p153 = scmp.eq.s32.totalorder %s152, 0
      %s155 = sadd.s32 %s154, 1
      %s156 = scalar_select %p153, %s154, %s155
      %p159 = pneg %p153
      %p160 = scmp.eq.s32.totalorder %s11, 1
      %p161 = por %p159, %p160
      %p162 = scmp.ne.s32.totalorder %s154, %s157
      %p163 = scmp.eq.s32.totalorder %s11, 0
      %p164 = por %p162, %p163
      %p165 = scmp.ne.s32.totalorder %s154, %s157
      %p166 = scmp.eq.s32.totalorder %s16, 1
      %p167 = por %p165, %p166
      %p168 = scmp.ne.s32.totalorder %s157, %s158
      %p169 = scmp.eq.s32.totalorder %s16, 0
      %p170 = por %p168, %p169
      %p171 = scmp.ne.s32.totalorder %s157, %s158
      %p172 = scmp.eq.s32.totalorder %s17, 1
      %p173 = por %p171, %p172
      %p175 = scmp.ne.s32.totalorder %s158, %s174
      %p176 = scmp.eq.s32.totalorder %s17, 0
      %p177 = por %p175, %p176
      %p178 = scmp.le.s32.totalorder 1, %s11
      %p179 = scmp.lt.s32.totalorder %s11, 3
      %p180 = pnand %p178, %p179
      %p181 = pneg %p180
      // Predicated region
      $region9: #{fused_block.1} parent=5 // pred_check
        _
      $region10: #{fused_block.1} parent=5 // pred_check_branch
        %183 = sbr.rel (%p180) target = $region12
      $region11: #{fused_block.1} parent=5 // pred_region
        %s184 = ssub.s32 %s11, 1
        // Predicated region
        $region13: #{fused_block.1} parent=11 // pred_check
          %p185 = pneg %p100
        $region14: #{fused_block.1} parent=11 // pred_check_branch
          %187 = sbr.rel (%p185) target = $region16
        $region15: #{fused_block.1} parent=11 // pred_region
          _
        $region16: #{fused_block.1} parent=11 // pred_fallthru
          _
        // Predicated region
        $region17: #{fused_block.1} parent=11 // pred_check
          %p188 = pneg %p121
        $region18: #{fused_block.1} parent=11 // pred_check_branch
          %190 = sbr.rel (%p188) target = $region20
        $region19: #{fused_block.1} parent=11 // pred_region
          _
        $region20: #{fused_block.1} parent=11 // pred_fallthru
          _
        // Predicated region
        $region21: #{fused_block.1} parent=11 // pred_check
          %p191 = pneg %p142
        $region22: #{fused_block.1} parent=11 // pred_check_branch
          %193 = sbr.rel (%p191) target = $region24
        $region23: #{fused_block.1} parent=11 // pred_region
          _
        $region24: #{fused_block.1} parent=11 // pred_fallthru
          _
      $region12: #{fused_block.1} parent=5 // pred_fallthru
        _
      %p194 = scmp.lt.s32.totalorder %s11, 2
      // Predicated region
      $region25: #{fused_block.1} parent=5 // pred_check
        %p195 = pneg %p194
      $region26: #{fused_block.1} parent=5 // pred_check_branch
        %197 = sbr.rel (%p195) target = $region28
      $region27: #{fused_block.1} parent=5 // pred_region
        // Predicated region
        $region29: #{fused_block.1} parent=27 // pred_check
          %p198 = pneg %p45
        $region30: #{fused_block.1} parent=27 // pred_check_branch
          %200 = sbr.rel (%p198) target = $region32
        $region31: #{fused_block.1} parent=27 // pred_region
          %s201 = sand.u32 %s35, 1
          %s202 = sand.u32 %s35, 1
          %s203 = smul.addr %s202, 672
          %s204 = scalar_lea.vmem [#allocation2], %s203
          %s205 = smul.addr %s18, 168
          %s206 = sadd.s32 %s19, %s205
          %s207 = smul.addr %s206, 8
          %s208 = scalar_lea.vmem %s0, %s207
          // Predicated region
          $region33: #{fused_block.1} parent=31 // pred_check
            _
          $region34: #{fused_block.1} parent=31 // pred_check_branch
            %210 = sbr.rel (0) target = $region36
          $region35: #{fused_block.1} parent=31 // pred_region
            // Predicated region
            $region37: #{fused_block.1} parent=35 // pred_check
              _
            $region38: #{fused_block.1} parent=35 // pred_check_branch
              %212 = sbr.rel (0) target = $region40
            $region39: #{fused_block.1} parent=35 // pred_region
              // Predicated region
              $region52: #{fused_block.1} parent=39 // pred_check
                _
              $region53: #{fused_block.1} parent=39 // pred_check_branch
                %393 = sbr.rel (0) target = $region55
              $region54: #{fused_block.1} parent=39 // pred_region
                loop: start=0, step=1, limit=1
                $region56: #{fused_block.1} parent=54 // loop_pre_header
                  _
                $region57: #{fused_block.1} parent=54 // loop_header
                  %s395 = sphi 0, %s399
                  %p396 = scmp.ge.s32.totalorder %s395, 1
                  %s400 = sphi %s208, %s208
                  %s401 = sphi %s204, %s204
                $region58: #{fused_block.1} parent=54 // loop_header_branch
                  %398 = sbr.rel (%p396) target = $region62
                $region59: #{fused_block.1} parent=54 // loop_body
                  %v402 = vld [vmem:[%s400] sm:$0xff]
                  %403 = vst [vmem:[%s401] sm:$0xff] %v402
                  %v404 = vld [vmem:[%s400 + $0x10] sm:$0xff]
                  %405 = vst [vmem:[%s401 + $0x8] sm:$0xff] %v404
                  %v406 = vld [vmem:[%s400 + $0x20] sm:$0xff]
                  %407 = vst [vmem:[%s401 + $0x10] sm:$0xff] %v406
                  %v408 = vld [vmem:[%s400 + $0x30] sm:$0xff]
                  %409 = vst [vmem:[%s401 + $0x18] sm:$0xff] %v408
                  %v410 = vld [vmem:[%s400 + $0x40] sm:$0xff]
                  %411 = vst [vmem:[%s401 + $0x20] sm:$0xff] %v410
                  %v412 = vld [vmem:[%s400 + $0x50] sm:$0xff]
                  %413 = vst [vmem:[%s401 + $0x28] sm:$0xff] %v412
                  %v414 = vld [vmem:[%s400 + $0x60] sm:$0xff]
                  %415 = vst [vmem:[%s401 + $0x30] sm:$0xff] %v414
                  %v416 = vld [vmem:[%s400 + $0x70] sm:$0xff]
                  %417 = vst [vmem:[%s401 + $0x38] sm:$0xff] %v416
                  %v418 = vld [vmem:[%s400 + $0x80] sm:$0xff]
                  %419 = vst [vmem:[%s401 + $0x40] sm:$0xff] %v418
                  %v420 = vld [vmem:[%s400 + $0x90] sm:$0xff]
                  %421 = vst [vmem:[%s401 + $0x48] sm:$0xff] %v420
                  %v422 = vld [vmem:[%s400 + $0xa0] sm:$0xff]
                  %423 = vst [vmem:[%s401 + $0x50] sm:$0xff] %v422
                  %v424 = vld [vmem:[%s400 + $0xb0] sm:$0xff]
                  %425 = vst [vmem:[%s401 + $0x58] sm:$0xff] %v424
                  %v426 = vld [vmem:[%s400 + $0xc0] sm:$0xff]
                  %427 = vst [vmem:[%s401 + $0x60] sm:$0xff] %v426
                  %v428 = vld [vmem:[%s400 + $0xd0] sm:$0xff]
                  %429 = vst [vmem:[%s401 + $0x68] sm:$0xff] %v428
                  %v430 = vld [vmem:[%s400 + $0xe0] sm:$0xff]
                  %431 = vst [vmem:[%s401 + $0x70] sm:$0xff] %v430
                  %v432 = vld [vmem:[%s400 + $0xf0] sm:$0xff]
                  %433 = vst [vmem:[%s401 + $0x78] sm:$0xff] %v432
                  %v434 = vld [vmem:[%s400 + $0x100] sm:$0xff]
                  %435 = vst [vmem:[%s401 + $0x80] sm:$0xff] %v434
                  %v436 = vld [vmem:[%s400 + $0x110] sm:$0xff]
                  %437 = vst [vmem:[%s401 + $0x88] sm:$0xff] %v436
                  %v438 = vld [vmem:[%s400 + $0x120] sm:$0xff]
                  %439 = vst [vmem:[%s401 + $0x90] sm:$0xff] %v438
                  %v440 = vld [vmem:[%s400 + $0x130] sm:$0xff]
                  %441 = vst [vmem:[%s401 + $0x98] sm:$0xff] %v440
                  %v442 = vld [vmem:[%s400 + $0x140] sm:$0xff]
                  %443 = vst [vmem:[%s401 + $0xa0] sm:$0xff] %v442
                  %v444 = vld [vmem:[%s400 + $0x150] sm:$0xff]
                  %445 = vst [vmem:[%s401 + $0xa8] sm:$0xff] %v444
                  %v446 = vld [vmem:[%s400 + $0x160] sm:$0xff]
                  %447 = vst [vmem:[%s401 + $0xb0] sm:$0xff] %v446
                  %v448 = vld [vmem:[%s400 + $0x170] sm:$0xff]
                  %449 = vst [vmem:[%s401 + $0xb8] sm:$0xff] %v448
                  %v450 = vld [vmem:[%s400 + $0x180] sm:$0xff]
                  %451 = vst [vmem:[%s401 + $0xc0] sm:$0xff] %v450
                  %v452 = vld [vmem:[%s400 + $0x190] sm:$0xff]
                  %453 = vst [vmem:[%s401 + $0xc8] sm:$0xff] %v452
                  %v454 = vld [vmem:[%s400 + $0x1a0] sm:$0xff]
                  %455 = vst [vmem:[%s401 + $0xd0] sm:$0xff] %v454
                  %v456 = vld [vmem:[%s400 + $0x1b0] sm:$0xff]
                  %457 = vst [vmem:[%s401 + $0xd8] sm:$0xff] %v456
                  %v458 = vld [vmem:[%s400 + $0x1c0] sm:$0xff]
                  %459 = vst [vmem:[%s401 + $0xe0] sm:$0xff] %v458
                  %v460 = vld [vmem:[%s400 + $0x1d0] sm:$0xff]
                  %461 = vst [vmem:[%s401 + $0xe8] sm:$0xff] %v460
                  %v462 = vld [vmem:[%s400 + $0x1e0] sm:$0xff]
                  %463 = vst [vmem:[%s401 + $0xf0] sm:$0xff] %v462
                  %v464 = vld [vmem:[%s400 + $0x1f0] sm:$0xff]
                  %465 = vst [vmem:[%s401 + $0xf8] sm:$0xff] %v464
                  %v466 = vld [vmem:[%s400 + $0x200] sm:$0xff]
                  %467 = vst [vmem:[%s401 + $0x100] sm:$0xff] %v466
                  %v468 = vld [vmem:[%s400 + $0x210] sm:$0xff]
                  %469 = vst [vmem:[%s401 + $0x108] sm:$0xff] %v468
                  %v470 = vld [vmem:[%s400 + $0x220] sm:$0xff]
                  %471 = vst [vmem:[%s401 + $0x110] sm:$0xff] %v470
                  %v472 = vld [vmem:[%s400 + $0x230] sm:$0xff]
                  %473 = vst [vmem:[%s401 + $0x118] sm:$0xff] %v472
                  %v474 = vld [vmem:[%s400 + $0x240] sm:$0xff]
                  %475 = vst [vmem:[%s401 + $0x120] sm:$0xff] %v474
                  %v476 = vld [vmem:[%s400 + $0x250] sm:$0xff]
                  %477 = vst [vmem:[%s401 + $0x128] sm:$0xff] %v476
                  %v478 = vld [vmem:[%s400 + $0x260] sm:$0xff]
                  %479 = vst [vmem:[%s401 + $0x130] sm:$0xff] %v478
                  %v480 = vld [vmem:[%s400 + $0x270] sm:$0xff]
                  %481 = vst [vmem:[%s401 + $0x138] sm:$0xff] %v480
                  %v482 = vld [vmem:[%s400 + $0x280] sm:$0xff]
                  %483 = vst [vmem:[%s401 + $0x140] sm:$0xff] %v482
                  %v484 = vld [vmem:[%s400 + $0x290] sm:$0xff]
                  %485 = vst [vmem:[%s401 + $0x148] sm:$0xff] %v484
                  %v486 = vld [vmem:[%s400 + $0x2a0] sm:$0xff]
                  %487 = vst [vmem:[%s401 + $0x150] sm:$0xff] %v486
                  %v488 = vld [vmem:[%s400 + $0x2b0] sm:$0xff]
                  %489 = vst [vmem:[%s401 + $0x158] sm:$0xff] %v488
                  %v490 = vld [vmem:[%s400 + $0x2c0] sm:$0xff]
                  %491 = vst [vmem:[%s401 + $0x160] sm:$0xff] %v490
                  %v492 = vld [vmem:[%s400 + $0x2d0] sm:$0xff]
                  %493 = vst [vmem:[%s401 + $0x168] sm:$0xff] %v492
                  %v494 = vld [vmem:[%s400 + $0x2e0] sm:$0xff]
                  %495 = vst [vmem:[%s401 + $0x170] sm:$0xff] %v494
                  %v496 = vld [vmem:[%s400 + $0x2f0] sm:$0xff]
                  %497 = vst [vmem:[%s401 + $0x178] sm:$0xff] %v496
                  %v498 = vld [vmem:[%s400 + $0x300] sm:$0xff]
                  %499 = vst [vmem:[%s401 + $0x180] sm:$0xff] %v498
                  %v500 = vld [vmem:[%s400 + $0x310] sm:$0xff]
                  %501 = vst [vmem:[%s401 + $0x188] sm:$0xff] %v500
                  %v502 = vld [vmem:[%s400 + $0x320] sm:$0xff]
                  %503 = vst [vmem:[%s401 + $0x190] sm:$0xff] %v502
                  %v504 = vld [vmem:[%s400 + $0x330] sm:$0xff]
                  %505 = vst [vmem:[%s401 + $0x198] sm:$0xff] %v504
                  %v506 = vld [vmem:[%s400 + $0x340] sm:$0xff]
                  %507 = vst [vmem:[%s401 + $0x1a0] sm:$0xff] %v506
                  %v508 = vld [vmem:[%s400 + $0x350] sm:$0xff]
                  %509 = vst [vmem:[%s401 + $0x1a8] sm:$0xff] %v508
                  %v510 = vld [vmem:[%s400 + $0x360] sm:$0xff]
                  %511 = vst [vmem:[%s401 + $0x1b0] sm:$0xff] %v510
                  %v512 = vld [vmem:[%s400 + $0x370] sm:$0xff]
                  %513 = vst [vmem:[%s401 + $0x1b8] sm:$0xff] %v512
                  %v514 = vld [vmem:[%s400 + $0x380] sm:$0xff]
                  %515 = vst [vmem:[%s401 + $0x1c0] sm:$0xff] %v514
                  %v516 = vld [vmem:[%s400 + $0x390] sm:$0xff]
                  %517 = vst [vmem:[%s401 + $0x1c8] sm:$0xff] %v516
                  %v518 = vld [vmem:[%s400 + $0x3a0] sm:$0xff]
                  %519 = vst [vmem:[%s401 + $0x1d0] sm:$0xff] %v518
                  %v520 = vld [vmem:[%s400 + $0x3b0] sm:$0xff]
                  %521 = vst [vmem:[%s401 + $0x1d8] sm:$0xff] %v520
                  %v522 = vld [vmem:[%s400 + $0x3c0] sm:$0xff]
                  %523 = vst [vmem:[%s401 + $0x1e0] sm:$0xff] %v522
                  %v524 = vld [vmem:[%s400 + $0x3d0] sm:$0xff]
                  %525 = vst [vmem:[%s401 + $0x1e8] sm:$0xff] %v524
                  %v526 = vld [vmem:[%s400 + $0x3e0] sm:$0xff]
                  %527 = vst [vmem:[%s401 + $0x1f0] sm:$0xff] %v526
                  %v528 = vld [vmem:[%s400 + $0x3f0] sm:$0xff]
                  %529 = vst [vmem:[%s401 + $0x1f8] sm:$0xff] %v528
                  %v530 = vld [vmem:[%s400 + $0x400] sm:$0xff]
                  %531 = vst [vmem:[%s401 + $0x200] sm:$0xff] %v530
                  %v532 = vld [vmem:[%s400 + $0x410] sm:$0xff]
                  %533 = vst [vmem:[%s401 + $0x208] sm:$0xff] %v532
                  %v534 = vld [vmem:[%s400 + $0x420] sm:$0xff]
                  %535 = vst [vmem:[%s401 + $0x210] sm:$0xff] %v534
                  %v536 = vld [vmem:[%s400 + $0x430] sm:$0xff]
                  %537 = vst [vmem:[%s401 + $0x218] sm:$0xff] %v536
                  %v538 = vld [vmem:[%s400 + $0x440] sm:$0xff]
                  %539 = vst [vmem:[%s401 + $0x220] sm:$0xff] %v538
                  %v540 = vld [vmem:[%s400 + $0x450] sm:$0xff]
                  %541 = vst [vmem:[%s401 + $0x228] sm:$0xff] %v540
                  %v542 = vld [vmem:[%s400 + $0x460] sm:$0xff]
                  %543 = vst [vmem:[%s401 + $0x230] sm:$0xff] %v542
                  %v544 = vld [vmem:[%s400 + $0x470] sm:$0xff]
                  %545 = vst [vmem:[%s401 + $0x238] sm:$0xff] %v544
                  %v546 = vld [vmem:[%s400 + $0x480] sm:$0xff]
                  %547 = vst [vmem:[%s401 + $0x240] sm:$0xff] %v546
                  %v548 = vld [vmem:[%s400 + $0x490] sm:$0xff]
                  %549 = vst [vmem:[%s401 + $0x248] sm:$0xff] %v548
                  %v550 = vld [vmem:[%s400 + $0x4a0] sm:$0xff]
                  %551 = vst [vmem:[%s401 + $0x250] sm:$0xff] %v550
                  %v552 = vld [vmem:[%s400 + $0x4b0] sm:$0xff]
                  %553 = vst [vmem:[%s401 + $0x258] sm:$0xff] %v552
                  %v554 = vld [vmem:[%s400 + $0x4c0] sm:$0xff]
                  %555 = vst [vmem:[%s401 + $0x260] sm:$0xff] %v554
                  %v556 = vld [vmem:[%s400 + $0x4d0] sm:$0xff]
                  %557 = vst [vmem:[%s401 + $0x268] sm:$0xff] %v556
                  %v558 = vld [vmem:[%s400 + $0x4e0] sm:$0xff]
                  %559 = vst [vmem:[%s401 + $0x270] sm:$0xff] %v558
                  %v560 = vld [vmem:[%s400 + $0x4f0] sm:$0xff]
                  %561 = vst [vmem:[%s401 + $0x278] sm:$0xff] %v560
                  %v562 = vld [vmem:[%s400 + $0x500] sm:$0xff]
                  %563 = vst [vmem:[%s401 + $0x280] sm:$0xff] %v562
                  %v564 = vld [vmem:[%s400 + $0x510] sm:$0xff]
                  %565 = vst [vmem:[%s401 + $0x288] sm:$0xff] %v564
                  %v566 = vld [vmem:[%s400 + $0x520] sm:$0xff]
                  %567 = vst [vmem:[%s401 + $0x290] sm:$0xff] %v566
                  %v568 = vld [vmem:[%s400 + $0x530] sm:$0xff]
                  %569 = vst [vmem:[%s401 + $0x298] sm:$0xff] %v568
                $region60: #{fused_block.1} parent=54 // loop_footer
                  %s399 = sadd.s32 1, %s395
                $region61: #{fused_block.1} parent=54 // loop_footer_branch
                  %394 = sbr.rel target = $region57
                $region62: #{fused_block.1} parent=54 // loop_exit
                  _
              $region55: #{fused_block.1} parent=39 // pred_fallthru
                _
              // Predicated region
              $region63: #{fused_block.1} parent=39 // pred_check
                _
              $region64: #{fused_block.1} parent=39 // pred_check_branch
                %571 = sbr.rel target = $region66
              $region65: #{fused_block.1} parent=39 // pred_region
                _
              $region66: #{fused_block.1} parent=39 // pred_fallthru
                _
            $region40: #{fused_block.1} parent=35 // pred_fallthru
              _
            // Predicated region
            $region41: #{fused_block.1} parent=35 // pred_check
              _
            $region42: #{fused_block.1} parent=35 // pred_check_branch
              %214 = sbr.rel target = $region44
            $region43: #{fused_block.1} parent=35 // pred_region
              loop: start=0, step=1, limit=1
              $region45: #{fused_block.1} parent=43 // loop_pre_header
                _
              $region46: #{fused_block.1} parent=43 // loop_header
                %s217 = sphi 0, %s221
                %p218 = scmp.ge.s32.totalorder %s217, 1
                %s222 = sphi %s208, %s208
                %s223 = sphi %s204, %s204
              $region47: #{fused_block.1} parent=43 // loop_header_branch
                %220 = sbr.rel (%p218) target = $region51
              $region48: #{fused_block.1} parent=43 // loop_body
                %v224 = vld [vmem:[%s222] sm:$0xff]
                %225 = vst [vmem:[%s223] sm:$0xff] %v224
                %v226 = vld [vmem:[%s222 + $0x10] sm:$0xff]
                %227 = vst [vmem:[%s223 + $0x8] sm:$0xff] %v226
                %v228 = vld [vmem:[%s222 + $0x20] sm:$0xff]
                %229 = vst [vmem:[%s223 + $0x10] sm:$0xff] %v228
                %v230 = vld [vmem:[%s222 + $0x30] sm:$0xff]
                %231 = vst [vmem:[%s223 + $0x18] sm:$0xff] %v230
                %v232 = vld [vmem:[%s222 + $0x40] sm:$0xff]
                %233 = vst [vmem:[%s223 + $0x20] sm:$0xff] %v232
                %v234 = vld [vmem:[%s222 + $0x50] sm:$0xff]
                %235 = vst [vmem:[%s223 + $0x28] sm:$0xff] %v234
                %v236 = vld [vmem:[%s222 + $0x60] sm:$0xff]
                %237 = vst [vmem:[%s223 + $0x30] sm:$0xff] %v236
                %v238 = vld [vmem:[%s222 + $0x70] sm:$0xff]
                %239 = vst [vmem:[%s223 + $0x38] sm:$0xff] %v238
                %v240 = vld [vmem:[%s222 + $0x80] sm:$0xff]
                %241 = vst [vmem:[%s223 + $0x40] sm:$0xff] %v240
                %v242 = vld [vmem:[%s222 + $0x90] sm:$0xff]
                %243 = vst [vmem:[%s223 + $0x48] sm:$0xff] %v242
                %v244 = vld [vmem:[%s222 + $0xa0] sm:$0xff]
                %245 = vst [vmem:[%s223 + $0x50] sm:$0xff] %v244
                %v246 = vld [vmem:[%s222 + $0xb0] sm:$0xff]
                %247 = vst [vmem:[%s223 + $0x58] sm:$0xff] %v246
                %v248 = vld [vmem:[%s222 + $0xc0] sm:$0xff]
                %249 = vst [vmem:[%s223 + $0x60] sm:$0xff] %v248
                %v250 = vld [vmem:[%s222 + $0xd0] sm:$0xff]
                %251 = vst [vmem:[%s223 + $0x68] sm:$0xff] %v250
                %v252 = vld [vmem:[%s222 + $0xe0] sm:$0xff]
                %253 = vst [vmem:[%s223 + $0x70] sm:$0xff] %v252
                %v254 = vld [vmem:[%s222 + $0xf0] sm:$0xff]
                %255 = vst [vmem:[%s223 + $0x78] sm:$0xff] %v254
                %v256 = vld [vmem:[%s222 + $0x100] sm:$0xff]
                %257 = vst [vmem:[%s223 + $0x80] sm:$0xff] %v256
                %v258 = vld [vmem:[%s222 + $0x110] sm:$0xff]
                %259 = vst [vmem:[%s223 + $0x88] sm:$0xff] %v258
                %v260 = vld [vmem:[%s222 + $0x120] sm:$0xff]
                %261 = vst [vmem:[%s223 + $0x90] sm:$0xff] %v260
                %v262 = vld [vmem:[%s222 + $0x130] sm:$0xff]
                %263 = vst [vmem:[%s223 + $0x98] sm:$0xff] %v262
                %v264 = vld [vmem:[%s222 + $0x140] sm:$0xff]
                %265 = vst [vmem:[%s223 + $0xa0] sm:$0xff] %v264
                %v266 = vld [vmem:[%s222 + $0x150] sm:$0xff]
                %267 = vst [vmem:[%s223 + $0xa8] sm:$0xff] %v266
                %v268 = vld [vmem:[%s222 + $0x160] sm:$0xff]
                %269 = vst [vmem:[%s223 + $0xb0] sm:$0xff] %v268
                %v270 = vld [vmem:[%s222 + $0x170] sm:$0xff]
                %271 = vst [vmem:[%s223 + $0xb8] sm:$0xff] %v270
                %v272 = vld [vmem:[%s222 + $0x180] sm:$0xff]
                %273 = vst [vmem:[%s223 + $0xc0] sm:$0xff] %v272
                %v274 = vld [vmem:[%s222 + $0x190] sm:$0xff]
                %275 = vst [vmem:[%s223 + $0xc8] sm:$0xff] %v274
                %v276 = vld [vmem:[%s222 + $0x1a0] sm:$0xff]
                %277 = vst [vmem:[%s223 + $0xd0] sm:$0xff] %v276
                %v278 = vld [vmem:[%s222 + $0x1b0] sm:$0xff]
                %279 = vst [vmem:[%s223 + $0xd8] sm:$0xff] %v278
                %v280 = vld [vmem:[%s222 + $0x1c0] sm:$0xff]
                %281 = vst [vmem:[%s223 + $0xe0] sm:$0xff] %v280
                %v282 = vld [vmem:[%s222 + $0x1d0] sm:$0xff]
                %283 = vst [vmem:[%s223 + $0xe8] sm:$0xff] %v282
                %v284 = vld [vmem:[%s222 + $0x1e0] sm:$0xff]
                %285 = vst [vmem:[%s223 + $0xf0] sm:$0xff] %v284
                %v286 = vld [vmem:[%s222 + $0x1f0] sm:$0xff]
                %287 = vst [vmem:[%s223 + $0xf8] sm:$0xff] %v286
                %v288 = vld [vmem:[%s222 + $0x200] sm:$0xff]
                %289 = vst [vmem:[%s223 + $0x100] sm:$0xff] %v288
                %v290 = vld [vmem:[%s222 + $0x210] sm:$0xff]
                %291 = vst [vmem:[%s223 + $0x108] sm:$0xff] %v290
                %v292 = vld [vmem:[%s222 + $0x220] sm:$0xff]
                %293 = vst [vmem:[%s223 + $0x110] sm:$0xff] %v292
                %v294 = vld [vmem:[%s222 + $0x230] sm:$0xff]
                %295 = vst [vmem:[%s223 + $0x118] sm:$0xff] %v294
                %v296 = vld [vmem:[%s222 + $0x240] sm:$0xff]
                %297 = vst [vmem:[%s223 + $0x120] sm:$0xff] %v296
                %v298 = vld [vmem:[%s222 + $0x250] sm:$0xff]
                %299 = vst [vmem:[%s223 + $0x128] sm:$0xff] %v298
                %v300 = vld [vmem:[%s222 + $0x260] sm:$0xff]
                %301 = vst [vmem:[%s223 + $0x130] sm:$0xff] %v300
                %v302 = vld [vmem:[%s222 + $0x270] sm:$0xff]
                %303 = vst [vmem:[%s223 + $0x138] sm:$0xff] %v302
                %v304 = vld [vmem:[%s222 + $0x280] sm:$0xff]
                %305 = vst [vmem:[%s223 + $0x140] sm:$0xff] %v304
                %v306 = vld [vmem:[%s222 + $0x290] sm:$0xff]
                %307 = vst [vmem:[%s223 + $0x148] sm:$0xff] %v306
                %v308 = vld [vmem:[%s222 + $0x2a0] sm:$0xff]
                %309 = vst [vmem:[%s223 + $0x150] sm:$0xff] %v308
                %v310 = vld [vmem:[%s222 + $0x2b0] sm:$0xff]
                %311 = vst [vmem:[%s223 + $0x158] sm:$0xff] %v310
                %v312 = vld [vmem:[%s222 + $0x2c0] sm:$0xff]
                %313 = vst [vmem:[%s223 + $0x160] sm:$0xff] %v312
                %v314 = vld [vmem:[%s222 + $0x2d0] sm:$0xff]
                %315 = vst [vmem:[%s223 + $0x168] sm:$0xff] %v314
                %v316 = vld [vmem:[%s222 + $0x2e0] sm:$0xff]
                %317 = vst [vmem:[%s223 + $0x170] sm:$0xff] %v316
                %v318 = vld [vmem:[%s222 + $0x2f0] sm:$0xff]
                %319 = vst [vmem:[%s223 + $0x178] sm:$0xff] %v318
                %v320 = vld [vmem:[%s222 + $0x300] sm:$0xff]
                %321 = vst [vmem:[%s223 + $0x180] sm:$0xff] %v320
                %v322 = vld [vmem:[%s222 + $0x310] sm:$0xff]
                %323 = vst [vmem:[%s223 + $0x188] sm:$0xff] %v322
                %v324 = vld [vmem:[%s222 + $0x320] sm:$0xff]
                %325 = vst [vmem:[%s223 + $0x190] sm:$0xff] %v324
                %v326 = vld [vmem:[%s222 + $0x330] sm:$0xff]
                %327 = vst [vmem:[%s223 + $0x198] sm:$0xff] %v326
                %v328 = vld [vmem:[%s222 + $0x340] sm:$0xff]
                %329 = vst [vmem:[%s223 + $0x1a0] sm:$0xff] %v328
                %v330 = vld [vmem:[%s222 + $0x350] sm:$0xff]
                %331 = vst [vmem:[%s223 + $0x1a8] sm:$0xff] %v330
                %v332 = vld [vmem:[%s222 + $0x360] sm:$0xff]
                %333 = vst [vmem:[%s223 + $0x1b0] sm:$0xff] %v332
                %v334 = vld [vmem:[%s222 + $0x370] sm:$0xff]
                %335 = vst [vmem:[%s223 + $0x1b8] sm:$0xff] %v334
                %v336 = vld [vmem:[%s222 + $0x380] sm:$0xff]
                %337 = vst [vmem:[%s223 + $0x1c0] sm:$0xff] %v336
                %v338 = vld [vmem:[%s222 + $0x390] sm:$0xff]
                %339 = vst [vmem:[%s223 + $0x1c8] sm:$0xff] %v338
                %v340 = vld [vmem:[%s222 + $0x3a0] sm:$0xff]
                %341 = vst [vmem:[%s223 + $0x1d0] sm:$0xff] %v340
                %v342 = vld [vmem:[%s222 + $0x3b0] sm:$0xff]
                %343 = vst [vmem:[%s223 + $0x1d8] sm:$0xff] %v342
                %v344 = vld [vmem:[%s222 + $0x3c0] sm:$0xff]
                %345 = vst [vmem:[%s223 + $0x1e0] sm:$0xff] %v344
                %v346 = vld [vmem:[%s222 + $0x3d0] sm:$0xff]
                %347 = vst [vmem:[%s223 + $0x1e8] sm:$0xff] %v346
                %v348 = vld [vmem:[%s222 + $0x3e0] sm:$0xff]
                %349 = vst [vmem:[%s223 + $0x1f0] sm:$0xff] %v348
                %v350 = vld [vmem:[%s222 + $0x3f0] sm:$0xff]
                %351 = vst [vmem:[%s223 + $0x1f8] sm:$0xff] %v350
                %v352 = vld [vmem:[%s222 + $0x400] sm:$0xff]
                %353 = vst [vmem:[%s223 + $0x200] sm:$0xff] %v352
                %v354 = vld [vmem:[%s222 + $0x410] sm:$0xff]
                %355 = vst [vmem:[%s223 + $0x208] sm:$0xff] %v354
                %v356 = vld [vmem:[%s222 + $0x420] sm:$0xff]
                %357 = vst [vmem:[%s223 + $0x210] sm:$0xff] %v356
                %v358 = vld [vmem:[%s222 + $0x430] sm:$0xff]
                %359 = vst [vmem:[%s223 + $0x218] sm:$0xff] %v358
                %v360 = vld [vmem:[%s222 + $0x440] sm:$0xff]
                %361 = vst [vmem:[%s223 + $0x220] sm:$0xff] %v360
                %v362 = vld [vmem:[%s222 + $0x450] sm:$0xff]
                %363 = vst [vmem:[%s223 + $0x228] sm:$0xff] %v362
                %v364 = vld [vmem:[%s222 + $0x460] sm:$0xff]
                %365 = vst [vmem:[%s223 + $0x230] sm:$0xff] %v364
                %v366 = vld [vmem:[%s222 + $0x470] sm:$0xff]
                %367 = vst [vmem:[%s223 + $0x238] sm:$0xff] %v366
                %v368 = vld [vmem:[%s222 + $0x480] sm:$0xff]
                %369 = vst [vmem:[%s223 + $0x240] sm:$0xff] %v368
                %v370 = vld [vmem:[%s222 + $0x490] sm:$0xff]
                %371 = vst [vmem:[%s223 + $0x248] sm:$0xff] %v370
                %v372 = vld [vmem:[%s222 + $0x4a0] sm:$0xff]
                %373 = vst [vmem:[%s223 + $0x250] sm:$0xff] %v372
                %v374 = vld [vmem:[%s222 + $0x4b0] sm:$0xff]
                %375 = vst [vmem:[%s223 + $0x258] sm:$0xff] %v374
                %v376 = vld [vmem:[%s222 + $0x4c0] sm:$0xff]
                %377 = vst [vmem:[%s223 + $0x260] sm:$0xff] %v376
                %v378 = vld [vmem:[%s222 + $0x4d0] sm:$0xff]
                %379 = vst [vmem:[%s223 + $0x268] sm:$0xff] %v378
                %v380 = vld [vmem:[%s222 + $0x4e0] sm:$0xff]
                %381 = vst [vmem:[%s223 + $0x270] sm:$0xff] %v380
                %v382 = vld [vmem:[%s222 + $0x4f0] sm:$0xff]
                %383 = vst [vmem:[%s223 + $0x278] sm:$0xff] %v382
                %v384 = vld [vmem:[%s222 + $0x500] sm:$0xff]
                %385 = vst [vmem:[%s223 + $0x280] sm:$0xff] %v384
                %v386 = vld [vmem:[%s222 + $0x510] sm:$0xff]
                %387 = vst [vmem:[%s223 + $0x288] sm:$0xff] %v386
                %v388 = vld [vmem:[%s222 + $0x520] sm:$0xff]
                %389 = vst [vmem:[%s223 + $0x290] sm:$0xff] %v388
                %v390 = vld [vmem:[%s222 + $0x530] sm:$0xff]
                %391 = vst [vmem:[%s223 + $0x298] sm:$0xff] %v390
              $region49: #{fused_block.1} parent=43 // loop_footer
                %s221 = sadd.s32 1, %s217
              $region50: #{fused_block.1} parent=43 // loop_footer_branch
                %216 = sbr.rel target = $region46
              $region51: #{fused_block.1} parent=43 // loop_exit
                _
            $region44: #{fused_block.1} parent=35 // pred_fallthru
              _
          $region36: #{fused_block.1} parent=31 // pred_fallthru
            _
          %572 = vnop
        $region32: #{fused_block.1} parent=27 // pred_fallthru
          _
        // Predicated region
        $region67: #{fused_block.1} parent=27 // pred_check
          %p573 = pneg %p73
        $region68: #{fused_block.1} parent=27 // pred_check_branch
          %575 = sbr.rel (%p573) target = $region70
        $region69: #{fused_block.1} parent=27 // pred_region
          %s576 = sand.u32 %s63, 1
          %s577 = sand.u32 %s63, 1
          %s578 = smul.addr %s577, 112
          %s579 = scalar_lea.vmem [#allocation3], %s578
          %s580 = smul.addr %s18, 28
          %s581 = sadd.s32 %s19, %s580
          %s582 = smul.addr %s581, 8
          %s583 = scalar_lea.vmem %s1, %s582
          // Predicated region
          $region71: #{fused_block.1} parent=69 // pred_check
            _
          $region72: #{fused_block.1} parent=69 // pred_check_branch
            %585 = sbr.rel (0) target = $region74
          $region73: #{fused_block.1} parent=69 // pred_region
            // Predicated region
            $region75: #{fused_block.1} parent=73 // pred_check
              _
            $region76: #{fused_block.1} parent=73 // pred_check_branch
              %587 = sbr.rel (0) target = $region78
            $region77: #{fused_block.1} parent=73 // pred_region
              // Predicated region
              $region90: #{fused_block.1} parent=77 // pred_check
                _
              $region91: #{fused_block.1} parent=77 // pred_check_branch
                %628 = sbr.rel (0) target = $region93
              $region92: #{fused_block.1} parent=77 // pred_region
                loop: start=0, step=1, limit=1
                $region94: #{fused_block.1} parent=92 // loop_pre_header
                  _
                $region95: #{fused_block.1} parent=92 // loop_header
                  %s630 = sphi 0, %s634
                  %p631 = scmp.ge.s32.totalorder %s630, 1
                  %s635 = sphi %s583, %s583
                  %s636 = sphi %s579, %s579
                $region96: #{fused_block.1} parent=92 // loop_header_branch
                  %633 = sbr.rel (%p631) target = $region100
                $region97: #{fused_block.1} parent=92 // loop_body
                  %v637 = vld [vmem:[%s635] sm:$0xff]
                  %638 = vst [vmem:[%s636] sm:$0xff] %v637
                  %v639 = vld [vmem:[%s635 + $0x10] sm:$0xff]
                  %640 = vst [vmem:[%s636 + $0x8] sm:$0xff] %v639
                  %v641 = vld [vmem:[%s635 + $0x20] sm:$0xff]
                  %642 = vst [vmem:[%s636 + $0x10] sm:$0xff] %v641
                  %v643 = vld [vmem:[%s635 + $0x30] sm:$0xff]
                  %644 = vst [vmem:[%s636 + $0x18] sm:$0xff] %v643
                  %v645 = vld [vmem:[%s635 + $0x40] sm:$0xff]
                  %646 = vst [vmem:[%s636 + $0x20] sm:$0xff] %v645
                  %v647 = vld [vmem:[%s635 + $0x50] sm:$0xff]
                  %648 = vst [vmem:[%s636 + $0x28] sm:$0xff] %v647
                  %v649 = vld [vmem:[%s635 + $0x60] sm:$0xff]
                  %650 = vst [vmem:[%s636 + $0x30] sm:$0xff] %v649
                  %v651 = vld [vmem:[%s635 + $0x70] sm:$0xff]
                  %652 = vst [vmem:[%s636 + $0x38] sm:$0xff] %v651
                  %v653 = vld [vmem:[%s635 + $0x80] sm:$0xff]
                  %654 = vst [vmem:[%s636 + $0x40] sm:$0xff] %v653
                  %v655 = vld [vmem:[%s635 + $0x90] sm:$0xff]
                  %656 = vst [vmem:[%s636 + $0x48] sm:$0xff] %v655
                  %v657 = vld [vmem:[%s635 + $0xa0] sm:$0xff]
                  %658 = vst [vmem:[%s636 + $0x50] sm:$0xff] %v657
                  %v659 = vld [vmem:[%s635 + $0xb0] sm:$0xff]
                  %660 = vst [vmem:[%s636 + $0x58] sm:$0xff] %v659
                  %v661 = vld [vmem:[%s635 + $0xc0] sm:$0xff]
                  %662 = vst [vmem:[%s636 + $0x60] sm:$0xff] %v661
                  %v663 = vld [vmem:[%s635 + $0xd0] sm:$0xff]
                  %664 = vst [vmem:[%s636 + $0x68] sm:$0xff] %v663
                $region98: #{fused_block.1} parent=92 // loop_footer
                  %s634 = sadd.s32 1, %s630
                $region99: #{fused_block.1} parent=92 // loop_footer_branch
                  %629 = sbr.rel target = $region95
                $region100: #{fused_block.1} parent=92 // loop_exit
                  _
              $region93: #{fused_block.1} parent=77 // pred_fallthru
                _
              // Predicated region
              $region101: #{fused_block.1} parent=77 // pred_check
                _
              $region102: #{fused_block.1} parent=77 // pred_check_branch
                %666 = sbr.rel target = $region104
              $region103: #{fused_block.1} parent=77 // pred_region
                _
              $region104: #{fused_block.1} parent=77 // pred_fallthru
                _
            $region78: #{fused_block.1} parent=73 // pred_fallthru
              _
            // Predicated region
            $region79: #{fused_block.1} parent=73 // pred_check
              _
            $region80: #{fused_block.1} parent=73 // pred_check_branch
              %589 = sbr.rel target = $region82
            $region81: #{fused_block.1} parent=73 // pred_region
              loop: start=0, step=1, limit=1
              $region83: #{fused_block.1} parent=81 // loop_pre_header
                _
              $region84: #{fused_block.1} parent=81 // loop_header
                %s592 = sphi 0, %s596
                %p593 = scmp.ge.s32.totalorder %s592, 1
                %s597 = sphi %s583, %s583
                %s598 = sphi %s579, %s579
              $region85: #{fused_block.1} parent=81 // loop_header_branch
                %595 = sbr.rel (%p593) target = $region89
              $region86: #{fused_block.1} parent=81 // loop_body
                %v599 = vld [vmem:[%s597] sm:$0xff]
                %600 = vst [vmem:[%s598] sm:$0xff] %v599
                %v601 = vld [vmem:[%s597 + $0x10] sm:$0xff]
                %602 = vst [vmem:[%s598 + $0x8] sm:$0xff] %v601
                %v603 = vld [vmem:[%s597 + $0x20] sm:$0xff]
                %604 = vst [vmem:[%s598 + $0x10] sm:$0xff] %v603
                %v605 = vld [vmem:[%s597 + $0x30] sm:$0xff]
                %606 = vst [vmem:[%s598 + $0x18] sm:$0xff] %v605
                %v607 = vld [vmem:[%s597 + $0x40] sm:$0xff]
                %608 = vst [vmem:[%s598 + $0x20] sm:$0xff] %v607
                %v609 = vld [vmem:[%s597 + $0x50] sm:$0xff]
                %610 = vst [vmem:[%s598 + $0x28] sm:$0xff] %v609
                %v611 = vld [vmem:[%s597 + $0x60] sm:$0xff]
                %612 = vst [vmem:[%s598 + $0x30] sm:$0xff] %v611
                %v613 = vld [vmem:[%s597 + $0x70] sm:$0xff]
                %614 = vst [vmem:[%s598 + $0x38] sm:$0xff] %v613
                %v615 = vld [vmem:[%s597 + $0x80] sm:$0xff]
                %616 = vst [vmem:[%s598 + $0x40] sm:$0xff] %v615
                %v617 = vld [vmem:[%s597 + $0x90] sm:$0xff]
                %618 = vst [vmem:[%s598 + $0x48] sm:$0xff] %v617
                %v619 = vld [vmem:[%s597 + $0xa0] sm:$0xff]
                %620 = vst [vmem:[%s598 + $0x50] sm:$0xff] %v619
                %v621 = vld [vmem:[%s597 + $0xb0] sm:$0xff]
                %622 = vst [vmem:[%s598 + $0x58] sm:$0xff] %v621
                %v623 = vld [vmem:[%s597 + $0xc0] sm:$0xff]
                %624 = vst [vmem:[%s598 + $0x60] sm:$0xff] %v623
                %v625 = vld [vmem:[%s597 + $0xd0] sm:$0xff]
                %626 = vst [vmem:[%s598 + $0x68] sm:$0xff] %v625
              $region87: #{fused_block.1} parent=81 // loop_footer
                %s596 = sadd.s32 1, %s592
              $region88: #{fused_block.1} parent=81 // loop_footer_branch
                %591 = sbr.rel target = $region84
              $region89: #{fused_block.1} parent=81 // loop_exit
                _
            $region82: #{fused_block.1} parent=73 // pred_fallthru
              _
          $region74: #{fused_block.1} parent=69 // pred_fallthru
            _
          %667 = vnop
        $region70: #{fused_block.1} parent=27 // pred_fallthru
          _
      $region28: #{fused_block.1} parent=5 // pred_fallthru
        _
      %p668 = scmp.le.s32.totalorder 1, %s11
      %p669 = scmp.lt.s32.totalorder %s11, 3
      %p670 = pnand %p668, %p669
      %p671 = pneg %p670
      // Predicated region
      $region105: #{fused_block.1} parent=5 // pred_check
        _
      $region106: #{fused_block.1} parent=5 // pred_check_branch
        %673 = sbr.rel (%p670) target = $region108
      $region107: #{fused_block.1} parent=5 // pred_region
        %s674 = ssub.s32 %s11, 1
        %s675 = sand.u32 %s38, 1
        %s676 = sand.u32 %s38, 1
        %s677 = smul.addr %s676, 672
        %s678 = scalar_lea.vmem [#allocation2], %s677
        // Predicated region
        $region109: #{fused_block.1} parent=107 // pred_check
          %p679 = pneg %p51
        $region110: #{fused_block.1} parent=107 // pred_check_branch
          %681 = sbr.rel (%p679) target = $region112
        $region111: #{fused_block.1} parent=107 // pred_region
          _
        $region112: #{fused_block.1} parent=107 // pred_fallthru
          _
        %s682 = sand.u32 %s66, 1
        %s683 = sand.u32 %s66, 1
        %s684 = smul.addr %s683, 112
        %s685 = scalar_lea.vmem [#allocation3], %s684
        // Predicated region
        $region113: #{fused_block.1} parent=107 // pred_check
          %p686 = pneg %p79
        $region114: #{fused_block.1} parent=107 // pred_check_branch
          %688 = sbr.rel (%p686) target = $region116
        $region115: #{fused_block.1} parent=107 // pred_region
          _
        $region116: #{fused_block.1} parent=107 // pred_fallthru
          _
        %s689 = sand.u32 %s38, 1
        %s690 = sand.u32 %s38, 1
        %s691 = smul.addr %s690, 672
        %s692 = scalar_lea.vmem [#allocation2], %s691
        %p693 = pneg %p51
        %p694 = pneg %p48
        %s695 = sand.u32 %s66, 1
        %s696 = sand.u32 %s66, 1
        %s697 = smul.addr %s696, 112
        %s698 = scalar_lea.vmem [#allocation3], %s697
        %p699 = pneg %p79
        %p700 = pneg %p76
        %p701 = pneg %p100
        %p702 = pneg %p97
        %p703 = pneg %p121
        %p704 = pneg %p118
        %p705 = pneg %p142
        %p706 = pneg %p139
        %p707 = pneg %p170
        %p708 = pneg %p167
        %s709 = sand.u32 %s157, 1
        %s710 = sand.u32 %s157, 1
        %s711 = smul.addr %s710, 672
        %s712 = scalar_lea.vmem [#allocation4], %s711
        %v713 = vld [vmem:[%s2] sm:$0xff]
        %v714 = vld [vmem:[%s2 + $0x8] sm:$0xff]
        %v715 = vld [vmem:[%s2 + $0x10] sm:$0xff]
        %v716 = vld [vmem:[%s2 + $0x18] sm:$0xff]
        %v717 = vld [vmem:[%s2 + $0x20] sm:$0xff]
        %v718 = vld [vmem:[%s2 + $0x28] sm:$0xff]
        %v719 = vld [vmem:[%s2 + $0x30] sm:$0xff]
        %v720 = vld [vmem:[%s2 + $0x38] sm:$0xff]
        %v721 = vld [vmem:[%s2 + $0x40] sm:$0xff]
        %v722 = vld [vmem:[%s2 + $0x48] sm:$0xff]
        %v723 = vld [vmem:[%s2 + $0x50] sm:$0xff]
        %v724 = vld [vmem:[%s2 + $0x58] sm:$0xff]
        %v725 = vld [vmem:[%s2 + $0x60] sm:$0xff]
        %v726 = vld [vmem:[%s2 + $0x68] sm:$0xff]
        %v727 = vld [vmem:[%s2 + $0x70] sm:$0xff]
        %v728 = vld [vmem:[%s2 + $0x78] sm:$0xff]
        %v729 = vld [vmem:[%s2 + $0x80] sm:$0xff]
        %v730 = vld [vmem:[%s2 + $0x88] sm:$0xff]
        %v731 = vld [vmem:[%s2 + $0x90] sm:$0xff]
        %v732 = vld [vmem:[%s2 + $0x98] sm:$0xff]
        %v733 = vld [vmem:[%s2 + $0xa0] sm:$0xff]
        %v734 = vld [vmem:[%s2 + $0xa8] sm:$0xff]
        %v735 = vld [vmem:[%s2 + $0xb0] sm:$0xff]
        %v736 = vld [vmem:[%s2 + $0xb8] sm:$0xff]
        %v737 = vld [vmem:[%s2 + $0xc0] sm:$0xff]
        %v738 = vld [vmem:[%s2 + $0xc8] sm:$0xff]
        %v739 = vld [vmem:[%s2 + $0xd0] sm:$0xff]
        %v740 = vld [vmem:[%s2 + $0xd8] sm:$0xff]
        %v741 = vld [vmem:[%s2 + $0xe0] sm:$0xff]
        %v742 = vld [vmem:[%s2 + $0xe8] sm:$0xff]
        %v743 = vld [vmem:[%s2 + $0xf0] sm:$0xff]
        %v744 = vld [vmem:[%s2 + $0xf8] sm:$0xff]
        %v745 = vld [vmem:[%s2 + $0x100] sm:$0xff]
        %v746 = vld [vmem:[%s2 + $0x108] sm:$0xff]
        %v747 = vld [vmem:[%s2 + $0x110] sm:$0xff]
        %v748 = vld [vmem:[%s2 + $0x118] sm:$0xff]
        %v749 = vld [vmem:[%s2 + $0x120] sm:$0xff]
        %v750 = vld [vmem:[%s2 + $0x128] sm:$0xff]
        %v751 = vld [vmem:[%s2 + $0x130] sm:$0xff]
        %v752 = vld [vmem:[%s2 + $0x138] sm:$0xff]
        %v753 = vld [vmem:[%s2 + $0x140] sm:$0xff]
        %v754 = vld [vmem:[%s2 + $0x148] sm:$0xff]
        %v755 = vld [vmem:[%s2 + $0x150] sm:$0xff]
        %v756 = vld [vmem:[%s2 + $0x158] sm:$0xff]
        %v757 = vld [vmem:[%s2 + $0x160] sm:$0xff]
        %v758 = vld [vmem:[%s2 + $0x168] sm:$0xff]
        %v759 = vld [vmem:[%s2 + $0x170] sm:$0xff]
        %v760 = vld [vmem:[%s2 + $0x178] sm:$0xff]
        %v761 = vld [vmem:[%s2 + $0x180] sm:$0xff]
        %v762 = vld [vmem:[%s2 + $0x188] sm:$0xff]
        %v763 = vld [vmem:[%s2 + $0x190] sm:$0xff]
        %v764 = vld [vmem:[%s2 + $0x198] sm:$0xff]
        %v765 = vld [vmem:[%s2 + $0x1a0] sm:$0xff]
        %v766 = vld [vmem:[%s2 + $0x1a8] sm:$0xff]
        %v767 = vld [vmem:[%s2 + $0x1b0] sm:$0xff]
        %v768 = vld [vmem:[%s2 + $0x1b8] sm:$0xff]
        %v769 = vld [vmem:[%s2 + $0x1c0] sm:$0xff]
        %v770 = vld [vmem:[%s2 + $0x1c8] sm:$0xff]
        %v771 = vld [vmem:[%s2 + $0x1d0] sm:$0xff]
        %v772 = vld [vmem:[%s2 + $0x1d8] sm:$0xff]
        %v773 = vld [vmem:[%s2 + $0x1e0] sm:$0xff]
        %v774 = vld [vmem:[%s2 + $0x1e8] sm:$0xff]
        %v775 = vld [vmem:[%s2 + $0x1f0] sm:$0xff]
        %v776 = vld [vmem:[%s2 + $0x1f8] sm:$0xff]
        %v777 = vld [vmem:[%s2 + $0x200] sm:$0xff]
        %v778 = vld [vmem:[%s2 + $0x208] sm:$0xff]
        %v779 = vld [vmem:[%s2 + $0x210] sm:$0xff]
        %v780 = vld [vmem:[%s2 + $0x218] sm:$0xff]
        %v781 = vld [vmem:[%s2 + $0x220] sm:$0xff]
        %v782 = vld [vmem:[%s2 + $0x228] sm:$0xff]
        %v783 = vld [vmem:[%s2 + $0x230] sm:$0xff]
        %v784 = vld [vmem:[%s2 + $0x238] sm:$0xff]
        %v785 = vld [vmem:[%s2 + $0x240] sm:$0xff]
        %v786 = vld [vmem:[%s2 + $0x248] sm:$0xff]
        %v787 = vld [vmem:[%s2 + $0x250] sm:$0xff]
        %v788 = vld [vmem:[%s2 + $0x258] sm:$0xff]
        %v789 = vld [vmem:[%s2 + $0x260] sm:$0xff]
        %v790 = vld [vmem:[%s2 + $0x268] sm:$0xff]
        %v791 = vld [vmem:[%s2 + $0x270] sm:$0xff]
        %v792 = vld [vmem:[%s2 + $0x278] sm:$0xff]
        %v793 = vld [vmem:[%s2 + $0x280] sm:$0xff]
        %v794 = vld [vmem:[%s2 + $0x288] sm:$0xff]
        %v795 = vld [vmem:[%s2 + $0x290] sm:$0xff]
        %v796 = vld [vmem:[%s2 + $0x298] sm:$0xff]
        %v797 = vld [vmem:[%s678] sm:$0xff]
        %v798 = vld [vmem:[%s678 + $0x8] sm:$0xff]
        %v799 = vld [vmem:[%s678 + $0x10] sm:$0xff]
        %v800 = vld [vmem:[%s678 + $0x18] sm:$0xff]
        %v801 = vld [vmem:[%s678 + $0x20] sm:$0xff]
        %v802 = vld [vmem:[%s678 + $0x28] sm:$0xff]
        %v803 = vld [vmem:[%s678 + $0x30] sm:$0xff]
        %v804 = vld [vmem:[%s678 + $0x38] sm:$0xff]
        %v805 = vld [vmem:[%s678 + $0x40] sm:$0xff]
        %v806 = vld [vmem:[%s678 + $0x48] sm:$0xff]
        %v807 = vld [vmem:[%s678 + $0x50] sm:$0xff]
        %v808 = vld [vmem:[%s678 + $0x58] sm:$0xff]
        %v809 = vld [vmem:[%s678 + $0x60] sm:$0xff]
        %v810 = vld [vmem:[%s678 + $0x68] sm:$0xff]
        %v811 = vld [vmem:[%s678 + $0x70] sm:$0xff]
        %v812 = vld [vmem:[%s678 + $0x78] sm:$0xff]
        %v813 = vld [vmem:[%s678 + $0x80] sm:$0xff]
        %v814 = vld [vmem:[%s678 + $0x88] sm:$0xff]
        %v815 = vld [vmem:[%s678 + $0x90] sm:$0xff]
        %v816 = vld [vmem:[%s678 + $0x98] sm:$0xff]
        %v817 = vld [vmem:[%s678 + $0xa0] sm:$0xff]
        %v818 = vld [vmem:[%s678 + $0xa8] sm:$0xff]
        %v819 = vld [vmem:[%s678 + $0xb0] sm:$0xff]
        %v820 = vld [vmem:[%s678 + $0xb8] sm:$0xff]
        %v821 = vld [vmem:[%s678 + $0xc0] sm:$0xff]
        %v822 = vld [vmem:[%s678 + $0xc8] sm:$0xff]
        %v823 = vld [vmem:[%s678 + $0xd0] sm:$0xff]
        %v824 = vld [vmem:[%s678 + $0xd8] sm:$0xff]
        %v825 = vld [vmem:[%s678 + $0xe0] sm:$0xff]
        %v826 = vld [vmem:[%s678 + $0xe8] sm:$0xff]
        %v827 = vld [vmem:[%s678 + $0xf0] sm:$0xff]
        %v828 = vld [vmem:[%s678 + $0xf8] sm:$0xff]
        %v829 = vld [vmem:[%s678 + $0x100] sm:$0xff]
        %v830 = vld [vmem:[%s678 + $0x108] sm:$0xff]
        %v831 = vld [vmem:[%s678 + $0x110] sm:$0xff]
        %v832 = vld [vmem:[%s678 + $0x118] sm:$0xff]
        %v833 = vld [vmem:[%s678 + $0x120] sm:$0xff]
        %v834 = vld [vmem:[%s678 + $0x128] sm:$0xff]
        %v835 = vld [vmem:[%s678 + $0x130] sm:$0xff]
        %v836 = vld [vmem:[%s678 + $0x138] sm:$0xff]
        %v837 = vld [vmem:[%s678 + $0x140] sm:$0xff]
        %v838 = vld [vmem:[%s678 + $0x148] sm:$0xff]
        %v839 = vld [vmem:[%s678 + $0x150] sm:$0xff]
        %v840 = vld [vmem:[%s678 + $0x158] sm:$0xff]
        %v841 = vld [vmem:[%s678 + $0x160] sm:$0xff]
        %v842 = vld [vmem:[%s678 + $0x168] sm:$0xff]
        %v843 = vld [vmem:[%s678 + $0x170] sm:$0xff]
        %v844 = vld [vmem:[%s678 + $0x178] sm:$0xff]
        %v845 = vld [vmem:[%s678 + $0x180] sm:$0xff]
        %v846 = vld [vmem:[%s678 + $0x188] sm:$0xff]
        %v847 = vld [vmem:[%s678 + $0x190] sm:$0xff]
        %v848 = vld [vmem:[%s678 + $0x198] sm:$0xff]
        %v849 = vld [vmem:[%s678 + $0x1a0] sm:$0xff]
        %v850 = vld [vmem:[%s678 + $0x1a8] sm:$0xff]
        %v851 = vld [vmem:[%s678 + $0x1b0] sm:$0xff]
        %v852 = vld [vmem:[%s678 + $0x1b8] sm:$0xff]
        %v853 = vld [vmem:[%s678 + $0x1c0] sm:$0xff]
        %v854 = vld [vmem:[%s678 + $0x1c8] sm:$0xff]
        %v855 = vld [vmem:[%s678 + $0x1d0] sm:$0xff]
        %v856 = vld [vmem:[%s678 + $0x1d8] sm:$0xff]
        %v857 = vld [vmem:[%s678 + $0x1e0] sm:$0xff]
        %v858 = vld [vmem:[%s678 + $0x1e8] sm:$0xff]
        %v859 = vld [vmem:[%s678 + $0x1f0] sm:$0xff]
        %v860 = vld [vmem:[%s678 + $0x1f8] sm:$0xff]
        %v861 = vld [vmem:[%s678 + $0x200] sm:$0xff]
        %v862 = vld [vmem:[%s678 + $0x208] sm:$0xff]
        %v863 = vld [vmem:[%s678 + $0x210] sm:$0xff]
        %v864 = vld [vmem:[%s678 + $0x218] sm:$0xff]
        %v865 = vld [vmem:[%s678 + $0x220] sm:$0xff]
        %v866 = vld [vmem:[%s678 + $0x228] sm:$0xff]
        %v867 = vld [vmem:[%s678 + $0x230] sm:$0xff]
        %v868 = vld [vmem:[%s678 + $0x238] sm:$0xff]
        %v869 = vld [vmem:[%s678 + $0x240] sm:$0xff]
        %v870 = vld [vmem:[%s678 + $0x248] sm:$0xff]
        %v871 = vld [vmem:[%s678 + $0x250] sm:$0xff]
        %v872 = vld [vmem:[%s678 + $0x258] sm:$0xff]
        %v873 = vld [vmem:[%s678 + $0x260] sm:$0xff]
        %v874 = vld [vmem:[%s678 + $0x268] sm:$0xff]
        %v875 = vld [vmem:[%s678 + $0x270] sm:$0xff]
        %v876 = vld [vmem:[%s678 + $0x278] sm:$0xff]
        %v877 = vld [vmem:[%s678 + $0x280] sm:$0xff]
        %v878 = vld [vmem:[%s678 + $0x288] sm:$0xff]
        %v879 = vld [vmem:[%s678 + $0x290] sm:$0xff]
        %v880 = vld [vmem:[%s678 + $0x298] sm:$0xff]
        %v881 = vld [vmem:[%s685] sm:$0xff]
        %v882 = vld [vmem:[%s685 + $0x8] sm:$0xff]
        %v883 = vld [vmem:[%s685 + $0x10] sm:$0xff]
        %v884 = vld [vmem:[%s685 + $0x18] sm:$0xff]
        %v885 = vld [vmem:[%s685 + $0x20] sm:$0xff]
        %v886 = vld [vmem:[%s685 + $0x28] sm:$0xff]
        %v887 = vld [vmem:[%s685 + $0x30] sm:$0xff]
        %v888 = vld [vmem:[%s685 + $0x38] sm:$0xff]
        %v889 = vld [vmem:[%s685 + $0x40] sm:$0xff]
        %v890 = vld [vmem:[%s685 + $0x48] sm:$0xff]
        %v891 = vld [vmem:[%s685 + $0x50] sm:$0xff]
        %v892 = vld [vmem:[%s685 + $0x58] sm:$0xff]
        %v893 = vld [vmem:[%s685 + $0x60] sm:$0xff]
        %v894 = vld [vmem:[%s685 + $0x68] sm:$0xff]
        %vm895 = vcmask 261120
        %v897 = vsel %vm895, %v718, 0
        %v900 = vsel %vm895, %v724, 0
        %v903 = vsel %vm895, %v730, 0
        %v906 = vsel %vm895, %v736, 0
        %v909 = vsel %vm895, %v742, 0
        %v912 = vsel %vm895, %v748, 0
        %v915 = vsel %vm895, %v754, 0
        %v918 = vsel %vm895, %v760, 0
        %v921 = vsel %vm895, %v766, 0
        %v924 = vsel %vm895, %v772, 0
        %v927 = vsel %vm895, %v778, 0
        %v930 = vsel %vm895, %v784, 0
        %v933 = vsel %vm895, %v790, 0
        %v936 = vsel %vm895, %v796, 0
        %938 = vmatprep.subr.mxu0 0.0
        %939 = vmatpush1.msra.mxu0 %v797
        %940 = vmatprep.subr.mxu0 0.0
        %941 = vmatpush1.msra.mxu0 %v798
        %942 = vmatprep.subr.mxu0 0.0
        %943 = vmatpush1.msra.mxu0 %v799
        %944 = vmatprep.subr.mxu0 0.0
        %945 = vmatpush1.msra.mxu0 %v800
        %946 = vmatprep.subr.mxu0 0.0
        %947 = vmatpush1.msra.mxu0 %v801
        %948 = vmatprep.subr.mxu0 0.0
        %949 = vmatpush1.msra.mxu0 %v802
        %950 = vmatprep.subr.mxu0 0.0
        %951 = vmatpush1.msra.mxu0 %v803
        %952 = vmatprep.subr.mxu0 0.0
        %953 = vmatpush1.msra.mxu0 %v804
        %954 = vmatprep.subr.mxu0 0.0
        %955 = vmatpush1.msra.mxu0 %v805
        %956 = vmatprep.subr.mxu0 0.0
        %957 = vmatpush1.msra.mxu0 %v806
        %958 = vmatprep.subr.mxu0 0.0
        %959 = vmatpush1.msra.mxu0 %v807
        %960 = vmatprep.subr.mxu0 0.0
        %961 = vmatpush1.msra.mxu0 %v808
        %962 = vmatprep.subr.mxu0 0.0
        %963 = vmatpush1.msra.mxu0 %v809
        %964 = vmatprep.subr.mxu0 0.0
        %965 = vmatpush1.msra.mxu0 %v810
        %966 = vmatprep.subr.mxu0 0.0
        %967 = vmatpush1.msra.mxu0 %v811
        %968 = vmatprep.subr.mxu0 0.0
        %969 = vmatpush1.msra.mxu0 %v812
        %970 = vmatprep.subr.mxu0 0.0
        %971 = vmatpush1.msra.mxu0 %v813
        %972 = vmatprep.subr.mxu0 0.0
        %973 = vmatpush1.msra.mxu0 %v814
        %974 = vmatprep.subr.mxu0 0.0
        %975 = vmatpush1.msra.mxu0 %v815
        %976 = vmatprep.subr.mxu0 0.0
        %977 = vmatpush1.msra.mxu0 %v816
        %978 = vmatprep.subr.mxu0 0.0
        %979 = vmatpush1.msra.mxu0 %v817
        %980 = vmatprep.subr.mxu0 0.0
        %981 = vmatpush1.msra.mxu0 %v818
        %982 = vmatprep.subr.mxu0 0.0
        %983 = vmatpush1.msra.mxu0 %v819
        %984 = vmatprep.subr.mxu0 0.0
        %985 = vmatpush1.msra.mxu0 %v820
        %986 = vmatprep.subr.mxu0 0.0
        %987 = vmatpush1.msra.mxu0 %v821
        %988 = vmatprep.subr.mxu0 0.0
        %989 = vmatpush1.msra.mxu0 %v822
        %990 = vmatprep.subr.mxu0 0.0
        %991 = vmatpush1.msra.mxu0 %v823
        %992 = vmatprep.subr.mxu0 0.0
        %993 = vmatpush1.msra.mxu0 %v824
        %994 = vmatprep.subr.mxu0 0.0
        %995 = vmatpush1.msra.mxu0 %v825
        %996 = vmatprep.subr.mxu0 0.0
        %997 = vmatpush1.msra.mxu0 %v826
        %998 = vmatprep.subr.mxu0 0.0
        %999 = vmatpush1.msra.mxu0 %v827
        %1000 = vmatprep.subr.mxu0 0.0
        %1001 = vmatpush1.msra.mxu0 %v828
        %1002 = vmatprep.mubr.f32.mxu0 %v714
        %1003 = vmatmul.mubr.f32.gmra.mrb[0].mxu0 %v713
        %v1004 = vpop.f32.mrb[0].mxu0
        %v1005 = vadd.f32 %v881, %v1004
        %v1006 = vpop.f32.mrb[0].mxu0
        %1007 = vmatprep.mubr.f32.mxu0 %v720
        %1008 = vmatmul.mubr.f32.gmra.mrb[0].mxu0 %v719
        %v1009 = vpop.f32.mrb[0].mxu0
        %v1010 = vadd.f32 %v882, %v1009
        %v1011 = vpop.f32.mrb[0].mxu0
        %1012 = vmatprep.mubr.f32.mxu0 %v726
        %1013 = vmatmul.mubr.f32.gmra.mrb[0].mxu0 %v725
        %v1014 = vpop.f32.mrb[0].mxu0
        %v1015 = vadd.f32 %v883, %v1014
        %v1016 = vpop.f32.mrb[0].mxu0
        %1017 = vmatprep.mubr.f32.mxu0 %v732
        %1018 = vmatmul.mubr.f32.gmra.mrb[0].mxu0 %v731
        %v1019 = vpop.f32.mrb[0].mxu0
        %v1020 = vadd.f32 %v884, %v1019
        %v1021 = vpop.f32.mrb[0].mxu0
        %1022 = vmatprep.mubr.f32.mxu0 %v738
        %1023 = vmatmul.mubr.f32.gmra.mrb[0].mxu0 %v737
        %v1024 = vpop.f32.mrb[0].mxu0
        %v1025 = vadd.f32 %v885, %v1024
        %v1026 = vpop.f32.mrb[0].mxu0
        %1027 = vmatprep.mubr.f32.mxu0 %v744
        %1028 = vmatmul.mubr.f32.gmra.mrb[0].mxu0 %v743
        %v1029 = vpop.f32.mrb[0].mxu0
        %v1030 = vadd.f32 %v886, %v1029
        %v1031 = vpop.f32.mrb[0].mxu0
        %1032 = vmatprep.mubr.f32.mxu0 %v750
        %1033 = vmatmul.mubr.f32.gmra.mrb[0].mxu0 %v749
        %v1034 = vpop.f32.mrb[0].mxu0
        %v1035 = vadd.f32 %v887, %v1034
        %v1036 = vpop.f32.mrb[0].mxu0
        %1037 = vmatprep.mubr.f32.mxu0 %v756
        %1038 = vmatmul.mubr.f32.gmra.mrb[0].mxu0 %v755
        %v1039 = vpop.f32.mrb[0].mxu0
        %v1040 = vadd.f32 %v888, %v1039
        %v1041 = vpop.f32.mrb[0].mxu0
        %1042 = vmatprep.mubr.f32.mxu0 %v762
        %1043 = vmatmul.mubr.f32.gmra.mrb[0].mxu0 %v761
        %v1044 = vpop.f32.mrb[0].mxu0
        %v1045 = vadd.f32 %v889, %v1044
        %v1046 = vpop.f32.mrb[0].mxu0
        %1047 = vmatprep.mubr.f32.mxu0 %v768
        %1048 = vmatmul.mubr.f32.gmra.mrb[0].mxu0 %v767
        %v1049 = vpop.f32.mrb[0].mxu0
        %v1050 = vadd.f32 %v890, %v1049
        %v1051 = vpop.f32.mrb[0].mxu0
        %1052 = vmatprep.mubr.f32.mxu0 %v774
        %1053 = vmatmul.mubr.f32.gmra.mrb[0].mxu0 %v773
        %v1054 = vpop.f32.mrb[0].mxu0
        %v1055 = vadd.f32 %v891, %v1054
        %v1056 = vpop.f32.mrb[0].mxu0
        %1057 = vmatprep.mubr.f32.mxu0 %v780
        %1058 = vmatmul.mubr.f32.gmra.mrb[0].mxu0 %v779
        %v1059 = vpop.f32.mrb[0].mxu0
        %v1060 = vadd.f32 %v892, %v1059
        %v1061 = vpop.f32.mrb[0].mxu0
        %1062 = vmatprep.mubr.f32.mxu0 %v786
        %1063 = vmatmul.mubr.f32.gmra.mrb[0].mxu0 %v785
        %v1064 = vpop.f32.mrb[0].mxu0
        %v1065 = vadd.f32 %v893, %v1064
        %v1066 = vpop.f32.mrb[0].mxu0
        %1067 = vmatprep.mubr.f32.mxu0 %v792
        %1068 = vmatmul.mubr.f32.gmra.mrb[0].mxu0 %v791
        %v1069 = vpop.f32.mrb[0].mxu0
        %v1070 = vadd.f32 %v894, %v1069
        %v1071 = vpop.f32.mrb[0].mxu0
        %1072 = vdwg.mxu0
        %1073 = vmatprep.subr.mxu0 0.0
        %1074 = vmatpush1.msra.mxu0 %v829
        %1075 = vmatprep.subr.mxu0 0.0
        %1076 = vmatpush1.msra.mxu0 %v830
        %1077 = vmatprep.subr.mxu0 0.0
        %1078 = vmatpush1.msra.mxu0 %v831
        %1079 = vmatprep.subr.mxu0 0.0
        %1080 = vmatpush1.msra.mxu0 %v832
        %1081 = vmatprep.subr.mxu0 0.0
        %1082 = vmatpush1.msra.mxu0 %v833
        %1083 = vmatprep.subr.mxu0 0.0
        %1084 = vmatpush1.msra.mxu0 %v834
        %1085 = vmatprep.subr.mxu0 0.0
        %1086 = vmatpush1.msra.mxu0 %v835
        %1087 = vmatprep.subr.mxu0 0.0
        %1088 = vmatpush1.msra.mxu0 %v836
        %1089 = vmatprep.subr.mxu0 0.0
        %1090 = vmatpush1.msra.mxu0 %v837
        %1091 = vmatprep.subr.mxu0 0.0
        %1092 = vmatpush1.msra.mxu0 %v838
        %1093 = vmatprep.subr.mxu0 0.0
        %1094 = vmatpush1.msra.mxu0 %v839
        %1095 = vmatprep.subr.mxu0 0.0
        %1096 = vmatpush1.msra.mxu0 %v840
        %1097 = vmatprep.subr.mxu0 0.0
        %1098 = vmatpush1.msra.mxu0 %v841
        %1099 = vmatprep.subr.mxu0 0.0
        %1100 = vmatpush1.msra.mxu0 %v842
        %1101 = vmatprep.subr.mxu0 0.0
        %1102 = vmatpush1.msra.mxu0 %v843
        %1103 = vmatprep.subr.mxu0 0.0
        %1104 = vmatpush1.msra.mxu0 %v844
        %1105 = vmatprep.subr.mxu0 0.0
        %1106 = vmatpush1.msra.mxu0 %v845
        %1107 = vmatprep.subr.mxu0 0.0
        %1108 = vmatpush1.msra.mxu0 %v846
        %1109 = vmatprep.subr.mxu0 0.0
        %1110 = vmatpush1.msra.mxu0 %v847
        %1111 = vmatprep.subr.mxu0 0.0
        %1112 = vmatpush1.msra.mxu0 %v848
        %1113 = vmatprep.subr.mxu0 0.0
        %1114 = vmatpush1.msra.mxu0 %v849
        %1115 = vmatprep.subr.mxu0 0.0
        %1116 = vmatpush1.msra.mxu0 %v850
        %1117 = vmatprep.subr.mxu0 0.0
        %1118 = vmatpush1.msra.mxu0 %v851
        %1119 = vmatprep.subr.mxu0 0.0
        %1120 = vmatpush1.msra.mxu0 %v852
        %1121 = vmatprep.subr.mxu0 0.0
        %1122 = vmatpush1.msra.mxu0 %v853
        %1123 = vmatprep.subr.mxu0 0.0
        %1124 = vmatpush1.msra.mxu0 %v854
        %1125 = vmatprep.subr.mxu0 0.0
        %1126 = vmatpush1.msra.mxu0 %v855
        %1127 = vmatprep.subr.mxu0 0.0
        %1128 = vmatpush1.msra.mxu0 %v856
        %1129 = vmatprep.subr.mxu0 0.0
        %1130 = vmatpush1.msra.mxu0 %v857
        %1131 = vmatprep.subr.mxu0 0.0
        %1132 = vmatpush1.msra.mxu0 %v858
        %1133 = vmatprep.subr.mxu0 0.0
        %1134 = vmatpush1.msra.mxu0 %v859
        %1135 = vmatprep.subr.mxu0 0.0
        %1136 = vmatpush1.msra.mxu0 %v860
        %1137 = vmatprep.mubr.f32.mxu0 %v716
        %1138 = vmatmul.mubr.f32.gmra.mrb[0].mxu0 %v715
        %v1139 = vpop.f32.mrb[0].mxu0
        %v1140 = vadd.f32 %v1005, %v1139
        %v1141 = vpop.f32.mrb[0].mxu0
        %1142 = vmatprep.mubr.f32.mxu0 %v722
        %1143 = vmatmul.mubr.f32.gmra.mrb[0].mxu0 %v721
        %v1144 = vpop.f32.mrb[0].mxu0
        %v1145 = vadd.f32 %v1010, %v1144
        %v1146 = vpop.f32.mrb[0].mxu0
        %1147 = vmatprep.mubr.f32.mxu0 %v728
        %1148 = vmatmul.mubr.f32.gmra.mrb[0].mxu0 %v727
        %v1149 = vpop.f32.mrb[0].mxu0
        %v1150 = vadd.f32 %v1015, %v1149
        %v1151 = vpop.f32.mrb[0].mxu0
        %1152 = vmatprep.mubr.f32.mxu0 %v734
        %1153 = vmatmul.mubr.f32.gmra.mrb[0].mxu0 %v733
        %v1154 = vpop.f32.mrb[0].mxu0
        %v1155 = vadd.f32 %v1020, %v1154
        %v1156 = vpop.f32.mrb[0].mxu0
        %1157 = vmatprep.mubr.f32.mxu0 %v740
        %1158 = vmatmul.mubr.f32.gmra.mrb[0].mxu0 %v739
        %v1159 = vpop.f32.mrb[0].mxu0
        %v1160 = vadd.f32 %v1025, %v1159
        %v1161 = vpop.f32.mrb[0].mxu0
        %1162 = vmatprep.mubr.f32.mxu0 %v746
        %1163 = vmatmul.mubr.f32.gmra.mrb[0].mxu0 %v745
        %v1164 = vpop.f32.mrb[0].mxu0
        %v1165 = vadd.f32 %v1030, %v1164
        %v1166 = vpop.f32.mrb[0].mxu0
        %1167 = vmatprep.mubr.f32.mxu0 %v752
        %1168 = vmatmul.mubr.f32.gmra.mrb[0].mxu0 %v751
        %v1169 = vpop.f32.mrb[0].mxu0
        %v1170 = vadd.f32 %v1035, %v1169
        %v1171 = vpop.f32.mrb[0].mxu0
        %1172 = vmatprep.mubr.f32.mxu0 %v758
        %1173 = vmatmul.mubr.f32.gmra.mrb[0].mxu0 %v757
        %v1174 = vpop.f32.mrb[0].mxu0
        %v1175 = vadd.f32 %v1040, %v1174
        %v1176 = vpop.f32.mrb[0].mxu0
        %1177 = vmatprep.mubr.f32.mxu0 %v764
        %1178 = vmatmul.mubr.f32.gmra.mrb[0].mxu0 %v763
        %v1179 = vpop.f32.mrb[0].mxu0
        %v1180 = vadd.f32 %v1045, %v1179
        %v1181 = vpop.f32.mrb[0].mxu0
        %1182 = vmatprep.mubr.f32.mxu0 %v770
        %1183 = vmatmul.mubr.f32.gmra.mrb[0].mxu0 %v769
        %v1184 = vpop.f32.mrb[0].mxu0
        %v1185 = vadd.f32 %v1050, %v1184
        %v1186 = vpop.f32.mrb[0].mxu0
        %1187 = vmatprep.mubr.f32.mxu0 %v776
        %1188 = vmatmul.mubr.f32.gmra.mrb[0].mxu0 %v775
        %v1189 = vpop.f32.mrb[0].mxu0
        %v1190 = vadd.f32 %v1055, %v1189
        %v1191 = vpop.f32.mrb[0].mxu0
        %1192 = vmatprep.mubr.f32.mxu0 %v782
        %1193 = vmatmul.mubr.f32.gmra.mrb[0].mxu0 %v781
        %v1194 = vpop.f32.mrb[0].mxu0
        %v1195 = vadd.f32 %v1060, %v1194
        %v1196 = vpop.f32.mrb[0].mxu0
        %1197 = vmatprep.mubr.f32.mxu0 %v788
        %1198 = vmatmul.mubr.f32.gmra.mrb[0].mxu0 %v787
        %v1199 = vpop.f32.mrb[0].mxu0
        %v1200 = vadd.f32 %v1065, %v1199
        %v1201 = vpop.f32.mrb[0].mxu0
        %1202 = vmatprep.mubr.f32.mxu0 %v794
        %1203 = vmatmul.mubr.f32.gmra.mrb[0].mxu0 %v793
        %v1204 = vpop.f32.mrb[0].mxu0
        %v1205 = vadd.f32 %v1070, %v1204
        %v1206 = vpop.f32.mrb[0].mxu0
        %1207 = vdwg.mxu0
        %1208 = vmatprep.subr.mxu0 0.0
        %1209 = vmatpush1.msra.mxu0 %v861
        %1210 = vmatprep.subr.mxu0 0.0
        %1211 = vmatpush1.msra.mxu0 %v862
        %1212 = vmatprep.subr.mxu0 0.0
        %1213 = vmatpush1.msra.mxu0 %v863
        %1214 = vmatprep.subr.mxu0 0.0
        %1215 = vmatpush1.msra.mxu0 %v864
        %1216 = vmatprep.subr.mxu0 0.0
        %1217 = vmatpush1.msra.mxu0 %v865
        %1218 = vmatprep.subr.mxu0 0.0
        %1219 = vmatpush1.msra.mxu0 %v866
        %1220 = vmatprep.subr.mxu0 0.0
        %1221 = vmatpush1.msra.mxu0 %v867
        %1222 = vmatprep.subr.mxu0 0.0
        %1223 = vmatpush1.msra.mxu0 %v868
        %1224 = vmatprep.subr.mxu0 0.0
        %1225 = vmatpush1.msra.mxu0 %v869
        %1226 = vmatprep.subr.mxu0 0.0
        %1227 = vmatpush1.msra.mxu0 %v870
        %1228 = vmatprep.subr.mxu0 0.0
        %1229 = vmatpush1.msra.mxu0 %v871
        %1230 = vmatprep.subr.mxu0 0.0
        %1231 = vmatpush1.msra.mxu0 %v872
        %1232 = vmatprep.subr.mxu0 0.0
        %1233 = vmatpush1.msra.mxu0 %v873
        %1234 = vmatprep.subr.mxu0 0.0
        %1235 = vmatpush1.msra.mxu0 %v874
        %1236 = vmatprep.subr.mxu0 0.0
        %1237 = vmatpush1.msra.mxu0 %v875
        %1238 = vmatprep.subr.mxu0 0.0
        %1239 = vmatpush1.msra.mxu0 %v876
        %1240 = vmatprep.subr.mxu0 0.0
        %1241 = vmatpush1.msra.mxu0 %v877
        %1242 = vmatprep.subr.mxu0 0.0
        %1243 = vmatpush1.msra.mxu0 %v878
        %1244 = vmatprep.subr.mxu0 0.0
        %1245 = vmatpush1.msra.mxu0 %v879
        %1246 = vmatprep.subr.mxu0 0.0
        %1247 = vmatpush1.msra.mxu0 %v880
        %1248 = vmatprep.subr.mxu0 0.0
        %1249 = vmatpush1.msra.mxu0 0.0
        %1250 = vmatprep.subr.mxu0 0.0
        %1251 = vmatpush1.msra.mxu0 0.0
        %1252 = vmatprep.subr.mxu0 0.0
        %1253 = vmatpush1.msra.mxu0 0.0
        %1254 = vmatprep.subr.mxu0 0.0
        %1255 = vmatpush1.msra.mxu0 0.0
        %1256 = vmatprep.subr.mxu0 0.0
        %1257 = vmatpush1.msra.mxu0 0.0
        %1258 = vmatprep.subr.mxu0 0.0
        %1259 = vmatpush1.msra.mxu0 0.0
        %1260 = vmatprep.subr.mxu0 0.0
        %1261 = vmatpush1.msra.mxu0 0.0
        %1262 = vmatprep.subr.mxu0 0.0
        %1263 = vmatpush1.msra.mxu0 0.0
        %1264 = vmatprep.subr.mxu0 0.0
        %1265 = vmatpush1.msra.mxu0 0.0
        %1266 = vmatprep.subr.mxu0 0.0
        %1267 = vmatpush1.msra.mxu0 0.0
        %1268 = vmatprep.subr.mxu0 0.0
        %1269 = vmatpush1.msra.mxu0 0.0
        %1270 = vmatprep.subr.mxu0 0.0
        %1271 = vmatpush1.msra.mxu0 0.0
        %1272 = vmatprep.mubr.f32.mxu0 %v897
        %1273 = vmatmul.mubr.f32.gmra.mrb[0].mxu0 %v717
        %v1274 = vpop.f32.mrb[0].mxu0
        %v1275 = vadd.f32 %v1140, %v1274
        %v1276 = vpop.f32.mrb[0].mxu0
        %1277 = vmatprep.mubr.f32.mxu0 %v900
        %1278 = vmatmul.mubr.f32.gmra.mrb[0].mxu0 %v723
        %v1279 = vpop.f32.mrb[0].mxu0
        %v1280 = vadd.f32 %v1145, %v1279
        %v1281 = vpop.f32.mrb[0].mxu0
        %1282 = vmatprep.mubr.f32.mxu0 %v903
        %1283 = vmatmul.mubr.f32.gmra.mrb[0].mxu0 %v729
        %v1284 = vpop.f32.mrb[0].mxu0
        %v1285 = vadd.f32 %v1150, %v1284
        %v1286 = vpop.f32.mrb[0].mxu0
        %1287 = vmatprep.mubr.f32.mxu0 %v906
        %1288 = vmatmul.mubr.f32.gmra.mrb[0].mxu0 %v735
        %v1289 = vpop.f32.mrb[0].mxu0
        %v1290 = vadd.f32 %v1155, %v1289
        %v1291 = vpop.f32.mrb[0].mxu0
        %1292 = vmatprep.mubr.f32.mxu0 %v909
        %1293 = vmatmul.mubr.f32.gmra.mrb[0].mxu0 %v741
        %v1294 = vpop.f32.mrb[0].mxu0
        %v1295 = vadd.f32 %v1160, %v1294
        %v1296 = vpop.f32.mrb[0].mxu0
        %1297 = vmatprep.mubr.f32.mxu0 %v912
        %1298 = vmatmul.mubr.f32.gmra.mrb[0].mxu0 %v747
        %v1299 = vpop.f32.mrb[0].mxu0
        %v1300 = vadd.f32 %v1165, %v1299
        %v1301 = vpop.f32.mrb[0].mxu0
        %1302 = vmatprep.mubr.f32.mxu0 %v915
        %1303 = vmatmul.mubr.f32.gmra.mrb[0].mxu0 %v753
        %v1304 = vpop.f32.mrb[0].mxu0
        %v1305 = vadd.f32 %v1170, %v1304
        %v1306 = vpop.f32.mrb[0].mxu0
        %1307 = vmatprep.mubr.f32.mxu0 %v918
        %1308 = vmatmul.mubr.f32.gmra.mrb[0].mxu0 %v759
        %v1309 = vpop.f32.mrb[0].mxu0
        %v1310 = vadd.f32 %v1175, %v1309
        %v1311 = vpop.f32.mrb[0].mxu0
        %1312 = vmatprep.mubr.f32.mxu0 %v921
        %1313 = vmatmul.mubr.f32.gmra.mrb[0].mxu0 %v765
        %v1314 = vpop.f32.mrb[0].mxu0
        %v1315 = vadd.f32 %v1180, %v1314
        %v1316 = vpop.f32.mrb[0].mxu0
        %1317 = vmatprep.mubr.f32.mxu0 %v924
        %1318 = vmatmul.mubr.f32.gmra.mrb[0].mxu0 %v771
        %v1319 = vpop.f32.mrb[0].mxu0
        %v1320 = vadd.f32 %v1185, %v1319
        %v1321 = vpop.f32.mrb[0].mxu0
        %1322 = vmatprep.mubr.f32.mxu0 %v927
        %1323 = vmatmul.mubr.f32.gmra.mrb[0].mxu0 %v777
        %v1324 = vpop.f32.mrb[0].mxu0
        %v1325 = vadd.f32 %v1190, %v1324
        %v1326 = vpop.f32.mrb[0].mxu0
        %1327 = vmatprep.mubr.f32.mxu0 %v930
        %1328 = vmatmul.mubr.f32.gmra.mrb[0].mxu0 %v783
        %v1329 = vpop.f32.mrb[0].mxu0
        %v1330 = vadd.f32 %v1195, %v1329
        %v1331 = vpop.f32.mrb[0].mxu0
        %1332 = vmatprep.mubr.f32.mxu0 %v933
        %1333 = vmatmul.mubr.f32.gmra.mrb[0].mxu0 %v789
        %v1334 = vpop.f32.mrb[0].mxu0
        %v1335 = vadd.f32 %v1200, %v1334
        %v1336 = vpop.f32.mrb[0].mxu0
        %1337 = vmatprep.mubr.f32.mxu0 %v936
        %1338 = vmatmul.mubr.f32.gmra.mrb[0].mxu0 %v795
        %v1339 = vpop.f32.mrb[0].mxu0
        %v1340 = vadd.f32 %v1205, %v1339
        %v1341 = vpop.f32.mrb[0].mxu0
        %1342 = vdwg.mxu0
        %v1343 = vld [vmem:[%s3] sm:$0xff]
        %v1344 = vld [vmem:[%s3 + $0x8] sm:$0xff]
        %v1345 = vld [vmem:[%s3 + $0x10] sm:$0xff]
        %v1346 = vld [vmem:[%s3 + $0x18] sm:$0xff]
        %v1347 = vld [vmem:[%s3 + $0x20] sm:$0xff]
        %v1348 = vld [vmem:[%s3 + $0x28] sm:$0xff]
        %v1349 = vld [vmem:[%s3 + $0x30] sm:$0xff]
        %v1350 = vld [vmem:[%s3 + $0x38] sm:$0xff]
        %v1351 = vld [vmem:[%s3 + $0x40] sm:$0xff]
        %v1352 = vld [vmem:[%s3 + $0x48] sm:$0xff]
        %v1353 = vld [vmem:[%s3 + $0x50] sm:$0xff]
        %v1354 = vld [vmem:[%s3 + $0x58] sm:$0xff]
        %v1355 = vld [vmem:[%s3 + $0x60] sm:$0xff]
        %v1356 = vld [vmem:[%s3 + $0x68] sm:$0xff]
        %v1357 = vld [vmem:[%s3 + $0x70] sm:$0xff]
        %v1358 = vld [vmem:[%s3 + $0x78] sm:$0xff]
        %v1359 = vld [vmem:[%s3 + $0x80] sm:$0xff]
        %v1360 = vld [vmem:[%s3 + $0x88] sm:$0xff]
        %v1361 = vld [vmem:[%s3 + $0x90] sm:$0xff]
        %v1362 = vld [vmem:[%s3 + $0x98] sm:$0xff]
        %v1363 = vld [vmem:[%s3 + $0xa0] sm:$0xff]
        %v1364 = vld [vmem:[%s3 + $0xa8] sm:$0xff]
        %v1365 = vld [vmem:[%s3 + $0xb0] sm:$0xff]
        %v1366 = vld [vmem:[%s3 + $0xb8] sm:$0xff]
        %v1367 = vld [vmem:[%s3 + $0xc0] sm:$0xff]
        %v1368 = vld [vmem:[%s3 + $0xc8] sm:$0xff]
        %v1369 = vld [vmem:[%s3 + $0xd0] sm:$0xff]
        %v1370 = vld [vmem:[%s3 + $0xd8] sm:$0xff]
        %v1371 = vld [vmem:[%s3 + $0xe0] sm:$0xff]
        %v1372 = vld [vmem:[%s3 + $0xe8] sm:$0xff]
        %v1373 = vld [vmem:[%s3 + $0xf0] sm:$0xff]
        %v1374 = vld [vmem:[%s3 + $0xf8] sm:$0xff]
        %v1375 = vld [vmem:[%s3 + $0x100] sm:$0xff]
        %v1376 = vld [vmem:[%s3 + $0x108] sm:$0xff]
        %v1377 = vld [vmem:[%s3 + $0x110] sm:$0xff]
        %v1378 = vld [vmem:[%s3 + $0x118] sm:$0xff]
        %v1379 = vld [vmem:[%s3 + $0x120] sm:$0xff]
        %v1380 = vld [vmem:[%s3 + $0x128] sm:$0xff]
        %v1381 = vld [vmem:[%s3 + $0x130] sm:$0xff]
        %v1382 = vld [vmem:[%s3 + $0x138] sm:$0xff]
        %v1383 = vld [vmem:[%s3 + $0x140] sm:$0xff]
        %v1384 = vld [vmem:[%s3 + $0x148] sm:$0xff]
        %v1385 = vld [vmem:[%s3 + $0x150] sm:$0xff]
        %v1386 = vld [vmem:[%s3 + $0x158] sm:$0xff]
        %v1387 = vld [vmem:[%s3 + $0x160] sm:$0xff]
        %v1388 = vld [vmem:[%s3 + $0x168] sm:$0xff]
        %v1389 = vld [vmem:[%s3 + $0x170] sm:$0xff]
        %v1390 = vld [vmem:[%s3 + $0x178] sm:$0xff]
        %v1391 = vld [vmem:[%s3 + $0x180] sm:$0xff]
        %v1392 = vld [vmem:[%s3 + $0x188] sm:$0xff]
        %v1393 = vld [vmem:[%s3 + $0x190] sm:$0xff]
        %v1394 = vld [vmem:[%s3 + $0x198] sm:$0xff]
        %v1395 = vld [vmem:[%s3 + $0x1a0] sm:$0xff]
        %v1396 = vld [vmem:[%s3 + $0x1a8] sm:$0xff]
        %v1397 = vld [vmem:[%s3 + $0x1b0] sm:$0xff]
        %v1398 = vld [vmem:[%s3 + $0x1b8] sm:$0xff]
        %v1399 = vld [vmem:[%s3 + $0x1c0] sm:$0xff]
        %v1400 = vld [vmem:[%s3 + $0x1c8] sm:$0xff]
        %v1401 = vld [vmem:[%s3 + $0x1d0] sm:$0xff]
        %v1402 = vld [vmem:[%s3 + $0x1d8] sm:$0xff]
        %v1403 = vld [vmem:[%s3 + $0x1e0] sm:$0xff]
        %v1404 = vld [vmem:[%s3 + $0x1e8] sm:$0xff]
        %v1405 = vld [vmem:[%s3 + $0x1f0] sm:$0xff]
        %v1406 = vld [vmem:[%s3 + $0x1f8] sm:$0xff]
        %v1407 = vld [vmem:[%s3 + $0x200] sm:$0xff]
        %v1408 = vld [vmem:[%s3 + $0x208] sm:$0xff]
        %v1409 = vld [vmem:[%s3 + $0x210] sm:$0xff]
        %v1410 = vld [vmem:[%s3 + $0x218] sm:$0xff]
        %v1411 = vld [vmem:[%s3 + $0x220] sm:$0xff]
        %v1412 = vld [vmem:[%s3 + $0x228] sm:$0xff]
        %v1413 = vld [vmem:[%s3 + $0x230] sm:$0xff]
        %v1414 = vld [vmem:[%s3 + $0x238] sm:$0xff]
        %v1415 = vld [vmem:[%s3 + $0x240] sm:$0xff]
        %v1416 = vld [vmem:[%s3 + $0x248] sm:$0xff]
        %v1417 = vld [vmem:[%s3 + $0x250] sm:$0xff]
        %v1418 = vld [vmem:[%s3 + $0x258] sm:$0xff]
        %v1419 = vld [vmem:[%s3 + $0x260] sm:$0xff]
        %v1420 = vld [vmem:[%s3 + $0x268] sm:$0xff]
        %v1421 = vld [vmem:[%s3 + $0x270] sm:$0xff]
        %v1422 = vld [vmem:[%s3 + $0x278] sm:$0xff]
        %v1423 = vld [vmem:[%s3 + $0x280] sm:$0xff]
        %v1424 = vld [vmem:[%s3 + $0x288] sm:$0xff]
        %v1425 = vld [vmem:[%s3 + $0x290] sm:$0xff]
        %v1426 = vld [vmem:[%s3 + $0x298] sm:$0xff]
        %v1427 = vld [vmem:[%s4] sm:$0xff]
        %v1428 = vld [vmem:[%s4 + $0x8] sm:$0xff]
        %v1429 = vld [vmem:[%s4 + $0x10] sm:$0xff]
        %v1430 = vld [vmem:[%s4 + $0x18] sm:$0xff]
        %v1431 = vld [vmem:[%s4 + $0x20] sm:$0xff]
        %v1432 = vld [vmem:[%s4 + $0x28] sm:$0xff]
        %v1433 = vld [vmem:[%s4 + $0x30] sm:$0xff]
        %v1434 = vld [vmem:[%s4 + $0x38] sm:$0xff]
        %v1435 = vld [vmem:[%s4 + $0x40] sm:$0xff]
        %v1436 = vld [vmem:[%s4 + $0x48] sm:$0xff]
        %v1437 = vld [vmem:[%s4 + $0x50] sm:$0xff]
        %v1438 = vld [vmem:[%s4 + $0x58] sm:$0xff]
        %v1439 = vld [vmem:[%s4 + $0x60] sm:$0xff]
        %v1440 = vld [vmem:[%s4 + $0x68] sm:$0xff]
        %v1441 = vld [vmem:[%s4 + $0x70] sm:$0xff]
        %v1442 = vld [vmem:[%s4 + $0x78] sm:$0xff]
        %v1443 = vld [vmem:[%s4 + $0x80] sm:$0xff]
        %v1444 = vld [vmem:[%s4 + $0x88] sm:$0xff]
        %v1445 = vld [vmem:[%s4 + $0x90] sm:$0xff]
        %v1446 = vld [vmem:[%s4 + $0x98] sm:$0xff]
        %v1447 = vld [vmem:[%s4 + $0xa0] sm:$0xff]
        %v1448 = vld [vmem:[%s4 + $0xa8] sm:$0xff]
        %v1449 = vld [vmem:[%s4 + $0xb0] sm:$0xff]
        %v1450 = vld [vmem:[%s4 + $0xb8] sm:$0xff]
        %v1451 = vld [vmem:[%s4 + $0xc0] sm:$0xff]
        %v1452 = vld [vmem:[%s4 + $0xc8] sm:$0xff]
        %v1453 = vld [vmem:[%s4 + $0xd0] sm:$0xff]
        %v1454 = vld [vmem:[%s4 + $0xd8] sm:$0xff]
        %v1455 = vld [vmem:[%s4 + $0xe0] sm:$0xff]
        %v1456 = vld [vmem:[%s4 + $0xe8] sm:$0xff]
        %v1457 = vld [vmem:[%s4 + $0xf0] sm:$0xff]
        %v1458 = vld [vmem:[%s4 + $0xf8] sm:$0xff]
        %v1459 = vld [vmem:[%s4 + $0x100] sm:$0xff]
        %v1460 = vld [vmem:[%s4 + $0x108] sm:$0xff]
        %v1461 = vld [vmem:[%s4 + $0x110] sm:$0xff]
        %v1462 = vld [vmem:[%s4 + $0x118] sm:$0xff]
        %v1463 = vld [vmem:[%s4 + $0x120] sm:$0xff]
        %v1464 = vld [vmem:[%s4 + $0x128] sm:$0xff]
        %v1465 = vld [vmem:[%s4 + $0x130] sm:$0xff]
        %v1466 = vld [vmem:[%s4 + $0x138] sm:$0xff]
        %v1467 = vld [vmem:[%s4 + $0x140] sm:$0xff]
        %v1468 = vld [vmem:[%s4 + $0x148] sm:$0xff]
        %v1469 = vld [vmem:[%s4 + $0x150] sm:$0xff]
        %v1470 = vld [vmem:[%s4 + $0x158] sm:$0xff]
        %v1471 = vld [vmem:[%s4 + $0x160] sm:$0xff]
        %v1472 = vld [vmem:[%s4 + $0x168] sm:$0xff]
        %v1473 = vld [vmem:[%s4 + $0x170] sm:$0xff]
        %v1474 = vld [vmem:[%s4 + $0x178] sm:$0xff]
        %v1475 = vld [vmem:[%s4 + $0x180] sm:$0xff]
        %v1476 = vld [vmem:[%s4 + $0x188] sm:$0xff]
        %v1477 = vld [vmem:[%s4 + $0x190] sm:$0xff]
        %v1478 = vld [vmem:[%s4 + $0x198] sm:$0xff]
        %v1479 = vld [vmem:[%s4 + $0x1a0] sm:$0xff]
        %v1480 = vld [vmem:[%s4 + $0x1a8] sm:$0xff]
        %v1481 = vld [vmem:[%s4 + $0x1b0] sm:$0xff]
        %v1482 = vld [vmem:[%s4 + $0x1b8] sm:$0xff]
        %v1483 = vld [vmem:[%s4 + $0x1c0] sm:$0xff]
        %v1484 = vld [vmem:[%s4 + $0x1c8] sm:$0xff]
        %v1485 = vld [vmem:[%s4 + $0x1d0] sm:$0xff]
        %v1486 = vld [vmem:[%s4 + $0x1d8] sm:$0xff]
        %v1487 = vld [vmem:[%s4 + $0x1e0] sm:$0xff]
        %v1488 = vld [vmem:[%s4 + $0x1e8] sm:$0xff]
        %v1489 = vld [vmem:[%s4 + $0x1f0] sm:$0xff]
        %v1490 = vld [vmem:[%s4 + $0x1f8] sm:$0xff]
        %v1491 = vld [vmem:[%s4 + $0x200] sm:$0xff]
        %v1492 = vld [vmem:[%s4 + $0x208] sm:$0xff]
        %v1493 = vld [vmem:[%s4 + $0x210] sm:$0xff]
        %v1494 = vld [vmem:[%s4 + $0x218] sm:$0xff]
        %v1495 = vld [vmem:[%s4 + $0x220] sm:$0xff]
        %v1496 = vld [vmem:[%s4 + $0x228] sm:$0xff]
        %v1497 = vld [vmem:[%s4 + $0x230] sm:$0xff]
        %v1498 = vld [vmem:[%s4 + $0x238] sm:$0xff]
        %v1499 = vld [vmem:[%s4 + $0x240] sm:$0xff]
        %v1500 = vld [vmem:[%s4 + $0x248] sm:$0xff]
        %v1501 = vld [vmem:[%s4 + $0x250] sm:$0xff]
        %v1502 = vld [vmem:[%s4 + $0x258] sm:$0xff]
        %v1503 = vld [vmem:[%s4 + $0x260] sm:$0xff]
        %v1504 = vld [vmem:[%s4 + $0x268] sm:$0xff]
        %v1505 = vld [vmem:[%s4 + $0x270] sm:$0xff]
        %v1506 = vld [vmem:[%s4 + $0x278] sm:$0xff]
        %v1507 = vld [vmem:[%s4 + $0x280] sm:$0xff]
        %v1508 = vld [vmem:[%s4 + $0x288] sm:$0xff]
        %v1509 = vld [vmem:[%s4 + $0x290] sm:$0xff]
        %v1510 = vld [vmem:[%s4 + $0x298] sm:$0xff]
        %1512 = vset.pattern.permute.xlu0 0
        %1513 = vperm.xlu0 %1512, %v1427
        %v1514 = vpop.permute.xlu0 %1513
        %1517 = vset.pattern.permute.xlu0 0
        %1518 = vperm.xlu0 %1517, %v1428
        %v1519 = vpop.permute.xlu0 %1518
        %1522 = vset.pattern.permute.xlu0 0
        %1523 = vperm.xlu0 %1522, %v1429
        %v1524 = vpop.permute.xlu0 %1523
        %1527 = vset.pattern.permute.xlu0 0
        %1528 = vperm.xlu0 %1527, %v1430
        %v1529 = vpop.permute.xlu0 %1528
        %1532 = vset.pattern.permute.xlu0 0
        %1533 = vperm.xlu0 %1532, %v1431
        %v1534 = vpop.permute.xlu0 %1533
        %1537 = vset.pattern.permute.xlu0 0
        %1538 = vperm.xlu0 %1537, %v1432
        %v1539 = vpop.permute.xlu0 %1538
        %1542 = vset.pattern.permute.xlu0 0
        %1543 = vperm.xlu0 %1542, %v1433
        %v1544 = vpop.permute.xlu0 %1543
        %1547 = vset.pattern.permute.xlu0 0
        %1548 = vperm.xlu0 %1547, %v1434
        %v1549 = vpop.permute.xlu0 %1548
        %1552 = vset.pattern.permute.xlu0 0
        %1553 = vperm.xlu0 %1552, %v1435
        %v1554 = vpop.permute.xlu0 %1553
        %1557 = vset.pattern.permute.xlu0 0
        %1558 = vperm.xlu0 %1557, %v1436
        %v1559 = vpop.permute.xlu0 %1558
        %1562 = vset.pattern.permute.xlu0 0
        %1563 = vperm.xlu0 %1562, %v1437
        %v1564 = vpop.permute.xlu0 %1563
        %1567 = vset.pattern.permute.xlu0 0
        %1568 = vperm.xlu0 %1567, %v1438
        %v1569 = vpop.permute.xlu0 %1568
        %1572 = vset.pattern.permute.xlu0 0
        %1573 = vperm.xlu0 %1572, %v1439
        %v1574 = vpop.permute.xlu0 %1573
        %1577 = vset.pattern.permute.xlu0 0
        %1578 = vperm.xlu0 %1577, %v1440
        %v1579 = vpop.permute.xlu0 %1578
        %1582 = vset.pattern.permute.xlu0 0
        %1583 = vperm.xlu0 %1582, %v1441
        %v1584 = vpop.permute.xlu0 %1583
        %1587 = vset.pattern.permute.xlu0 0
        %1588 = vperm.xlu0 %1587, %v1442
        %v1589 = vpop.permute.xlu0 %1588
        %1592 = vset.pattern.permute.xlu0 0
        %1593 = vperm.xlu0 %1592, %v1443
        %v1594 = vpop.permute.xlu0 %1593
        %1597 = vset.pattern.permute.xlu0 0
        %1598 = vperm.xlu0 %1597, %v1444
        %v1599 = vpop.permute.xlu0 %1598
        %1602 = vset.pattern.permute.xlu0 0
        %1603 = vperm.xlu0 %1602, %v1445
        %v1604 = vpop.permute.xlu0 %1603
        %1607 = vset.pattern.permute.xlu0 0
        %1608 = vperm.xlu0 %1607, %v1446
        %v1609 = vpop.permute.xlu0 %1608
        %1612 = vset.pattern.permute.xlu0 0
        %1613 = vperm.xlu0 %1612, %v1447
        %v1614 = vpop.permute.xlu0 %1613
        %1617 = vset.pattern.permute.xlu0 0
        %1618 = vperm.xlu0 %1617, %v1448
        %v1619 = vpop.permute.xlu0 %1618
        %1622 = vset.pattern.permute.xlu0 0
        %1623 = vperm.xlu0 %1622, %v1449
        %v1624 = vpop.permute.xlu0 %1623
        %1627 = vset.pattern.permute.xlu0 0
        %1628 = vperm.xlu0 %1627, %v1450
        %v1629 = vpop.permute.xlu0 %1628
        %1632 = vset.pattern.permute.xlu0 0
        %1633 = vperm.xlu0 %1632, %v1451
        %v1634 = vpop.permute.xlu0 %1633
        %1637 = vset.pattern.permute.xlu0 0
        %1638 = vperm.xlu0 %1637, %v1452
        %v1639 = vpop.permute.xlu0 %1638
        %1642 = vset.pattern.permute.xlu0 0
        %1643 = vperm.xlu0 %1642, %v1453
        %v1644 = vpop.permute.xlu0 %1643
        %1647 = vset.pattern.permute.xlu0 0
        %1648 = vperm.xlu0 %1647, %v1454
        %v1649 = vpop.permute.xlu0 %1648
        %1652 = vset.pattern.permute.xlu0 0
        %1653 = vperm.xlu0 %1652, %v1455
        %v1654 = vpop.permute.xlu0 %1653
        %1657 = vset.pattern.permute.xlu0 0
        %1658 = vperm.xlu0 %1657, %v1456
        %v1659 = vpop.permute.xlu0 %1658
        %1662 = vset.pattern.permute.xlu0 0
        %1663 = vperm.xlu0 %1662, %v1457
        %v1664 = vpop.permute.xlu0 %1663
        %1667 = vset.pattern.permute.xlu0 0
        %1668 = vperm.xlu0 %1667, %v1458
        %v1669 = vpop.permute.xlu0 %1668
        %1672 = vset.pattern.permute.xlu0 0
        %1673 = vperm.xlu0 %1672, %v1459
        %v1674 = vpop.permute.xlu0 %1673
        %1677 = vset.pattern.permute.xlu0 0
        %1678 = vperm.xlu0 %1677, %v1460
        %v1679 = vpop.permute.xlu0 %1678
        %1682 = vset.pattern.permute.xlu0 0
        %1683 = vperm.xlu0 %1682, %v1461
        %v1684 = vpop.permute.xlu0 %1683
        %1687 = vset.pattern.permute.xlu0 0
        %1688 = vperm.xlu0 %1687, %v1462
        %v1689 = vpop.permute.xlu0 %1688
        %1692 = vset.pattern.permute.xlu0 0
        %1693 = vperm.xlu0 %1692, %v1463
        %v1694 = vpop.permute.xlu0 %1693
        %1697 = vset.pattern.permute.xlu0 0
        %1698 = vperm.xlu0 %1697, %v1464
        %v1699 = vpop.permute.xlu0 %1698
        %1702 = vset.pattern.permute.xlu0 0
        %1703 = vperm.xlu0 %1702, %v1465
        %v1704 = vpop.permute.xlu0 %1703
        %1707 = vset.pattern.permute.xlu0 0
        %1708 = vperm.xlu0 %1707, %v1466
        %v1709 = vpop.permute.xlu0 %1708
        %1712 = vset.pattern.permute.xlu0 0
        %1713 = vperm.xlu0 %1712, %v1467
        %v1714 = vpop.permute.xlu0 %1713
        %1717 = vset.pattern.permute.xlu0 0
        %1718 = vperm.xlu0 %1717, %v1468
        %v1719 = vpop.permute.xlu0 %1718
        %1722 = vset.pattern.permute.xlu0 0
        %1723 = vperm.xlu0 %1722, %v1469
        %v1724 = vpop.permute.xlu0 %1723
        %1727 = vset.pattern.permute.xlu0 0
        %1728 = vperm.xlu0 %1727, %v1470
        %v1729 = vpop.permute.xlu0 %1728
        %1732 = vset.pattern.permute.xlu0 0
        %1733 = vperm.xlu0 %1732, %v1471
        %v1734 = vpop.permute.xlu0 %1733
        %1737 = vset.pattern.permute.xlu0 0
        %1738 = vperm.xlu0 %1737, %v1472
        %v1739 = vpop.permute.xlu0 %1738
        %1742 = vset.pattern.permute.xlu0 0
        %1743 = vperm.xlu0 %1742, %v1473
        %v1744 = vpop.permute.xlu0 %1743
        %1747 = vset.pattern.permute.xlu0 0
        %1748 = vperm.xlu0 %1747, %v1474
        %v1749 = vpop.permute.xlu0 %1748
        %1752 = vset.pattern.permute.xlu0 0
        %1753 = vperm.xlu0 %1752, %v1475
        %v1754 = vpop.permute.xlu0 %1753
        %1757 = vset.pattern.permute.xlu0 0
        %1758 = vperm.xlu0 %1757, %v1476
        %v1759 = vpop.permute.xlu0 %1758
        %1762 = vset.pattern.permute.xlu0 0
        %1763 = vperm.xlu0 %1762, %v1477
        %v1764 = vpop.permute.xlu0 %1763
        %1767 = vset.pattern.permute.xlu0 0
        %1768 = vperm.xlu0 %1767, %v1478
        %v1769 = vpop.permute.xlu0 %1768
        %1772 = vset.pattern.permute.xlu0 0
        %1773 = vperm.xlu0 %1772, %v1479
        %v1774 = vpop.permute.xlu0 %1773
        %1777 = vset.pattern.permute.xlu0 0
        %1778 = vperm.xlu0 %1777, %v1480
        %v1779 = vpop.permute.xlu0 %1778
        %1782 = vset.pattern.permute.xlu0 0
        %1783 = vperm.xlu0 %1782, %v1481
        %v1784 = vpop.permute.xlu0 %1783
        %1787 = vset.pattern.permute.xlu0 0
        %1788 = vperm.xlu0 %1787, %v1482
        %v1789 = vpop.permute.xlu0 %1788
        %1792 = vset.pattern.permute.xlu0 0
        %1793 = vperm.xlu0 %1792, %v1483
        %v1794 = vpop.permute.xlu0 %1793
        %1797 = vset.pattern.permute.xlu0 0
        %1798 = vperm.xlu0 %1797, %v1484
        %v1799 = vpop.permute.xlu0 %1798
        %1802 = vset.pattern.permute.xlu0 0
        %1803 = vperm.xlu0 %1802, %v1485
        %v1804 = vpop.permute.xlu0 %1803
        %1807 = vset.pattern.permute.xlu0 0
        %1808 = vperm.xlu0 %1807, %v1486
        %v1809 = vpop.permute.xlu0 %1808
        %1812 = vset.pattern.permute.xlu0 0
        %1813 = vperm.xlu0 %1812, %v1487
        %v1814 = vpop.permute.xlu0 %1813
        %1817 = vset.pattern.permute.xlu0 0
        %1818 = vperm.xlu0 %1817, %v1488
        %v1819 = vpop.permute.xlu0 %1818
        %1822 = vset.pattern.permute.xlu0 0
        %1823 = vperm.xlu0 %1822, %v1489
        %v1824 = vpop.permute.xlu0 %1823
        %1827 = vset.pattern.permute.xlu0 0
        %1828 = vperm.xlu0 %1827, %v1490
        %v1829 = vpop.permute.xlu0 %1828
        %1832 = vset.pattern.permute.xlu0 0
        %1833 = vperm.xlu0 %1832, %v1491
        %v1834 = vpop.permute.xlu0 %1833
        %1837 = vset.pattern.permute.xlu0 0
        %1838 = vperm.xlu0 %1837, %v1492
        %v1839 = vpop.permute.xlu0 %1838
        %1842 = vset.pattern.permute.xlu0 0
        %1843 = vperm.xlu0 %1842, %v1493
        %v1844 = vpop.permute.xlu0 %1843
        %1847 = vset.pattern.permute.xlu0 0
        %1848 = vperm.xlu0 %1847, %v1494
        %v1849 = vpop.permute.xlu0 %1848
        %1852 = vset.pattern.permute.xlu0 0
        %1853 = vperm.xlu0 %1852, %v1495
        %v1854 = vpop.permute.xlu0 %1853
        %1857 = vset.pattern.permute.xlu0 0
        %1858 = vperm.xlu0 %1857, %v1496
        %v1859 = vpop.permute.xlu0 %1858
        %1862 = vset.pattern.permute.xlu0 0
        %1863 = vperm.xlu0 %1862, %v1497
        %v1864 = vpop.permute.xlu0 %1863
        %1867 = vset.pattern.permute.xlu0 0
        %1868 = vperm.xlu0 %1867, %v1498
        %v1869 = vpop.permute.xlu0 %1868
        %1872 = vset.pattern.permute.xlu0 0
        %1873 = vperm.xlu0 %1872, %v1499
        %v1874 = vpop.permute.xlu0 %1873
        %1877 = vset.pattern.permute.xlu0 0
        %1878 = vperm.xlu0 %1877, %v1500
        %v1879 = vpop.permute.xlu0 %1878
        %1882 = vset.pattern.permute.xlu0 0
        %1883 = vperm.xlu0 %1882, %v1501
        %v1884 = vpop.permute.xlu0 %1883
        %1887 = vset.pattern.permute.xlu0 0
        %1888 = vperm.xlu0 %1887, %v1502
        %v1889 = vpop.permute.xlu0 %1888
        %1892 = vset.pattern.permute.xlu0 0
        %1893 = vperm.xlu0 %1892, %v1503
        %v1894 = vpop.permute.xlu0 %1893
        %1897 = vset.pattern.permute.xlu0 0
        %1898 = vperm.xlu0 %1897, %v1504
        %v1899 = vpop.permute.xlu0 %1898
        %1902 = vset.pattern.permute.xlu0 0
        %1903 = vperm.xlu0 %1902, %v1505
        %v1904 = vpop.permute.xlu0 %1903
        %1907 = vset.pattern.permute.xlu0 0
        %1908 = vperm.xlu0 %1907, %v1506
        %v1909 = vpop.permute.xlu0 %1908
        %1912 = vset.pattern.permute.xlu0 0
        %1913 = vperm.xlu0 %1912, %v1507
        %v1914 = vpop.permute.xlu0 %1913
        %1917 = vset.pattern.permute.xlu0 0
        %1918 = vperm.xlu0 %1917, %v1508
        %v1919 = vpop.permute.xlu0 %1918
        %1922 = vset.pattern.permute.xlu0 0
        %1923 = vperm.xlu0 %1922, %v1509
        %v1924 = vpop.permute.xlu0 %1923
        %1927 = vset.pattern.permute.xlu0 0
        %1928 = vperm.xlu0 %1927, %v1510
        %v1929 = vpop.permute.xlu0 %1928
        %vm1931 = vcmask 916480
        %v1933 = vsel %vm1931, %v1343, 0
        %v1936 = vsel %vm1931, %v1344, 0
        %v1939 = vsel %vm1931, %v1345, 0
        %v1942 = vsel %vm1931, %v1346, 0
        %v1945 = vsel %vm1931, %v1347, 0
        %v1948 = vsel %vm1931, %v1348, 0
        %v1951 = vsel %vm1931, %v1349, 0
        %v1954 = vsel %vm1931, %v1350, 0
        %v1957 = vsel %vm1931, %v1351, 0
        %v1960 = vsel %vm1931, %v1352, 0
        %v1963 = vsel %vm1931, %v1353, 0
        %v1966 = vsel %vm1931, %v1354, 0
        %v1969 = vsel %vm1931, %v1355, 0
        %v1972 = vsel %vm1931, %v1356, 0
        %v1975 = vsel %vm1931, %v1357, 0
        %v1978 = vsel %vm1931, %v1358, 0
        %v1981 = vsel %vm1931, %v1359, 0
        %v1984 = vsel %vm1931, %v1360, 0
        %v1987 = vsel %vm1931, %v1361, 0
        %v1990 = vsel %vm1931, %v1362, 0
        %v1993 = vsel %vm1931, %v1363, 0
        %v1996 = vsel %vm1931, %v1364, 0
        %v1999 = vsel %vm1931, %v1365, 0
        %v2002 = vsel %vm1931, %v1366, 0
        %v2005 = vsel %vm1931, %v1367, 0
        %v2008 = vsel %vm1931, %v1368, 0
        %v2011 = vsel %vm1931, %v1369, 0
        %v2014 = vsel %vm1931, %v1370, 0
        %v2017 = vsel %vm1931, %v1371, 0
        %v2020 = vsel %vm1931, %v1372, 0
        %v2023 = vsel %vm1931, %v1373, 0
        %v2026 = vsel %vm1931, %v1374, 0
        %v2029 = vsel %vm1931, %v1375, 0
        %v2032 = vsel %vm1931, %v1376, 0
        %v2035 = vsel %vm1931, %v1377, 0
        %v2038 = vsel %vm1931, %v1378, 0
        %v2041 = vsel %vm1931, %v1379, 0
        %v2044 = vsel %vm1931, %v1380, 0
        %v2047 = vsel %vm1931, %v1381, 0
        %v2050 = vsel %vm1931, %v1382, 0
        %v2053 = vsel %vm1931, %v1383, 0
        %v2056 = vsel %vm1931, %v1384, 0
        %v2059 = vsel %vm1931, %v1385, 0
        %v2062 = vsel %vm1931, %v1386, 0
        %v2065 = vsel %vm1931, %v1387, 0
        %v2068 = vsel %vm1931, %v1388, 0
        %v2071 = vsel %vm1931, %v1389, 0
        %v2074 = vsel %vm1931, %v1390, 0
        %v2077 = vsel %vm1931, %v1391, 0
        %v2080 = vsel %vm1931, %v1392, 0
        %v2083 = vsel %vm1931, %v1393, 0
        %v2086 = vsel %vm1931, %v1394, 0
        %v2089 = vsel %vm1931, %v1395, 0
        %v2092 = vsel %vm1931, %v1396, 0
        %v2095 = vsel %vm1931, %v1397, 0
        %v2098 = vsel %vm1931, %v1398, 0
        %v2101 = vsel %vm1931, %v1399, 0
        %v2104 = vsel %vm1931, %v1400, 0
        %v2107 = vsel %vm1931, %v1401, 0
        %v2110 = vsel %vm1931, %v1402, 0
        %v2113 = vsel %vm1931, %v1403, 0
        %v2116 = vsel %vm1931, %v1404, 0
        %v2119 = vsel %vm1931, %v1405, 0
        %v2122 = vsel %vm1931, %v1406, 0
        %v2125 = vsel %vm1931, %v1407, 0
        %v2128 = vsel %vm1931, %v1408, 0
        %v2131 = vsel %vm1931, %v1409, 0
        %v2134 = vsel %vm1931, %v1410, 0
        %v2137 = vsel %vm1931, %v1411, 0
        %v2140 = vsel %vm1931, %v1412, 0
        %v2143 = vsel %vm1931, %v1413, 0
        %v2146 = vsel %vm1931, %v1414, 0
        %v2149 = vsel %vm1931, %v1415, 0
        %v2152 = vsel %vm1931, %v1416, 0
        %v2155 = vsel %vm1931, %v1417, 0
        %v2158 = vsel %vm1931, %v1418, 0
        %v2161 = vsel %vm1931, %v1419, 0
        %v2164 = vsel %vm1931, %v1420, 0
        %v2167 = vsel %vm1931, %v1421, 0
        %v2170 = vsel %vm1931, %v1422, 0
        %v2173 = vsel %vm1931, %v1423, 0
        %v2176 = vsel %vm1931, %v1424, 0
        %v2179 = vsel %vm1931, %v1425, 0
        %v2182 = vsel %vm1931, %v1426, 0
        %2184 = vmatprep.subr.mxu0 0.0
        %2185 = vmatpush1.msra.mxu0 %v1275
        %2186 = vmatprep.subr.mxu0 0.0
        %2187 = vmatpush1.msra.mxu0 %v1280
        %2188 = vmatprep.subr.mxu0 0.0
        %2189 = vmatpush1.msra.mxu0 %v1285
        %2190 = vmatprep.subr.mxu0 0.0
        %2191 = vmatpush1.msra.mxu0 %v1290
        %2192 = vmatprep.subr.mxu0 0.0
        %2193 = vmatpush1.msra.mxu0 %v1295
        %2194 = vmatprep.subr.mxu0 0.0
        %2195 = vmatpush1.msra.mxu0 %v1300
        %2196 = vmatprep.subr.mxu0 0.0
        %2197 = vmatpush1.msra.mxu0 %v1305
        %2198 = vmatprep.subr.mxu0 0.0
        %2199 = vmatpush1.msra.mxu0 %v1310
        %2200 = vmatprep.subr.mxu0 0.0
        %2201 = vmatpush1.msra.mxu0 %v1315
        %2202 = vmatprep.subr.mxu0 0.0
        %2203 = vmatpush1.msra.mxu0 %v1320
        %2204 = vmatprep.subr.mxu0 0.0
        %2205 = vmatpush1.msra.mxu0 %v1325
        %2206 = vmatprep.subr.mxu0 0.0
        %2207 = vmatpush1.msra.mxu0 %v1330
        %2208 = vmatprep.subr.mxu0 0.0
        %2209 = vmatpush1.msra.mxu0 %v1335
        %2210 = vmatprep.subr.mxu0 0.0
        %2211 = vmatpush1.msra.mxu0 %v1340
        %2212 = vmatprep.subr.mxu0 0.0
        %2213 = vmatpush1.msra.mxu0 0.0
        %2214 = vmatprep.subr.mxu0 0.0
        %2215 = vmatpush1.msra.mxu0 0.0
        %2216 = vmatprep.subr.mxu0 0.0
        %2217 = vmatpush1.msra.mxu0 0.0
        %2218 = vmatprep.subr.mxu0 0.0
        %2219 = vmatpush1.msra.mxu0 0.0
        %2220 = vmatprep.subr.mxu0 0.0
        %2221 = vmatpush1.msra.mxu0 0.0
        %2222 = vmatprep.subr.mxu0 0.0
        %2223 = vmatpush1.msra.mxu0 0.0
        %2224 = vmatprep.subr.mxu0 0.0
        %2225 = vmatpush1.msra.mxu0 0.0
        %2226 = vmatprep.subr.mxu0 0.0
        %2227 = vmatpush1.msra.mxu0 0.0
        %2228 = vmatprep.subr.mxu0 0.0
        %2229 = vmatpush1.msra.mxu0 0.0
        %2230 = vmatprep.subr.mxu0 0.0
        %2231 = vmatpush1.msra.mxu0 0.0
        %2232 = vmatprep.subr.mxu0 0.0
        %2233 = vmatpush1.msra.mxu0 0.0
        %2234 = vmatprep.subr.mxu0 0.0
        %2235 = vmatpush1.msra.mxu0 0.0
        %2236 = vmatprep.subr.mxu0 0.0
        %2237 = vmatpush1.msra.mxu0 0.0
        %2238 = vmatprep.subr.mxu0 0.0
        %2239 = vmatpush1.msra.mxu0 0.0
        %2240 = vmatprep.subr.mxu0 0.0
        %2241 = vmatpush1.msra.mxu0 0.0
        %2242 = vmatprep.subr.mxu0 0.0
        %2243 = vmatpush1.msra.mxu0 0.0
        %2244 = vmatprep.subr.mxu0 0.0
        %2245 = vmatpush1.msra.mxu0 0.0
        %2246 = vmatprep.subr.mxu0 0.0
        %2247 = vmatpush1.msra.mxu0 0.0
        %2248 = vmatprep.mubr.f32.mxu0 0.0
        %2249 = vmatmul.mubr.f32.gmra.mrb[0].mxu0 %v1933
        %v2250 = vpop.f32.mrb[0].mxu0
        %v2251 = vadd.f32 %v1514, %v2250
        %v2252 = vpop.f32.mrb[0].mxu0
        %2253 = vmatprep.mubr.f32.mxu0 0.0
        %2254 = vmatmul.mubr.f32.gmra.mrb[0].mxu0 %v1936
        %v2255 = vpop.f32.mrb[0].mxu0
        %v2256 = vadd.f32 %v1519, %v2255
        %v2257 = vpop.f32.mrb[0].mxu0
        %2258 = vmatprep.mubr.f32.mxu0 0.0
        %2259 = vmatmul.mubr.f32.gmra.mrb[0].mxu0 %v1939
        %v2260 = vpop.f32.mrb[0].mxu0
        %v2261 = vadd.f32 %v1524, %v2260
        %v2262 = vpop.f32.mrb[0].mxu0
        %2263 = vmatprep.mubr.f32.mxu0 0.0
        %2264 = vmatmul.mubr.f32.gmra.mrb[0].mxu0 %v1942
        %v2265 = vpop.f32.mrb[0].mxu0
        %v2266 = vadd.f32 %v1529, %v2265
        %v2267 = vpop.f32.mrb[0].mxu0
        %2268 = vmatprep.mubr.f32.mxu0 0.0
        %2269 = vmatmul.mubr.f32.gmra.mrb[0].mxu0 %v1945
        %v2270 = vpop.f32.mrb[0].mxu0
        %v2271 = vadd.f32 %v1534, %v2270
        %v2272 = vpop.f32.mrb[0].mxu0
        %2273 = vmatprep.mubr.f32.mxu0 0.0
        %2274 = vmatmul.mubr.f32.gmra.mrb[0].mxu0 %v1948
        %v2275 = vpop.f32.mrb[0].mxu0
        %v2276 = vadd.f32 %v1539, %v2275
        %v2277 = vpop.f32.mrb[0].mxu0
        %2278 = vmatprep.mubr.f32.mxu0 0.0
        %2279 = vmatmul.mubr.f32.gmra.mrb[0].mxu0 %v1951
        %v2280 = vpop.f32.mrb[0].mxu0
        %v2281 = vadd.f32 %v1544, %v2280
        %v2282 = vpop.f32.mrb[0].mxu0
        %2283 = vmatprep.mubr.f32.mxu0 0.0
        %2284 = vmatmul.mubr.f32.gmra.mrb[0].mxu0 %v1954
        %v2285 = vpop.f32.mrb[0].mxu0
        %v2286 = vadd.f32 %v1549, %v2285
        %v2287 = vpop.f32.mrb[0].mxu0
        %2288 = vmatprep.mubr.f32.mxu0 0.0
        %2289 = vmatmul.mubr.f32.gmra.mrb[0].mxu0 %v1957
        %v2290 = vpop.f32.mrb[0].mxu0
        %v2291 = vadd.f32 %v1554, %v2290
        %v2292 = vpop.f32.mrb[0].mxu0
        %2293 = vmatprep.mubr.f32.mxu0 0.0
        %2294 = vmatmul.mubr.f32.gmra.mrb[0].mxu0 %v1960
        %v2295 = vpop.f32.mrb[0].mxu0
        %v2296 = vadd.f32 %v1559, %v2295
        %v2297 = vpop.f32.mrb[0].mxu0
        %2298 = vmatprep.mubr.f32.mxu0 0.0
        %2299 = vmatmul.mubr.f32.gmra.mrb[0].mxu0 %v1963
        %v2300 = vpop.f32.mrb[0].mxu0
        %v2301 = vadd.f32 %v1564, %v2300
        %v2302 = vpop.f32.mrb[0].mxu0
        %2303 = vmatprep.mubr.f32.mxu0 0.0
        %2304 = vmatmul.mubr.f32.gmra.mrb[0].mxu0 %v1966
        %v2305 = vpop.f32.mrb[0].mxu0
        %v2306 = vadd.f32 %v1569, %v2305
        %v2307 = vpop.f32.mrb[0].mxu0
        %2308 = vmatprep.mubr.f32.mxu0 0.0
        %2309 = vmatmul.mubr.f32.gmra.mrb[0].mxu0 %v1969
        %v2310 = vpop.f32.mrb[0].mxu0
        %v2311 = vadd.f32 %v1574, %v2310
        %v2312 = vpop.f32.mrb[0].mxu0
        %2313 = vmatprep.mubr.f32.mxu0 0.0
        %2314 = vmatmul.mubr.f32.gmra.mrb[0].mxu0 %v1972
        %v2315 = vpop.f32.mrb[0].mxu0
        %v2316 = vadd.f32 %v1579, %v2315
        %v2317 = vpop.f32.mrb[0].mxu0
        %2318 = vmatprep.mubr.f32.mxu0 0.0
        %2319 = vmatmul.mubr.f32.gmra.mrb[0].mxu0 %v1975
        %v2320 = vpop.f32.mrb[0].mxu0
        %v2321 = vadd.f32 %v1584, %v2320
        %v2322 = vpop.f32.mrb[0].mxu0
        %2323 = vmatprep.mubr.f32.mxu0 0.0
        %2324 = vmatmul.mubr.f32.gmra.mrb[0].mxu0 %v1978
        %v2325 = vpop.f32.mrb[0].mxu0
        %v2326 = vadd.f32 %v1589, %v2325
        %v2327 = vpop.f32.mrb[0].mxu0
        %2328 = vmatprep.mubr.f32.mxu0 0.0
        %2329 = vmatmul.mubr.f32.gmra.mrb[0].mxu0 %v1981
        %v2330 = vpop.f32.mrb[0].mxu0
        %v2331 = vadd.f32 %v1594, %v2330
        %v2332 = vpop.f32.mrb[0].mxu0
        %2333 = vmatprep.mubr.f32.mxu0 0.0
        %2334 = vmatmul.mubr.f32.gmra.mrb[0].mxu0 %v1984
        %v2335 = vpop.f32.mrb[0].mxu0
        %v2336 = vadd.f32 %v1599, %v2335
        %v2337 = vpop.f32.mrb[0].mxu0
        %2338 = vmatprep.mubr.f32.mxu0 0.0
        %2339 = vmatmul.mubr.f32.gmra.mrb[0].mxu0 %v1987
        %v2340 = vpop.f32.mrb[0].mxu0
        %v2341 = vadd.f32 %v1604, %v2340
        %v2342 = vpop.f32.mrb[0].mxu0
        %2343 = vmatprep.mubr.f32.mxu0 0.0
        %2344 = vmatmul.mubr.f32.gmra.mrb[0].mxu0 %v1990
        %v2345 = vpop.f32.mrb[0].mxu0
        %v2346 = vadd.f32 %v1609, %v2345
        %v2347 = vpop.f32.mrb[0].mxu0
        %2348 = vmatprep.mubr.f32.mxu0 0.0
        %2349 = vmatmul.mubr.f32.gmra.mrb[0].mxu0 %v1993
        %v2350 = vpop.f32.mrb[0].mxu0
        %v2351 = vadd.f32 %v1614, %v2350
        %v2352 = vpop.f32.mrb[0].mxu0
        %2353 = vmatprep.mubr.f32.mxu0 0.0
        %2354 = vmatmul.mubr.f32.gmra.mrb[0].mxu0 %v1996
        %v2355 = vpop.f32.mrb[0].mxu0
        %v2356 = vadd.f32 %v1619, %v2355
        %v2357 = vpop.f32.mrb[0].mxu0
        %2358 = vmatprep.mubr.f32.mxu0 0.0
        %2359 = vmatmul.mubr.f32.gmra.mrb[0].mxu0 %v1999
        %v2360 = vpop.f32.mrb[0].mxu0
        %v2361 = vadd.f32 %v1624, %v2360
        %v2362 = vpop.f32.mrb[0].mxu0
        %2363 = vmatprep.mubr.f32.mxu0 0.0
        %2364 = vmatmul.mubr.f32.gmra.mrb[0].mxu0 %v2002
        %v2365 = vpop.f32.mrb[0].mxu0
        %v2366 = vadd.f32 %v1629, %v2365
        %v2367 = vpop.f32.mrb[0].mxu0
        %2368 = vmatprep.mubr.f32.mxu0 0.0
        %2369 = vmatmul.mubr.f32.gmra.mrb[0].mxu0 %v2005
        %v2370 = vpop.f32.mrb[0].mxu0
        %v2371 = vadd.f32 %v1634, %v2370
        %v2372 = vpop.f32.mrb[0].mxu0
        %2373 = vmatprep.mubr.f32.mxu0 0.0
        %2374 = vmatmul.mubr.f32.gmra.mrb[0].mxu0 %v2008
        %v2375 = vpop.f32.mrb[0].mxu0
        %v2376 = vadd.f32 %v1639, %v2375
        %v2377 = vpop.f32.mrb[0].mxu0
        %2378 = vmatprep.mubr.f32.mxu0 0.0
        %2379 = vmatmul.mubr.f32.gmra.mrb[0].mxu0 %v2011
        %v2380 = vpop.f32.mrb[0].mxu0
        %v2381 = vadd.f32 %v1644, %v2380
        %v2382 = vpop.f32.mrb[0].mxu0
        %2383 = vmatprep.mubr.f32.mxu0 0.0
        %2384 = vmatmul.mubr.f32.gmra.mrb[0].mxu0 %v2014
        %v2385 = vpop.f32.mrb[0].mxu0
        %v2386 = vadd.f32 %v1649, %v2385
        %v2387 = vpop.f32.mrb[0].mxu0
        %2388 = vmatprep.mubr.f32.mxu0 0.0
        %2389 = vmatmul.mubr.f32.gmra.mrb[0].mxu0 %v2017
        %v2390 = vpop.f32.mrb[0].mxu0
        %v2391 = vadd.f32 %v1654, %v2390
        %v2392 = vpop.f32.mrb[0].mxu0
        %2393 = vmatprep.mubr.f32.mxu0 0.0
        %2394 = vmatmul.mubr.f32.gmra.mrb[0].mxu0 %v2020
        %v2395 = vpop.f32.mrb[0].mxu0
        %v2396 = vadd.f32 %v1659, %v2395
        %v2397 = vpop.f32.mrb[0].mxu0
        %2398 = vmatprep.mubr.f32.mxu0 0.0
        %2399 = vmatmul.mubr.f32.gmra.mrb[0].mxu0 %v2023
        %v2400 = vpop.f32.mrb[0].mxu0
        %v2401 = vadd.f32 %v1664, %v2400
        %v2402 = vpop.f32.mrb[0].mxu0
        %2403 = vmatprep.mubr.f32.mxu0 0.0
        %2404 = vmatmul.mubr.f32.gmra.mrb[0].mxu0 %v2026
        %v2405 = vpop.f32.mrb[0].mxu0
        %v2406 = vadd.f32 %v1669, %v2405
        %v2407 = vpop.f32.mrb[0].mxu0
        %2408 = vmatprep.mubr.f32.mxu0 0.0
        %2409 = vmatmul.mubr.f32.gmra.mrb[0].mxu0 %v2029
        %v2410 = vpop.f32.mrb[0].mxu0
        %v2411 = vadd.f32 %v1674, %v2410
        %v2412 = vpop.f32.mrb[0].mxu0
        %2413 = vmatprep.mubr.f32.mxu0 0.0
        %2414 = vmatmul.mubr.f32.gmra.mrb[0].mxu0 %v2032
        %v2415 = vpop.f32.mrb[0].mxu0
        %v2416 = vadd.f32 %v1679, %v2415
        %v2417 = vpop.f32.mrb[0].mxu0
        %2418 = vmatprep.mubr.f32.mxu0 0.0
        %2419 = vmatmul.mubr.f32.gmra.mrb[0].mxu0 %v2035
        %v2420 = vpop.f32.mrb[0].mxu0
        %v2421 = vadd.f32 %v1684, %v2420
        %v2422 = vpop.f32.mrb[0].mxu0
        %2423 = vmatprep.mubr.f32.mxu0 0.0
        %2424 = vmatmul.mubr.f32.gmra.mrb[0].mxu0 %v2038
        %v2425 = vpop.f32.mrb[0].mxu0
        %v2426 = vadd.f32 %v1689, %v2425
        %v2427 = vpop.f32.mrb[0].mxu0
        %2428 = vmatprep.mubr.f32.mxu0 0.0
        %2429 = vmatmul.mubr.f32.gmra.mrb[0].mxu0 %v2041
        %v2430 = vpop.f32.mrb[0].mxu0
        %v2431 = vadd.f32 %v1694, %v2430
        %v2432 = vpop.f32.mrb[0].mxu0
        %2433 = vmatprep.mubr.f32.mxu0 0.0
        %2434 = vmatmul.mubr.f32.gmra.mrb[0].mxu0 %v2044
        %v2435 = vpop.f32.mrb[0].mxu0
        %v2436 = vadd.f32 %v1699, %v2435
        %v2437 = vpop.f32.mrb[0].mxu0
        %2438 = vmatprep.mubr.f32.mxu0 0.0
        %2439 = vmatmul.mubr.f32.gmra.mrb[0].mxu0 %v2047
        %v2440 = vpop.f32.mrb[0].mxu0
        %v2441 = vadd.f32 %v1704, %v2440
        %v2442 = vpop.f32.mrb[0].mxu0
        %2443 = vmatprep.mubr.f32.mxu0 0.0
        %2444 = vmatmul.mubr.f32.gmra.mrb[0].mxu0 %v2050
        %v2445 = vpop.f32.mrb[0].mxu0
        %v2446 = vadd.f32 %v1709, %v2445
        %v2447 = vpop.f32.mrb[0].mxu0
        %2448 = vmatprep.mubr.f32.mxu0 0.0
        %2449 = vmatmul.mubr.f32.gmra.mrb[0].mxu0 %v2053
        %v2450 = vpop.f32.mrb[0].mxu0
        %v2451 = vadd.f32 %v1714, %v2450
        %v2452 = vpop.f32.mrb[0].mxu0
        %2453 = vmatprep.mubr.f32.mxu0 0.0
        %2454 = vmatmul.mubr.f32.gmra.mrb[0].mxu0 %v2056
        %v2455 = vpop.f32.mrb[0].mxu0
        %v2456 = vadd.f32 %v1719, %v2455
        %v2457 = vpop.f32.mrb[0].mxu0
        %2458 = vmatprep.mubr.f32.mxu0 0.0
        %2459 = vmatmul.mubr.f32.gmra.mrb[0].mxu0 %v2059
        %v2460 = vpop.f32.mrb[0].mxu0
        %v2461 = vadd.f32 %v1724, %v2460
        %v2462 = vpop.f32.mrb[0].mxu0
        %2463 = vmatprep.mubr.f32.mxu0 0.0
        %2464 = vmatmul.mubr.f32.gmra.mrb[0].mxu0 %v2062
        %v2465 = vpop.f32.mrb[0].mxu0
        %v2466 = vadd.f32 %v1729, %v2465
        %v2467 = vpop.f32.mrb[0].mxu0
        %2468 = vmatprep.mubr.f32.mxu0 0.0
        %2469 = vmatmul.mubr.f32.gmra.mrb[0].mxu0 %v2065
        %v2470 = vpop.f32.mrb[0].mxu0
        %v2471 = vadd.f32 %v1734, %v2470
        %v2472 = vpop.f32.mrb[0].mxu0
        %2473 = vmatprep.mubr.f32.mxu0 0.0
        %2474 = vmatmul.mubr.f32.gmra.mrb[0].mxu0 %v2068
        %v2475 = vpop.f32.mrb[0].mxu0
        %v2476 = vadd.f32 %v1739, %v2475
        %v2477 = vpop.f32.mrb[0].mxu0
        %2478 = vmatprep.mubr.f32.mxu0 0.0
        %2479 = vmatmul.mubr.f32.gmra.mrb[0].mxu0 %v2071
        %v2480 = vpop.f32.mrb[0].mxu0
        %v2481 = vadd.f32 %v1744, %v2480
        %v2482 = vpop.f32.mrb[0].mxu0
        %2483 = vmatprep.mubr.f32.mxu0 0.0
        %2484 = vmatmul.mubr.f32.gmra.mrb[0].mxu0 %v2074
        %v2485 = vpop.f32.mrb[0].mxu0
        %v2486 = vadd.f32 %v1749, %v2485
        %v2487 = vpop.f32.mrb[0].mxu0
        %2488 = vmatprep.mubr.f32.mxu0 0.0
        %2489 = vmatmul.mubr.f32.gmra.mrb[0].mxu0 %v2077
        %v2490 = vpop.f32.mrb[0].mxu0
        %v2491 = vadd.f32 %v1754, %v2490
        %v2492 = vpop.f32.mrb[0].mxu0
        %2493 = vmatprep.mubr.f32.mxu0 0.0
        %2494 = vmatmul.mubr.f32.gmra.mrb[0].mxu0 %v2080
        %v2495 = vpop.f32.mrb[0].mxu0
        %v2496 = vadd.f32 %v1759, %v2495
        %v2497 = vpop.f32.mrb[0].mxu0
        %2498 = vmatprep.mubr.f32.mxu0 0.0
        %2499 = vmatmul.mubr.f32.gmra.mrb[0].mxu0 %v2083
        %v2500 = vpop.f32.mrb[0].mxu0
        %v2501 = vadd.f32 %v1764, %v2500
        %v2502 = vpop.f32.mrb[0].mxu0
        %2503 = vmatprep.mubr.f32.mxu0 0.0
        %2504 = vmatmul.mubr.f32.gmra.mrb[0].mxu0 %v2086
        %v2505 = vpop.f32.mrb[0].mxu0
        %v2506 = vadd.f32 %v1769, %v2505
        %v2507 = vpop.f32.mrb[0].mxu0
        %2508 = vmatprep.mubr.f32.mxu0 0.0
        %2509 = vmatmul.mubr.f32.gmra.mrb[0].mxu0 %v2089
        %v2510 = vpop.f32.mrb[0].mxu0
        %v2511 = vadd.f32 %v1774, %v2510
        %v2512 = vpop.f32.mrb[0].mxu0
        %2513 = vmatprep.mubr.f32.mxu0 0.0
        %2514 = vmatmul.mubr.f32.gmra.mrb[0].mxu0 %v2092
        %v2515 = vpop.f32.mrb[0].mxu0
        %v2516 = vadd.f32 %v1779, %v2515
        %v2517 = vpop.f32.mrb[0].mxu0
        %2518 = vmatprep.mubr.f32.mxu0 0.0
        %2519 = vmatmul.mubr.f32.gmra.mrb[0].mxu0 %v2095
        %v2520 = vpop.f32.mrb[0].mxu0
        %v2521 = vadd.f32 %v1784, %v2520
        %v2522 = vpop.f32.mrb[0].mxu0
        %2523 = vmatprep.mubr.f32.mxu0 0.0
        %2524 = vmatmul.mubr.f32.gmra.mrb[0].mxu0 %v2098
        %v2525 = vpop.f32.mrb[0].mxu0
        %v2526 = vadd.f32 %v1789, %v2525
        %v2527 = vpop.f32.mrb[0].mxu0
        %2528 = vmatprep.mubr.f32.mxu0 0.0
        %2529 = vmatmul.mubr.f32.gmra.mrb[0].mxu0 %v2101
        %v2530 = vpop.f32.mrb[0].mxu0
        %v2531 = vadd.f32 %v1794, %v2530
        %v2532 = vpop.f32.mrb[0].mxu0
        %2533 = vmatprep.mubr.f32.mxu0 0.0
        %2534 = vmatmul.mubr.f32.gmra.mrb[0].mxu0 %v2104
        %v2535 = vpop.f32.mrb[0].mxu0
        %v2536 = vadd.f32 %v1799, %v2535
        %v2537 = vpop.f32.mrb[0].mxu0
        %2538 = vmatprep.mubr.f32.mxu0 0.0
        %2539 = vmatmul.mubr.f32.gmra.mrb[0].mxu0 %v2107
        %v2540 = vpop.f32.mrb[0].mxu0
        %v2541 = vadd.f32 %v1804, %v2540
        %v2542 = vpop.f32.mrb[0].mxu0
        %2543 = vmatprep.mubr.f32.mxu0 0.0
        %2544 = vmatmul.mubr.f32.gmra.mrb[0].mxu0 %v2110
        %v2545 = vpop.f32.mrb[0].mxu0
        %v2546 = vadd.f32 %v1809, %v2545
        %v2547 = vpop.f32.mrb[0].mxu0
        %2548 = vmatprep.mubr.f32.mxu0 0.0
        %2549 = vmatmul.mubr.f32.gmra.mrb[0].mxu0 %v2113
        %v2550 = vpop.f32.mrb[0].mxu0
        %v2551 = vadd.f32 %v1814, %v2550
        %v2552 = vpop.f32.mrb[0].mxu0
        %2553 = vmatprep.mubr.f32.mxu0 0.0
        %2554 = vmatmul.mubr.f32.gmra.mrb[0].mxu0 %v2116
        %v2555 = vpop.f32.mrb[0].mxu0
        %v2556 = vadd.f32 %v1819, %v2555
        %v2557 = vpop.f32.mrb[0].mxu0
        %2558 = vmatprep.mubr.f32.mxu0 0.0
        %2559 = vmatmul.mubr.f32.gmra.mrb[0].mxu0 %v2119
        %v2560 = vpop.f32.mrb[0].mxu0
        %v2561 = vadd.f32 %v1824, %v2560
        %v2562 = vpop.f32.mrb[0].mxu0
        %2563 = vmatprep.mubr.f32.mxu0 0.0
        %2564 = vmatmul.mubr.f32.gmra.mrb[0].mxu0 %v2122
        %v2565 = vpop.f32.mrb[0].mxu0
        %v2566 = vadd.f32 %v1829, %v2565
        %v2567 = vpop.f32.mrb[0].mxu0
        %2568 = vmatprep.mubr.f32.mxu0 0.0
        %2569 = vmatmul.mubr.f32.gmra.mrb[0].mxu0 %v2125
        %v2570 = vpop.f32.mrb[0].mxu0
        %v2571 = vadd.f32 %v1834, %v2570
        %v2572 = vpop.f32.mrb[0].mxu0
        %2573 = vmatprep.mubr.f32.mxu0 0.0
        %2574 = vmatmul.mubr.f32.gmra.mrb[0].mxu0 %v2128
        %v2575 = vpop.f32.mrb[0].mxu0
        %v2576 = vadd.f32 %v1839, %v2575
        %v2577 = vpop.f32.mrb[0].mxu0
        %2578 = vmatprep.mubr.f32.mxu0 0.0
        %2579 = vmatmul.mubr.f32.gmra.mrb[0].mxu0 %v2131
        %v2580 = vpop.f32.mrb[0].mxu0
        %v2581 = vadd.f32 %v1844, %v2580
        %v2582 = vpop.f32.mrb[0].mxu0
        %2583 = vmatprep.mubr.f32.mxu0 0.0
        %2584 = vmatmul.mubr.f32.gmra.mrb[0].mxu0 %v2134
        %v2585 = vpop.f32.mrb[0].mxu0
        %v2586 = vadd.f32 %v1849, %v2585
        %v2587 = vpop.f32.mrb[0].mxu0
        %2588 = vmatprep.mubr.f32.mxu0 0.0
        %2589 = vmatmul.mubr.f32.gmra.mrb[0].mxu0 %v2137
        %v2590 = vpop.f32.mrb[0].mxu0
        %v2591 = vadd.f32 %v1854, %v2590
        %v2592 = vpop.f32.mrb[0].mxu0
        %2593 = vmatprep.mubr.f32.mxu0 0.0
        %2594 = vmatmul.mubr.f32.gmra.mrb[0].mxu0 %v2140
        %v2595 = vpop.f32.mrb[0].mxu0
        %v2596 = vadd.f32 %v1859, %v2595
        %v2597 = vpop.f32.mrb[0].mxu0
        %2598 = vmatprep.mubr.f32.mxu0 0.0
        %2599 = vmatmul.mubr.f32.gmra.mrb[0].mxu0 %v2143
        %v2600 = vpop.f32.mrb[0].mxu0
        %v2601 = vadd.f32 %v1864, %v2600
        %v2602 = vpop.f32.mrb[0].mxu0
        %2603 = vmatprep.mubr.f32.mxu0 0.0
        %2604 = vmatmul.mubr.f32.gmra.mrb[0].mxu0 %v2146
        %v2605 = vpop.f32.mrb[0].mxu0
        %v2606 = vadd.f32 %v1869, %v2605
        %v2607 = vpop.f32.mrb[0].mxu0
        %2608 = vmatprep.mubr.f32.mxu0 0.0
        %2609 = vmatmul.mubr.f32.gmra.mrb[0].mxu0 %v2149
        %v2610 = vpop.f32.mrb[0].mxu0
        %v2611 = vadd.f32 %v1874, %v2610
        %v2612 = vpop.f32.mrb[0].mxu0
        %2613 = vmatprep.mubr.f32.mxu0 0.0
        %2614 = vmatmul.mubr.f32.gmra.mrb[0].mxu0 %v2152
        %v2615 = vpop.f32.mrb[0].mxu0
        %v2616 = vadd.f32 %v1879, %v2615
        %v2617 = vpop.f32.mrb[0].mxu0
        %2618 = vmatprep.mubr.f32.mxu0 0.0
        %2619 = vmatmul.mubr.f32.gmra.mrb[0].mxu0 %v2155
        %v2620 = vpop.f32.mrb[0].mxu0
        %v2621 = vadd.f32 %v1884, %v2620
        %v2622 = vpop.f32.mrb[0].mxu0
        %2623 = vmatprep.mubr.f32.mxu0 0.0
        %2624 = vmatmul.mubr.f32.gmra.mrb[0].mxu0 %v2158
        %v2625 = vpop.f32.mrb[0].mxu0
        %v2626 = vadd.f32 %v1889, %v2625
        %v2627 = vpop.f32.mrb[0].mxu0
        %2628 = vmatprep.mubr.f32.mxu0 0.0
        %2629 = vmatmul.mubr.f32.gmra.mrb[0].mxu0 %v2161
        %v2630 = vpop.f32.mrb[0].mxu0
        %v2631 = vadd.f32 %v1894, %v2630
        %v2632 = vpop.f32.mrb[0].mxu0
        %2633 = vmatprep.mubr.f32.mxu0 0.0
        %2634 = vmatmul.mubr.f32.gmra.mrb[0].mxu0 %v2164
        %v2635 = vpop.f32.mrb[0].mxu0
        %v2636 = vadd.f32 %v1899, %v2635
        %v2637 = vpop.f32.mrb[0].mxu0
        %2638 = vmatprep.mubr.f32.mxu0 0.0
        %2639 = vmatmul.mubr.f32.gmra.mrb[0].mxu0 %v2167
        %v2640 = vpop.f32.mrb[0].mxu0
        %v2641 = vadd.f32 %v1904, %v2640
        %v2642 = vpop.f32.mrb[0].mxu0
        %2643 = vmatprep.mubr.f32.mxu0 0.0
        %2644 = vmatmul.mubr.f32.gmra.mrb[0].mxu0 %v2170
        %v2645 = vpop.f32.mrb[0].mxu0
        %v2646 = vadd.f32 %v1909, %v2645
        %v2647 = vpop.f32.mrb[0].mxu0
        %2648 = vmatprep.mubr.f32.mxu0 0.0
        %2649 = vmatmul.mubr.f32.gmra.mrb[0].mxu0 %v2173
        %v2650 = vpop.f32.mrb[0].mxu0
        %v2651 = vadd.f32 %v1914, %v2650
        %v2652 = vpop.f32.mrb[0].mxu0
        %2653 = vmatprep.mubr.f32.mxu0 0.0
        %2654 = vmatmul.mubr.f32.gmra.mrb[0].mxu0 %v2176
        %v2655 = vpop.f32.mrb[0].mxu0
        %v2656 = vadd.f32 %v1919, %v2655
        %v2657 = vpop.f32.mrb[0].mxu0
        %2658 = vmatprep.mubr.f32.mxu0 0.0
        %2659 = vmatmul.mubr.f32.gmra.mrb[0].mxu0 %v2179
        %v2660 = vpop.f32.mrb[0].mxu0
        %v2661 = vadd.f32 %v1924, %v2660
        %v2662 = vpop.f32.mrb[0].mxu0
        %2663 = vmatprep.mubr.f32.mxu0 0.0
        %2664 = vmatmul.mubr.f32.gmra.mrb[0].mxu0 %v2182
        %v2665 = vpop.f32.mrb[0].mxu0
        %v2666 = vadd.f32 %v1929, %v2665
        %v2667 = vpop.f32.mrb[0].mxu0
        %2668 = vdwg.mxu0
        %2669 = vst [vmem:[%s712] sm:$0xff] %v2251
        %2670 = vst [vmem:[%s712 + $0x8] sm:$0xff] %v2256
        %2671 = vst [vmem:[%s712 + $0x10] sm:$0xff] %v2261
        %2672 = vst [vmem:[%s712 + $0x18] sm:$0xff] %v2266
        %2673 = vst [vmem:[%s712 + $0x20] sm:$0xff] %v2271
        %2674 = vst [vmem:[%s712 + $0x28] sm:$0xff] %v2276
        %2675 = vst [vmem:[%s712 + $0x30] sm:$0xff] %v2281
        %2676 = vst [vmem:[%s712 + $0x38] sm:$0xff] %v2286
        %2677 = vst [vmem:[%s712 + $0x40] sm:$0xff] %v2291
        %2678 = vst [vmem:[%s712 + $0x48] sm:$0xff] %v2296
        %2679 = vst [vmem:[%s712 + $0x50] sm:$0xff] %v2301
        %2680 = vst [vmem:[%s712 + $0x58] sm:$0xff] %v2306
        %2681 = vst [vmem:[%s712 + $0x60] sm:$0xff] %v2311
        %2682 = vst [vmem:[%s712 + $0x68] sm:$0xff] %v2316
        %2683 = vst [vmem:[%s712 + $0x70] sm:$0xff] %v2321
        %2684 = vst [vmem:[%s712 + $0x78] sm:$0xff] %v2326
        %2685 = vst [vmem:[%s712 + $0x80] sm:$0xff] %v2331
        %2686 = vst [vmem:[%s712 + $0x88] sm:$0xff] %v2336
        %2687 = vst [vmem:[%s712 + $0x90] sm:$0xff] %v2341
        %2688 = vst [vmem:[%s712 + $0x98] sm:$0xff] %v2346
        %2689 = vst [vmem:[%s712 + $0xa0] sm:$0xff] %v2351
        %2690 = vst [vmem:[%s712 + $0xa8] sm:$0xff] %v2356
        %2691 = vst [vmem:[%s712 + $0xb0] sm:$0xff] %v2361
        %2692 = vst [vmem:[%s712 + $0xb8] sm:$0xff] %v2366
        %2693 = vst [vmem:[%s712 + $0xc0] sm:$0xff] %v2371
        %2694 = vst [vmem:[%s712 + $0xc8] sm:$0xff] %v2376
        %2695 = vst [vmem:[%s712 + $0xd0] sm:$0xff] %v2381
        %2696 = vst [vmem:[%s712 + $0xd8] sm:$0xff] %v2386
        %2697 = vst [vmem:[%s712 + $0xe0] sm:$0xff] %v2391
        %2698 = vst [vmem:[%s712 + $0xe8] sm:$0xff] %v2396
        %2699 = vst [vmem:[%s712 + $0xf0] sm:$0xff] %v2401
        %2700 = vst [vmem:[%s712 + $0xf8] sm:$0xff] %v2406
        %2701 = vst [vmem:[%s712 + $0x100] sm:$0xff] %v2411
        %2702 = vst [vmem:[%s712 + $0x108] sm:$0xff] %v2416
        %2703 = vst [vmem:[%s712 + $0x110] sm:$0xff] %v2421
        %2704 = vst [vmem:[%s712 + $0x118] sm:$0xff] %v2426
        %2705 = vst [vmem:[%s712 + $0x120] sm:$0xff] %v2431
        %2706 = vst [vmem:[%s712 + $0x128] sm:$0xff] %v2436
        %2707 = vst [vmem:[%s712 + $0x130] sm:$0xff] %v2441
        %2708 = vst [vmem:[%s712 + $0x138] sm:$0xff] %v2446
        %2709 = vst [vmem:[%s712 + $0x140] sm:$0xff] %v2451
        %2710 = vst [vmem:[%s712 + $0x148] sm:$0xff] %v2456
        %2711 = vst [vmem:[%s712 + $0x150] sm:$0xff] %v2461
        %2712 = vst [vmem:[%s712 + $0x158] sm:$0xff] %v2466
        %2713 = vst [vmem:[%s712 + $0x160] sm:$0xff] %v2471
        %2714 = vst [vmem:[%s712 + $0x168] sm:$0xff] %v2476
        %2715 = vst [vmem:[%s712 + $0x170] sm:$0xff] %v2481
        %2716 = vst [vmem:[%s712 + $0x178] sm:$0xff] %v2486
        %2717 = vst [vmem:[%s712 + $0x180] sm:$0xff] %v2491
        %2718 = vst [vmem:[%s712 + $0x188] sm:$0xff] %v2496
        %2719 = vst [vmem:[%s712 + $0x190] sm:$0xff] %v2501
        %2720 = vst [vmem:[%s712 + $0x198] sm:$0xff] %v2506
        %2721 = vst [vmem:[%s712 + $0x1a0] sm:$0xff] %v2511
        %2722 = vst [vmem:[%s712 + $0x1a8] sm:$0xff] %v2516
        %2723 = vst [vmem:[%s712 + $0x1b0] sm:$0xff] %v2521
        %2724 = vst [vmem:[%s712 + $0x1b8] sm:$0xff] %v2526
        %2725 = vst [vmem:[%s712 + $0x1c0] sm:$0xff] %v2531
        %2726 = vst [vmem:[%s712 + $0x1c8] sm:$0xff] %v2536
        %2727 = vst [vmem:[%s712 + $0x1d0] sm:$0xff] %v2541
        %2728 = vst [vmem:[%s712 + $0x1d8] sm:$0xff] %v2546
        %2729 = vst [vmem:[%s712 + $0x1e0] sm:$0xff] %v2551
        %2730 = vst [vmem:[%s712 + $0x1e8] sm:$0xff] %v2556
        %2731 = vst [vmem:[%s712 + $0x1f0] sm:$0xff] %v2561
        %2732 = vst [vmem:[%s712 + $0x1f8] sm:$0xff] %v2566
        %2733 = vst [vmem:[%s712 + $0x200] sm:$0xff] %v2571
        %2734 = vst [vmem:[%s712 + $0x208] sm:$0xff] %v2576
        %2735 = vst [vmem:[%s712 + $0x210] sm:$0xff] %v2581
        %2736 = vst [vmem:[%s712 + $0x218] sm:$0xff] %v2586
        %2737 = vst [vmem:[%s712 + $0x220] sm:$0xff] %v2591
        %2738 = vst [vmem:[%s712 + $0x228] sm:$0xff] %v2596
        %2739 = vst [vmem:[%s712 + $0x230] sm:$0xff] %v2601
        %2740 = vst [vmem:[%s712 + $0x238] sm:$0xff] %v2606
        %2741 = vst [vmem:[%s712 + $0x240] sm:$0xff] %v2611
        %2742 = vst [vmem:[%s712 + $0x248] sm:$0xff] %v2616
        %2743 = vst [vmem:[%s712 + $0x250] sm:$0xff] %v2621
        %2744 = vst [vmem:[%s712 + $0x258] sm:$0xff] %v2626
        %2745 = vst [vmem:[%s712 + $0x260] sm:$0xff] %v2631
        %2746 = vst [vmem:[%s712 + $0x268] sm:$0xff] %v2636
        %2747 = vst [vmem:[%s712 + $0x270] sm:$0xff] %v2641
        %2748 = vst [vmem:[%s712 + $0x278] sm:$0xff] %v2646
        %2749 = vst [vmem:[%s712 + $0x280] sm:$0xff] %v2651
        %2750 = vst [vmem:[%s712 + $0x288] sm:$0xff] %v2656
        %2751 = vst [vmem:[%s712 + $0x290] sm:$0xff] %v2661
        %2752 = vst [vmem:[%s712 + $0x298] sm:$0xff] %v2666
        %s2753 = sand.u32 %s157, 1
        %s2754 = sand.u32 %s157, 1
        %s2755 = smul.addr %s2754, 672
        %s2756 = scalar_lea.vmem [#allocation4], %s2755
        // Predicated region
        $region117: #{fused_block.1} parent=107 // pred_check
          %p2757 = pneg %p167
        $region118: #{fused_block.1} parent=107 // pred_check_branch
          %2759 = sbr.rel (%p2757) target = $region120
        $region119: #{fused_block.1} parent=107 // pred_region
          %s2760 = smul.addr %s20, 168
          %s2761 = sadd.s32 %s21, %s2760
          %s2762 = smul.addr %s2761, 8
          %s2763 = scalar_lea.vmem %s5, %s2762
          // Predicated region
          $region121: #{fused_block.1} parent=119 // pred_check
            _
          $region122: #{fused_block.1} parent=119 // pred_check_branch
            %2765 = sbr.rel (0) target = $region124
          $region123: #{fused_block.1} parent=119 // pred_region
            // Predicated region
            $region125: #{fused_block.1} parent=123 // pred_check
              _
            $region126: #{fused_block.1} parent=123 // pred_check_branch
              %2767 = sbr.rel (0) target = $region128
            $region127: #{fused_block.1} parent=123 // pred_region
              // Predicated region
              $region140: #{fused_block.1} parent=127 // pred_check
                _
              $region141: #{fused_block.1} parent=127 // pred_check_branch
                %2948 = sbr.rel (0) target = $region143
              $region142: #{fused_block.1} parent=127 // pred_region
                loop: start=0, step=1, limit=1
                $region144: #{fused_block.1} parent=142 // loop_pre_header
                  _
                $region145: #{fused_block.1} parent=142 // loop_header
                  %s2950 = sphi 0, %s2954
                  %p2951 = scmp.ge.s32.totalorder %s2950, 1
                  %s2955 = sphi %s2756, %s2756
                  %s2956 = sphi %s2763, %s2763
                $region146: #{fused_block.1} parent=142 // loop_header_branch
                  %2953 = sbr.rel (%p2951) target = $region150
                $region147: #{fused_block.1} parent=142 // loop_body
                  %v2957 = vld [vmem:[%s2955] sm:$0xff]
                  %2958 = vst [vmem:[%s2956] sm:$0xff] %v2957
                  %v2959 = vld [vmem:[%s2955 + $0x8] sm:$0xff]
                  %2960 = vst [vmem:[%s2956 + $0x10] sm:$0xff] %v2959
                  %v2961 = vld [vmem:[%s2955 + $0x10] sm:$0xff]
                  %2962 = vst [vmem:[%s2956 + $0x20] sm:$0xff] %v2961
                  %v2963 = vld [vmem:[%s2955 + $0x18] sm:$0xff]
                  %2964 = vst [vmem:[%s2956 + $0x30] sm:$0xff] %v2963
                  %v2965 = vld [vmem:[%s2955 + $0x20] sm:$0xff]
                  %2966 = vst [vmem:[%s2956 + $0x40] sm:$0xff] %v2965
                  %v2967 = vld [vmem:[%s2955 + $0x28] sm:$0xff]
                  %2968 = vst [vmem:[%s2956 + $0x50] sm:$0xff] %v2967
                  %v2969 = vld [vmem:[%s2955 + $0x30] sm:$0xff]
                  %2970 = vst [vmem:[%s2956 + $0x60] sm:$0xff] %v2969
                  %v2971 = vld [vmem:[%s2955 + $0x38] sm:$0xff]
                  %2972 = vst [vmem:[%s2956 + $0x70] sm:$0xff] %v2971
                  %v2973 = vld [vmem:[%s2955 + $0x40] sm:$0xff]
                  %2974 = vst [vmem:[%s2956 + $0x80] sm:$0xff] %v2973
                  %v2975 = vld [vmem:[%s2955 + $0x48] sm:$0xff]
                  %2976 = vst [vmem:[%s2956 + $0x90] sm:$0xff] %v2975
                  %v2977 = vld [vmem:[%s2955 + $0x50] sm:$0xff]
                  %2978 = vst [vmem:[%s2956 + $0xa0] sm:$0xff] %v2977
                  %v2979 = vld [vmem:[%s2955 + $0x58] sm:$0xff]
                  %2980 = vst [vmem:[%s2956 + $0xb0] sm:$0xff] %v2979
                  %v2981 = vld [vmem:[%s2955 + $0x60] sm:$0xff]
                  %2982 = vst [vmem:[%s2956 + $0xc0] sm:$0xff] %v2981
                  %v2983 = vld [vmem:[%s2955 + $0x68] sm:$0xff]
                  %2984 = vst [vmem:[%s2956 + $0xd0] sm:$0xff] %v2983
                  %v2985 = vld [vmem:[%s2955 + $0x70] sm:$0xff]
                  %2986 = vst [vmem:[%s2956 + $0xe0] sm:$0xff] %v2985
                  %v2987 = vld [vmem:[%s2955 + $0x78] sm:$0xff]
                  %2988 = vst [vmem:[%s2956 + $0xf0] sm:$0xff] %v2987
                  %v2989 = vld [vmem:[%s2955 + $0x80] sm:$0xff]
                  %2990 = vst [vmem:[%s2956 + $0x100] sm:$0xff] %v2989
                  %v2991 = vld [vmem:[%s2955 + $0x88] sm:$0xff]
                  %2992 = vst [vmem:[%s2956 + $0x110] sm:$0xff] %v2991
                  %v2993 = vld [vmem:[%s2955 + $0x90] sm:$0xff]
                  %2994 = vst [vmem:[%s2956 + $0x120] sm:$0xff] %v2993
                  %v2995 = vld [vmem:[%s2955 + $0x98] sm:$0xff]
                  %2996 = vst [vmem:[%s2956 + $0x130] sm:$0xff] %v2995
                  %v2997 = vld [vmem:[%s2955 + $0xa0] sm:$0xff]
                  %2998 = vst [vmem:[%s2956 + $0x140] sm:$0xff] %v2997
                  %v2999 = vld [vmem:[%s2955 + $0xa8] sm:$0xff]
                  %3000 = vst [vmem:[%s2956 + $0x150] sm:$0xff] %v2999
                  %v3001 = vld [vmem:[%s2955 + $0xb0] sm:$0xff]
                  %3002 = vst [vmem:[%s2956 + $0x160] sm:$0xff] %v3001
                  %v3003 = vld [vmem:[%s2955 + $0xb8] sm:$0xff]
                  %3004 = vst [vmem:[%s2956 + $0x170] sm:$0xff] %v3003
                  %v3005 = vld [vmem:[%s2955 + $0xc0] sm:$0xff]
                  %3006 = vst [vmem:[%s2956 + $0x180] sm:$0xff] %v3005
                  %v3007 = vld [vmem:[%s2955 + $0xc8] sm:$0xff]
                  %3008 = vst [vmem:[%s2956 + $0x190] sm:$0xff] %v3007
                  %v3009 = vld [vmem:[%s2955 + $0xd0] sm:$0xff]
                  %3010 = vst [vmem:[%s2956 + $0x1a0] sm:$0xff] %v3009
                  %v3011 = vld [vmem:[%s2955 + $0xd8] sm:$0xff]
                  %3012 = vst [vmem:[%s2956 + $0x1b0] sm:$0xff] %v3011
                  %v3013 = vld [vmem:[%s2955 + $0xe0] sm:$0xff]
                  %3014 = vst [vmem:[%s2956 + $0x1c0] sm:$0xff] %v3013
                  %v3015 = vld [vmem:[%s2955 + $0xe8] sm:$0xff]
                  %3016 = vst [vmem:[%s2956 + $0x1d0] sm:$0xff] %v3015
                  %v3017 = vld [vmem:[%s2955 + $0xf0] sm:$0xff]
                  %3018 = vst [vmem:[%s2956 + $0x1e0] sm:$0xff] %v3017
                  %v3019 = vld [vmem:[%s2955 + $0xf8] sm:$0xff]
                  %3020 = vst [vmem:[%s2956 + $0x1f0] sm:$0xff] %v3019
                  %v3021 = vld [vmem:[%s2955 + $0x100] sm:$0xff]
                  %3022 = vst [vmem:[%s2956 + $0x200] sm:$0xff] %v3021
                  %v3023 = vld [vmem:[%s2955 + $0x108] sm:$0xff]
                  %3024 = vst [vmem:[%s2956 + $0x210] sm:$0xff] %v3023
                  %v3025 = vld [vmem:[%s2955 + $0x110] sm:$0xff]
                  %3026 = vst [vmem:[%s2956 + $0x220] sm:$0xff] %v3025
                  %v3027 = vld [vmem:[%s2955 + $0x118] sm:$0xff]
                  %3028 = vst [vmem:[%s2956 + $0x230] sm:$0xff] %v3027
                  %v3029 = vld [vmem:[%s2955 + $0x120] sm:$0xff]
                  %3030 = vst [vmem:[%s2956 + $0x240] sm:$0xff] %v3029
                  %v3031 = vld [vmem:[%s2955 + $0x128] sm:$0xff]
                  %3032 = vst [vmem:[%s2956 + $0x250] sm:$0xff] %v3031
                  %v3033 = vld [vmem:[%s2955 + $0x130] sm:$0xff]
                  %3034 = vst [vmem:[%s2956 + $0x260] sm:$0xff] %v3033
                  %v3035 = vld [vmem:[%s2955 + $0x138] sm:$0xff]
                  %3036 = vst [vmem:[%s2956 + $0x270] sm:$0xff] %v3035
                  %v3037 = vld [vmem:[%s2955 + $0x140] sm:$0xff]
                  %3038 = vst [vmem:[%s2956 + $0x280] sm:$0xff] %v3037
                  %v3039 = vld [vmem:[%s2955 + $0x148] sm:$0xff]
                  %3040 = vst [vmem:[%s2956 + $0x290] sm:$0xff] %v3039
                  %v3041 = vld [vmem:[%s2955 + $0x150] sm:$0xff]
                  %3042 = vst [vmem:[%s2956 + $0x2a0] sm:$0xff] %v3041
                  %v3043 = vld [vmem:[%s2955 + $0x158] sm:$0xff]
                  %3044 = vst [vmem:[%s2956 + $0x2b0] sm:$0xff] %v3043
                  %v3045 = vld [vmem:[%s2955 + $0x160] sm:$0xff]
                  %3046 = vst [vmem:[%s2956 + $0x2c0] sm:$0xff] %v3045
                  %v3047 = vld [vmem:[%s2955 + $0x168] sm:$0xff]
                  %3048 = vst [vmem:[%s2956 + $0x2d0] sm:$0xff] %v3047
                  %v3049 = vld [vmem:[%s2955 + $0x170] sm:$0xff]
                  %3050 = vst [vmem:[%s2956 + $0x2e0] sm:$0xff] %v3049
                  %v3051 = vld [vmem:[%s2955 + $0x178] sm:$0xff]
                  %3052 = vst [vmem:[%s2956 + $0x2f0] sm:$0xff] %v3051
                  %v3053 = vld [vmem:[%s2955 + $0x180] sm:$0xff]
                  %3054 = vst [vmem:[%s2956 + $0x300] sm:$0xff] %v3053
                  %v3055 = vld [vmem:[%s2955 + $0x188] sm:$0xff]
                  %3056 = vst [vmem:[%s2956 + $0x310] sm:$0xff] %v3055
                  %v3057 = vld [vmem:[%s2955 + $0x190] sm:$0xff]
                  %3058 = vst [vmem:[%s2956 + $0x320] sm:$0xff] %v3057
                  %v3059 = vld [vmem:[%s2955 + $0x198] sm:$0xff]
                  %3060 = vst [vmem:[%s2956 + $0x330] sm:$0xff] %v3059
                  %v3061 = vld [vmem:[%s2955 + $0x1a0] sm:$0xff]
                  %3062 = vst [vmem:[%s2956 + $0x340] sm:$0xff] %v3061
                  %v3063 = vld [vmem:[%s2955 + $0x1a8] sm:$0xff]
                  %3064 = vst [vmem:[%s2956 + $0x350] sm:$0xff] %v3063
                  %v3065 = vld [vmem:[%s2955 + $0x1b0] sm:$0xff]
                  %3066 = vst [vmem:[%s2956 + $0x360] sm:$0xff] %v3065
                  %v3067 = vld [vmem:[%s2955 + $0x1b8] sm:$0xff]
                  %3068 = vst [vmem:[%s2956 + $0x370] sm:$0xff] %v3067
                  %v3069 = vld [vmem:[%s2955 + $0x1c0] sm:$0xff]
                  %3070 = vst [vmem:[%s2956 + $0x380] sm:$0xff] %v3069
                  %v3071 = vld [vmem:[%s2955 + $0x1c8] sm:$0xff]
                  %3072 = vst [vmem:[%s2956 + $0x390] sm:$0xff] %v3071
                  %v3073 = vld [vmem:[%s2955 + $0x1d0] sm:$0xff]
                  %3074 = vst [vmem:[%s2956 + $0x3a0] sm:$0xff] %v3073
                  %v3075 = vld [vmem:[%s2955 + $0x1d8] sm:$0xff]
                  %3076 = vst [vmem:[%s2956 + $0x3b0] sm:$0xff] %v3075
                  %v3077 = vld [vmem:[%s2955 + $0x1e0] sm:$0xff]
                  %3078 = vst [vmem:[%s2956 + $0x3c0] sm:$0xff] %v3077
                  %v3079 = vld [vmem:[%s2955 + $0x1e8] sm:$0xff]
                  %3080 = vst [vmem:[%s2956 + $0x3d0] sm:$0xff] %v3079
                  %v3081 = vld [vmem:[%s2955 + $0x1f0] sm:$0xff]
                  %3082 = vst [vmem:[%s2956 + $0x3e0] sm:$0xff] %v3081
                  %v3083 = vld [vmem:[%s2955 + $0x1f8] sm:$0xff]
                  %3084 = vst [vmem:[%s2956 + $0x3f0] sm:$0xff] %v3083
                  %v3085 = vld [vmem:[%s2955 + $0x200] sm:$0xff]
                  %3086 = vst [vmem:[%s2956 + $0x400] sm:$0xff] %v3085
                  %v3087 = vld [vmem:[%s2955 + $0x208] sm:$0xff]
                  %3088 = vst [vmem:[%s2956 + $0x410] sm:$0xff] %v3087
                  %v3089 = vld [vmem:[%s2955 + $0x210] sm:$0xff]
                  %3090 = vst [vmem:[%s2956 + $0x420] sm:$0xff] %v3089
                  %v3091 = vld [vmem:[%s2955 + $0x218] sm:$0xff]
                  %3092 = vst [vmem:[%s2956 + $0x430] sm:$0xff] %v3091
                  %v3093 = vld [vmem:[%s2955 + $0x220] sm:$0xff]
                  %3094 = vst [vmem:[%s2956 + $0x440] sm:$0xff] %v3093
                  %v3095 = vld [vmem:[%s2955 + $0x228] sm:$0xff]
                  %3096 = vst [vmem:[%s2956 + $0x450] sm:$0xff] %v3095
                  %v3097 = vld [vmem:[%s2955 + $0x230] sm:$0xff]
                  %3098 = vst [vmem:[%s2956 + $0x460] sm:$0xff] %v3097
                  %v3099 = vld [vmem:[%s2955 + $0x238] sm:$0xff]
                  %3100 = vst [vmem:[%s2956 + $0x470] sm:$0xff] %v3099
                  %v3101 = vld [vmem:[%s2955 + $0x240] sm:$0xff]
                  %3102 = vst [vmem:[%s2956 + $0x480] sm:$0xff] %v3101
                  %v3103 = vld [vmem:[%s2955 + $0x248] sm:$0xff]
                  %3104 = vst [vmem:[%s2956 + $0x490] sm:$0xff] %v3103
                  %v3105 = vld [vmem:[%s2955 + $0x250] sm:$0xff]
                  %3106 = vst [vmem:[%s2956 + $0x4a0] sm:$0xff] %v3105
                  %v3107 = vld [vmem:[%s2955 + $0x258] sm:$0xff]
                  %3108 = vst [vmem:[%s2956 + $0x4b0] sm:$0xff] %v3107
                  %v3109 = vld [vmem:[%s2955 + $0x260] sm:$0xff]
                  %3110 = vst [vmem:[%s2956 + $0x4c0] sm:$0xff] %v3109
                  %v3111 = vld [vmem:[%s2955 + $0x268] sm:$0xff]
                  %3112 = vst [vmem:[%s2956 + $0x4d0] sm:$0xff] %v3111
                  %v3113 = vld [vmem:[%s2955 + $0x270] sm:$0xff]
                  %3114 = vst [vmem:[%s2956 + $0x4e0] sm:$0xff] %v3113
                  %v3115 = vld [vmem:[%s2955 + $0x278] sm:$0xff]
                  %3116 = vst [vmem:[%s2956 + $0x4f0] sm:$0xff] %v3115
                  %v3117 = vld [vmem:[%s2955 + $0x280] sm:$0xff]
                  %3118 = vst [vmem:[%s2956 + $0x500] sm:$0xff] %v3117
                  %v3119 = vld [vmem:[%s2955 + $0x288] sm:$0xff]
                  %3120 = vst [vmem:[%s2956 + $0x510] sm:$0xff] %v3119
                  %v3121 = vld [vmem:[%s2955 + $0x290] sm:$0xff]
                  %3122 = vst [vmem:[%s2956 + $0x520] sm:$0xff] %v3121
                  %v3123 = vld [vmem:[%s2955 + $0x298] sm:$0xff]
                  %3124 = vst [vmem:[%s2956 + $0x530] sm:$0xff] %v3123
                $region148: #{fused_block.1} parent=142 // loop_footer
                  %s2954 = sadd.s32 1, %s2950
                $region149: #{fused_block.1} parent=142 // loop_footer_branch
                  %2949 = sbr.rel target = $region145
                $region150: #{fused_block.1} parent=142 // loop_exit
                  _
              $region143: #{fused_block.1} parent=127 // pred_fallthru
                _
              // Predicated region
              $region151: #{fused_block.1} parent=127 // pred_check
                _
              $region152: #{fused_block.1} parent=127 // pred_check_branch
                %3126 = sbr.rel target = $region154
              $region153: #{fused_block.1} parent=127 // pred_region
                _
              $region154: #{fused_block.1} parent=127 // pred_fallthru
                _
            $region128: #{fused_block.1} parent=123 // pred_fallthru
              _
            // Predicated region
            $region129: #{fused_block.1} parent=123 // pred_check
              _
            $region130: #{fused_block.1} parent=123 // pred_check_branch
              %2769 = sbr.rel target = $region132
            $region131: #{fused_block.1} parent=123 // pred_region
              loop: start=0, step=1, limit=1
              $region133: #{fused_block.1} parent=131 // loop_pre_header
                _
              $region134: #{fused_block.1} parent=131 // loop_header
                %s2772 = sphi 0, %s2776
                %p2773 = scmp.ge.s32.totalorder %s2772, 1
                %s2777 = sphi %s2756, %s2756
                %s2778 = sphi %s2763, %s2763
              $region135: #{fused_block.1} parent=131 // loop_header_branch
                %2775 = sbr.rel (%p2773) target = $region139
              $region136: #{fused_block.1} parent=131 // loop_body
                %v2779 = vld [vmem:[%s2777] sm:$0xff]
                %2780 = vst [vmem:[%s2778] sm:$0xff] %v2779
                %v2781 = vld [vmem:[%s2777 + $0x8] sm:$0xff]
                %2782 = vst [vmem:[%s2778 + $0x10] sm:$0xff] %v2781
                %v2783 = vld [vmem:[%s2777 + $0x10] sm:$0xff]
                %2784 = vst [vmem:[%s2778 + $0x20] sm:$0xff] %v2783
                %v2785 = vld [vmem:[%s2777 + $0x18] sm:$0xff]
                %2786 = vst [vmem:[%s2778 + $0x30] sm:$0xff] %v2785
                %v2787 = vld [vmem:[%s2777 + $0x20] sm:$0xff]
                %2788 = vst [vmem:[%s2778 + $0x40] sm:$0xff] %v2787
                %v2789 = vld [vmem:[%s2777 + $0x28] sm:$0xff]
                %2790 = vst [vmem:[%s2778 + $0x50] sm:$0xff] %v2789
                %v2791 = vld [vmem:[%s2777 + $0x30] sm:$0xff]
                %2792 = vst [vmem:[%s2778 + $0x60] sm:$0xff] %v2791
                %v2793 = vld [vmem:[%s2777 + $0x38] sm:$0xff]
                %2794 = vst [vmem:[%s2778 + $0x70] sm:$0xff] %v2793
                %v2795 = vld [vmem:[%s2777 + $0x40] sm:$0xff]
                %2796 = vst [vmem:[%s2778 + $0x80] sm:$0xff] %v2795
                %v2797 = vld [vmem:[%s2777 + $0x48] sm:$0xff]
                %2798 = vst [vmem:[%s2778 + $0x90] sm:$0xff] %v2797
                %v2799 = vld [vmem:[%s2777 + $0x50] sm:$0xff]
                %2800 = vst [vmem:[%s2778 + $0xa0] sm:$0xff] %v2799
                %v2801 = vld [vmem:[%s2777 + $0x58] sm:$0xff]
                %2802 = vst [vmem:[%s2778 + $0xb0] sm:$0xff] %v2801
                %v2803 = vld [vmem:[%s2777 + $0x60] sm:$0xff]
                %2804 = vst [vmem:[%s2778 + $0xc0] sm:$0xff] %v2803
                %v2805 = vld [vmem:[%s2777 + $0x68] sm:$0xff]
                %2806 = vst [vmem:[%s2778 + $0xd0] sm:$0xff] %v2805
                %v2807 = vld [vmem:[%s2777 + $0x70] sm:$0xff]
                %2808 = vst [vmem:[%s2778 + $0xe0] sm:$0xff] %v2807
                %v2809 = vld [vmem:[%s2777 + $0x78] sm:$0xff]
                %2810 = vst [vmem:[%s2778 + $0xf0] sm:$0xff] %v2809
                %v2811 = vld [vmem:[%s2777 + $0x80] sm:$0xff]
                %2812 = vst [vmem:[%s2778 + $0x100] sm:$0xff] %v2811
                %v2813 = vld [vmem:[%s2777 + $0x88] sm:$0xff]
                %2814 = vst [vmem:[%s2778 + $0x110] sm:$0xff] %v2813
                %v2815 = vld [vmem:[%s2777 + $0x90] sm:$0xff]
                %2816 = vst [vmem:[%s2778 + $0x120] sm:$0xff] %v2815
                %v2817 = vld [vmem:[%s2777 + $0x98] sm:$0xff]
                %2818 = vst [vmem:[%s2778 + $0x130] sm:$0xff] %v2817
                %v2819 = vld [vmem:[%s2777 + $0xa0] sm:$0xff]
                %2820 = vst [vmem:[%s2778 + $0x140] sm:$0xff] %v2819
                %v2821 = vld [vmem:[%s2777 + $0xa8] sm:$0xff]
                %2822 = vst [vmem:[%s2778 + $0x150] sm:$0xff] %v2821
                %v2823 = vld [vmem:[%s2777 + $0xb0] sm:$0xff]
                %2824 = vst [vmem:[%s2778 + $0x160] sm:$0xff] %v2823
                %v2825 = vld [vmem:[%s2777 + $0xb8] sm:$0xff]
                %2826 = vst [vmem:[%s2778 + $0x170] sm:$0xff] %v2825
                %v2827 = vld [vmem:[%s2777 + $0xc0] sm:$0xff]
                %2828 = vst [vmem:[%s2778 + $0x180] sm:$0xff] %v2827
                %v2829 = vld [vmem:[%s2777 + $0xc8] sm:$0xff]
                %2830 = vst [vmem:[%s2778 + $0x190] sm:$0xff] %v2829
                %v2831 = vld [vmem:[%s2777 + $0xd0] sm:$0xff]
                %2832 = vst [vmem:[%s2778 + $0x1a0] sm:$0xff] %v2831
                %v2833 = vld [vmem:[%s2777 + $0xd8] sm:$0xff]
                %2834 = vst [vmem:[%s2778 + $0x1b0] sm:$0xff] %v2833
                %v2835 = vld [vmem:[%s2777 + $0xe0] sm:$0xff]
                %2836 = vst [vmem:[%s2778 + $0x1c0] sm:$0xff] %v2835
                %v2837 = vld [vmem:[%s2777 + $0xe8] sm:$0xff]
                %2838 = vst [vmem:[%s2778 + $0x1d0] sm:$0xff] %v2837
                %v2839 = vld [vmem:[%s2777 + $0xf0] sm:$0xff]
                %2840 = vst [vmem:[%s2778 + $0x1e0] sm:$0xff] %v2839
                %v2841 = vld [vmem:[%s2777 + $0xf8] sm:$0xff]
                %2842 = vst [vmem:[%s2778 + $0x1f0] sm:$0xff] %v2841
                %v2843 = vld [vmem:[%s2777 + $0x100] sm:$0xff]
                %2844 = vst [vmem:[%s2778 + $0x200] sm:$0xff] %v2843
                %v2845 = vld [vmem:[%s2777 + $0x108] sm:$0xff]
                %2846 = vst [vmem:[%s2778 + $0x210] sm:$0xff] %v2845
                %v2847 = vld [vmem:[%s2777 + $0x110] sm:$0xff]
                %2848 = vst [vmem:[%s2778 + $0x220] sm:$0xff] %v2847
                %v2849 = vld [vmem:[%s2777 + $0x118] sm:$0xff]
                %2850 = vst [vmem:[%s2778 + $0x230] sm:$0xff] %v2849
                %v2851 = vld [vmem:[%s2777 + $0x120] sm:$0xff]
                %2852 = vst [vmem:[%s2778 + $0x240] sm:$0xff] %v2851
                %v2853 = vld [vmem:[%s2777 + $0x128] sm:$0xff]
                %2854 = vst [vmem:[%s2778 + $0x250] sm:$0xff] %v2853
                %v2855 = vld [vmem:[%s2777 + $0x130] sm:$0xff]
                %2856 = vst [vmem:[%s2778 + $0x260] sm:$0xff] %v2855
                %v2857 = vld [vmem:[%s2777 + $0x138] sm:$0xff]
                %2858 = vst [vmem:[%s2778 + $0x270] sm:$0xff] %v2857
                %v2859 = vld [vmem:[%s2777 + $0x140] sm:$0xff]
                %2860 = vst [vmem:[%s2778 + $0x280] sm:$0xff] %v2859
                %v2861 = vld [vmem:[%s2777 + $0x148] sm:$0xff]
                %2862 = vst [vmem:[%s2778 + $0x290] sm:$0xff] %v2861
                %v2863 = vld [vmem:[%s2777 + $0x150] sm:$0xff]
                %2864 = vst [vmem:[%s2778 + $0x2a0] sm:$0xff] %v2863
                %v2865 = vld [vmem:[%s2777 + $0x158] sm:$0xff]
                %2866 = vst [vmem:[%s2778 + $0x2b0] sm:$0xff] %v2865
                %v2867 = vld [vmem:[%s2777 + $0x160] sm:$0xff]
                %2868 = vst [vmem:[%s2778 + $0x2c0] sm:$0xff] %v2867
                %v2869 = vld [vmem:[%s2777 + $0x168] sm:$0xff]
                %2870 = vst [vmem:[%s2778 + $0x2d0] sm:$0xff] %v2869
                %v2871 = vld [vmem:[%s2777 + $0x170] sm:$0xff]
                %2872 = vst [vmem:[%s2778 + $0x2e0] sm:$0xff] %v2871
                %v2873 = vld [vmem:[%s2777 + $0x178] sm:$0xff]
                %2874 = vst [vmem:[%s2778 + $0x2f0] sm:$0xff] %v2873
                %v2875 = vld [vmem:[%s2777 + $0x180] sm:$0xff]
                %2876 = vst [vmem:[%s2778 + $0x300] sm:$0xff] %v2875
                %v2877 = vld [vmem:[%s2777 + $0x188] sm:$0xff]
                %2878 = vst [vmem:[%s2778 + $0x310] sm:$0xff] %v2877
                %v2879 = vld [vmem:[%s2777 + $0x190] sm:$0xff]
                %2880 = vst [vmem:[%s2778 + $0x320] sm:$0xff] %v2879
                %v2881 = vld [vmem:[%s2777 + $0x198] sm:$0xff]
                %2882 = vst [vmem:[%s2778 + $0x330] sm:$0xff] %v2881
                %v2883 = vld [vmem:[%s2777 + $0x1a0] sm:$0xff]
                %2884 = vst [vmem:[%s2778 + $0x340] sm:$0xff] %v2883
                %v2885 = vld [vmem:[%s2777 + $0x1a8] sm:$0xff]
                %2886 = vst [vmem:[%s2778 + $0x350] sm:$0xff] %v2885
                %v2887 = vld [vmem:[%s2777 + $0x1b0] sm:$0xff]
                %2888 = vst [vmem:[%s2778 + $0x360] sm:$0xff] %v2887
                %v2889 = vld [vmem:[%s2777 + $0x1b8] sm:$0xff]
                %2890 = vst [vmem:[%s2778 + $0x370] sm:$0xff] %v2889
                %v2891 = vld [vmem:[%s2777 + $0x1c0] sm:$0xff]
                %2892 = vst [vmem:[%s2778 + $0x380] sm:$0xff] %v2891
                %v2893 = vld [vmem:[%s2777 + $0x1c8] sm:$0xff]
                %2894 = vst [vmem:[%s2778 + $0x390] sm:$0xff] %v2893
                %v2895 = vld [vmem:[%s2777 + $0x1d0] sm:$0xff]
                %2896 = vst [vmem:[%s2778 + $0x3a0] sm:$0xff] %v2895
                %v2897 = vld [vmem:[%s2777 + $0x1d8] sm:$0xff]
                %2898 = vst [vmem:[%s2778 + $0x3b0] sm:$0xff] %v2897
                %v2899 = vld [vmem:[%s2777 + $0x1e0] sm:$0xff]
                %2900 = vst [vmem:[%s2778 + $0x3c0] sm:$0xff] %v2899
                %v2901 = vld [vmem:[%s2777 + $0x1e8] sm:$0xff]
                %2902 = vst [vmem:[%s2778 + $0x3d0] sm:$0xff] %v2901
                %v2903 = vld [vmem:[%s2777 + $0x1f0] sm:$0xff]
                %2904 = vst [vmem:[%s2778 + $0x3e0] sm:$0xff] %v2903
                %v2905 = vld [vmem:[%s2777 + $0x1f8] sm:$0xff]
                %2906 = vst [vmem:[%s2778 + $0x3f0] sm:$0xff] %v2905
                %v2907 = vld [vmem:[%s2777 + $0x200] sm:$0xff]
                %2908 = vst [vmem:[%s2778 + $0x400] sm:$0xff] %v2907
                %v2909 = vld [vmem:[%s2777 + $0x208] sm:$0xff]
                %2910 = vst [vmem:[%s2778 + $0x410] sm:$0xff] %v2909
                %v2911 = vld [vmem:[%s2777 + $0x210] sm:$0xff]
                %2912 = vst [vmem:[%s2778 + $0x420] sm:$0xff] %v2911
                %v2913 = vld [vmem:[%s2777 + $0x218] sm:$0xff]
                %2914 = vst [vmem:[%s2778 + $0x430] sm:$0xff] %v2913
                %v2915 = vld [vmem:[%s2777 + $0x220] sm:$0xff]
                %2916 = vst [vmem:[%s2778 + $0x440] sm:$0xff] %v2915
                %v2917 = vld [vmem:[%s2777 + $0x228] sm:$0xff]
                %2918 = vst [vmem:[%s2778 + $0x450] sm:$0xff] %v2917
                %v2919 = vld [vmem:[%s2777 + $0x230] sm:$0xff]
                %2920 = vst [vmem:[%s2778 + $0x460] sm:$0xff] %v2919
                %v2921 = vld [vmem:[%s2777 + $0x238] sm:$0xff]
                %2922 = vst [vmem:[%s2778 + $0x470] sm:$0xff] %v2921
                %v2923 = vld [vmem:[%s2777 + $0x240] sm:$0xff]
                %2924 = vst [vmem:[%s2778 + $0x480] sm:$0xff] %v2923
                %v2925 = vld [vmem:[%s2777 + $0x248] sm:$0xff]
                %2926 = vst [vmem:[%s2778 + $0x490] sm:$0xff] %v2925
                %v2927 = vld [vmem:[%s2777 + $0x250] sm:$0xff]
                %2928 = vst [vmem:[%s2778 + $0x4a0] sm:$0xff] %v2927
                %v2929 = vld [vmem:[%s2777 + $0x258] sm:$0xff]
                %2930 = vst [vmem:[%s2778 + $0x4b0] sm:$0xff] %v2929
                %v2931 = vld [vmem:[%s2777 + $0x260] sm:$0xff]
                %2932 = vst [vmem:[%s2778 + $0x4c0] sm:$0xff] %v2931
                %v2933 = vld [vmem:[%s2777 + $0x268] sm:$0xff]
                %2934 = vst [vmem:[%s2778 + $0x4d0] sm:$0xff] %v2933
                %v2935 = vld [vmem:[%s2777 + $0x270] sm:$0xff]
                %2936 = vst [vmem:[%s2778 + $0x4e0] sm:$0xff] %v2935
                %v2937 = vld [vmem:[%s2777 + $0x278] sm:$0xff]
                %2938 = vst [vmem:[%s2778 + $0x4f0] sm:$0xff] %v2937
                %v2939 = vld [vmem:[%s2777 + $0x280] sm:$0xff]
                %2940 = vst [vmem:[%s2778 + $0x500] sm:$0xff] %v2939
                %v2941 = vld [vmem:[%s2777 + $0x288] sm:$0xff]
                %2942 = vst [vmem:[%s2778 + $0x510] sm:$0xff] %v2941
                %v2943 = vld [vmem:[%s2777 + $0x290] sm:$0xff]
                %2944 = vst [vmem:[%s2778 + $0x520] sm:$0xff] %v2943
                %v2945 = vld [vmem:[%s2777 + $0x298] sm:$0xff]
                %2946 = vst [vmem:[%s2778 + $0x530] sm:$0xff] %v2945
              $region137: #{fused_block.1} parent=131 // loop_footer
                %s2776 = sadd.s32 1, %s2772
              $region138: #{fused_block.1} parent=131 // loop_footer_branch
                %2771 = sbr.rel target = $region134
              $region139: #{fused_block.1} parent=131 // loop_exit
                _
            $region132: #{fused_block.1} parent=123 // pred_fallthru
              _
          $region124: #{fused_block.1} parent=119 // pred_fallthru
            _
          %3127 = vnop
        $region120: #{fused_block.1} parent=107 // pred_fallthru
          _
      $region108: #{fused_block.1} parent=5 // pred_fallthru
        _
      %p3128 = scmp.le.s32.totalorder 2, %s11
      // Predicated region
      $region155: #{fused_block.1} parent=5 // pred_check
        %p3129 = pneg %p3128
      $region156: #{fused_block.1} parent=5 // pred_check_branch
        %3131 = sbr.rel (%p3129) target = $region158
      $region157: #{fused_block.1} parent=5 // pred_region
        %s3132 = ssub.s32 %s11, 2
        // Predicated region
        $region159: #{fused_block.1} parent=157 // pred_check
          %p3133 = pneg %p173
        $region160: #{fused_block.1} parent=157 // pred_check_branch
          %3135 = sbr.rel (%p3133) target = $region162
        $region161: #{fused_block.1} parent=157 // pred_region
          %s3136 = sand.u32 %s158, 1
          %s3137 = sand.u32 %s158, 1
          %s3138 = smul.addr %s3137, 672
          %s3139 = scalar_lea.vmem [#allocation4], %s3138
        $region162: #{fused_block.1} parent=157 // pred_fallthru
          _
      $region158: #{fused_block.1} parent=5 // pred_fallthru
        _
    $region6: #{fused_block.1} parent=1 // loop_footer
      %s15 = sadd.s32 1, %s11
    $region7: #{fused_block.1} parent=1 // loop_footer_branch
      %10 = sbr.rel target = $region3
    $region8: #{fused_block.1} parent=1 // loop_exit
      _

</llo_original>
